<compile_context>
chip_gen: v5e
topology: v5e:2x2
jax: 0.10.0
libtpu: 0.0.40
codegen_flags: <defaults>
</compile_context>

<pallas_src>
import math

import jax
import jax.numpy as jnp
from jax import lax
from jax.experimental import pallas as pl
from jax.experimental.pallas import tpu as pltpu

# ----------------------------- configuration --------------------------------
B = 2            # batch size
S = 8            # sequence length
H = 32           # hidden size
N_HEAD = 2
HEAD_DIM = H // N_HEAD
N_LAYER = 2
V = 64           # vocab size
MAX_POS = 16
LN_EPS = 1e-5
NEG_INF = -1e9
BS = B * S

# order of the layer-stacked parameter arrays fed to the kernel
STACKED = ("ln1_g", "ln1_b", "w_q", "w_k", "w_v", "b_q", "b_k", "b_v",
           "w_proj", "b_proj", "ln2_g", "ln2_b", "w_fc", "b_fc", "w_out", "b_out")


# ------------------------------ Pallas kernel --------------------------------
def _ln(x, g, b):
    mu = jnp.mean(x, axis=-1, keepdims=True)
    var = jnp.mean(jnp.square(x - mu), axis=-1, keepdims=True)
    return (x - mu) * lax.rsqrt(var + LN_EPS) * g + b


def gen_forward_kernel(slen_ref,                                   # scalar prefetch (SMEM)
                       sent_ref, wte_ref, wte_t_ref, wpe_ref,      # data / embeddings
                       ln1g_ref, ln1b_ref, wq_ref, wk_ref, wv_ref,
                       bq_ref, bk_ref, bv_ref, wproj_ref, bproj_ref,
                       ln2g_ref, ln2b_ref, wfc_ref, bfc_ref, wout_ref, bout_ref,
                       lnfg_ref, lnfb_ref,
                       out_ref):
    """One grid step = one batch sample (grid=(B,), 'parallel').

    sent_ref: (S, 1) int32 token ids for this sample.  All weights are full
    VMEM-resident blocks; per-layer weights carry a leading N_LAYER axis and
    per-head weights a (N_LAYER, N_HEAD) prefix, indexed with static ints.
    Output: (1, 1, 2) = [sum of masked nll, number of valid targets].
    """
    b = pl.program_id(0)
    seqlen = slen_ref[b]                                     # scalar from SMEM

    # ---- in-kernel embedding: one-hot (S,V) @ wte (V,H) on the MXU ----------
    sent_col = sent_ref[...]                                 # (S, 1) int32
    vocab_ids = lax.broadcasted_iota(jnp.int32, (S, V), 1)
    onehot = (vocab_ids == sent_col).astype(jnp.float32)     # (S, V)
    x = jnp.dot(onehot, wte_ref[...],
                preferred_element_type=jnp.float32) + wpe_ref[:S, :]

    # ---- additive attention-mask bias (built once, reused by all layers) ----
    row_t = lax.broadcasted_iota(jnp.int32, (S, S), 0)
    col_t = lax.broadcasted_iota(jnp.int32, (S, S), 1)
    mask_bias = jnp.where((row_t >= col_t) & (col_t < seqlen), 0.0, NEG_INF)

    scale = 1.0 / math.sqrt(HEAD_DIM)
    for l in range(N_LAYER):                                 # static layer loop
        # --- attention branch -------------------------------------------------
        h1 = _ln(x, ln1g_ref[l], ln1b_ref[l])
        xa = x + bproj_ref[l]                                # accumulate heads onto residual
        for hd in range(N_HEAD):                             # static head loop
            q = jnp.dot(h1, wq_ref[l, hd],
                        preferred_element_type=jnp.float32) + bq_ref[l, hd]
            k = jnp.dot(h1, wk_ref[l, hd],
                        preferred_element_type=jnp.float32) + bk_ref[l, hd]
            v = jnp.dot(h1, wv_ref[l, hd],
                        preferred_element_type=jnp.float32) + bv_ref[l, hd]
            s = lax.dot_general(q, k, (((1,), (1,)), ((), ())),
                                preferred_element_type=jnp.float32) * scale + mask_bias
            m = jnp.max(s, axis=-1, keepdims=True)
            p = jnp.exp(s - m)
            p = p * pl.reciprocal(jnp.sum(p, axis=-1, keepdims=True), approx=True)
            ho = jnp.dot(p, v, preferred_element_type=jnp.float32)   # (S, HD)
            xa = xa + jnp.dot(ho, wproj_ref[l, hd],
                              preferred_element_type=jnp.float32)
        x = xa

        # --- MLP branch --------------------------------------------------------
        h2 = _ln(x, ln2g_ref[l], ln2b_ref[l])
        f = jnp.dot(h2, wfc_ref[l],
                    preferred_element_type=jnp.float32) + bfc_ref[l]
        f = jax.nn.gelu(f, approximate=True)                 # GPT-2 gelu_new
        x = x + jnp.dot(f, wout_ref[l],
                        preferred_element_type=jnp.float32) + bout_ref[l]

    # ---- final LN + LM head (wte pre-transposed once at pack time) ----------
    hf = _ln(x, lnfg_ref[...], lnfb_ref[...])
    logits = jnp.dot(hf, wte_t_ref[...],
                     preferred_element_type=jnp.float32)     # (S, V)

    # ---- masked cross-entropy partials for this sample -----------------------
    # target logit of row t is <logits[t], onehot[t+1]> == superdiagonal of
    # logits @ onehot^T  (reuses the embedding one-hot and the (S,S) iotas).
    prod = lax.dot_general(logits, onehot, (((1,), (1,)), ((), ())),
                           preferred_element_type=jnp.float32)        # (S, S)
    tgt_logit = jnp.sum(jnp.where(col_t == row_t + 1, prod, 0.0),
                        axis=-1, keepdims=True)                       # (S, 1)

    pos_col = lax.broadcasted_iota(jnp.int32, (S, 1), 0)
    vmask = (pos_col < (seqlen - 1)).astype(jnp.float32)              # (S, 1)

    m = jnp.max(logits, axis=-1, keepdims=True)
    lse = m + jnp.log(jnp.sum(jnp.exp(logits - m), axis=-1, keepdims=True))
    nll = (lse - tgt_logit) * vmask                                   # (S, 1)

    sum_nll = jnp.sum(nll, axis=0, keepdims=True)                     # (1, 1)
    cnt = jnp.sum(vmask, axis=0, keepdims=True)                       # (1, 1)
    lane2 = lax.broadcasted_iota(jnp.int32, (1, 2), 1)
    out_ref[0] = jnp.where(lane2 == 0, sum_nll, cnt)                  # single store


# ------------------------------ wrapper ---------------------------------------
def _full_spec(shape):
    nd = len(shape)
    return pl.BlockSpec(shape, lambda b, slen, _nd=nd: (0,) * _nd)


@jax.jit
def gen_network_forward(packed, sent, sent_length):
    """Equivalent of GenNetwork.forward: teacher forcing + masked CE + ppl."""
    sent_col = sent.reshape(BS, 1).astype(jnp.int32)

    tensor_inputs = [sent_col, packed["wte"], packed["wte_t"], packed["wpe"]] \
        + [packed[k] for k in STACKED] \
        + [packed["lnf_g"], packed["lnf_b"]]

    in_specs = [pl.BlockSpec((S, 1), lambda b, slen: (b, 0))] \
        + [_full_spec(a.shape) for a in tensor_inputs[1:]]

    stats = pl.pallas_call(
        gen_forward_kernel,
        out_shape=jax.ShapeDtypeStruct((B, 1, 2), jnp.float32),
        grid_spec=pltpu.PrefetchScalarGridSpec(
            num_scalar_prefetch=1,
            grid=(B,),                       # batch-parallel: uses both TCs on v7x
            in_specs=in_specs,
            out_specs=pl.BlockSpec((1, 1, 2), lambda b, slen: (b, 0, 0)),
        ),
        compiler_params=pltpu.CompilerParams(
            dimension_semantics=("parallel",)),
    )(sent_length.astype(jnp.int32), *tensor_inputs)

    total = jnp.sum(stats[:, 0, 0])
    cnt = jnp.maximum(jnp.sum(stats[:, 0, 1]), 1.0)   # guard all-padding batches
    loss = total / cnt
    return loss, jnp.exp(loss)


# ------------------------- one-time parameter packing -------------------------
def pack_params(params):
    """Done ONCE at init: layer stacking, per-head Wq/Wk/Wv/Wproj split,
    wte transpose for the LM head.  Never re-run per forward call."""
    def stack(fn):
        return jnp.stack([fn(lp) for lp in params["layers"]])

    def heads_w(w, off):      # (H, 3H) column block -> (N_HEAD, H, HEAD_DIM)
        return w[:, off:off + H].reshape(H, N_HEAD, HEAD_DIM).transpose(1, 0, 2)

    def heads_b(bias, off):   # (1, 3H) -> (N_HEAD, 1, HEAD_DIM)
        return bias[0, off:off + H].reshape(N_HEAD, 1, HEAD_DIM)

    return {
        "wte": params["wte"],                       # (V, H) for embedding one-hot matmul
        "wte_t": jnp.transpose(params["wte"]),      # (H, V) canonical LM head, transposed once
        "wpe": params["wpe"],
        "lnf_g": params["lnf_g"],
        "lnf_b": params["lnf_b"],
        "ln1_g": stack(lambda lp: lp["ln1_g"]),
        "ln1_b": stack(lambda lp: lp["ln1_b"]),
        "w_q": stack(lambda lp: heads_w(lp["w_qkv"], 0)),
        "w_k": stack(lambda lp: heads_w(lp["w_qkv"], H)),
        "w_v": stack(lambda lp: heads_w(lp["w_qkv"], 2 * H)),
        "b_q": stack(lambda lp: heads_b(lp["b_qkv"], 0)),
        "b_k": stack(lambda lp: heads_b(lp["b_qkv"], H)),
        "b_v": stack(lambda lp: heads_b(lp["b_qkv"], 2 * H)),
        "w_proj": stack(lambda lp: lp["w_proj"].reshape(N_HEAD, HEAD_DIM, H)),
        "b_proj": stack(lambda lp: lp["b_proj"]),
        "ln2_g": stack(lambda lp: lp["ln2_g"]),
        "ln2_b": stack(lambda lp: lp["ln2_b"]),
        "w_fc": stack(lambda lp: lp["w_fc"]),
        "b_fc": stack(lambda lp: lp["b_fc"]),
        "w_out": stack(lambda lp: lp["w_out"]),
        "b_out": stack(lambda lp: lp["b_out"]),
    }


# ------------------------------ reference ------------------------------------
def reference_forward(params, sent, sent_length):
    pos = jnp.arange(S)
    x = params["wte"][sent] + params["wpe"][pos][None]
    key_mask = pos[None, :] < sent_length[:, None]

    def ln(x, g, b):
        mu = x.mean(-1, keepdims=True)
        var = ((x - mu) ** 2).mean(-1, keepdims=True)
        return (x - mu) * lax.rsqrt(var + LN_EPS) * g + b

    causal = jnp.tril(jnp.ones((S, S), bool))
    for lp in params["layers"]:
        h = ln(x, lp["ln1_g"], lp["ln1_b"])
        qkv = h @ lp["w_qkv"] + lp["b_qkv"]
        q, k, v = jnp.split(qkv, 3, axis=-1)
        q = q.reshape(B, S, N_HEAD, HEAD_DIM).transpose(0, 2, 1, 3)
        k = k.reshape(B, S, N_HEAD, HEAD_DIM).transpose(0, 2, 1, 3)
        v = v.reshape(B, S, N_HEAD, HEAD_DIM).transpose(0, 2, 1, 3)
        s = jnp.einsum("bhqd,bhkd->bhqk", q, k) / math.sqrt(HEAD_DIM)
        allowed = causal[None, None] & key_mask[:, None, None, :]
        s = jnp.where(allowed, s, NEG_INF)
        p = jax.nn.softmax(s, axis=-1)
        a = jnp.einsum("bhqk,bhkd->bhqd", p, v).transpose(0, 2, 1, 3)
        a = a.reshape(B, S, H)
        x = x + a @ lp["w_proj"] + lp["b_proj"]
        h2 = ln(x, lp["ln2_g"], lp["ln2_b"])
        f = jax.nn.gelu(h2 @ lp["w_fc"] + lp["b_fc"], approximate=True)
        x = x + f @ lp["w_out"] + lp["b_out"]

    h = ln(x, params["lnf_g"], params["lnf_b"])
    logits = h @ params["wte"].T
    lg = logits[:, :-1]
    tgt = sent[:, 1:]
    logp = jax.nn.log_softmax(lg, axis=-1)
    nll = -jnp.take_along_axis(logp, tgt[:, :, None], axis=-1)[..., 0]
    valid = (jnp.arange(S - 1)[None] < (sent_length - 1)[:, None]).astype(jnp.float32)
    loss = jnp.sum(nll * valid) / jnp.sum(valid)
    return loss, jnp.exp(loss)


# ------------------------------ init -----------------------------------------
def init_params(key):
    def nrm(k, shape, scale=0.02):
        return (scale * jax.random.normal(k, shape)).astype(jnp.float32)

    keys = iter(jax.random.split(key, 64))
    params = {
        "wte": nrm(next(keys), (V, H)),
        "wpe": nrm(next(keys), (MAX_POS, H), 0.01),
        "lnf_g": jnp.ones((1, H), jnp.float32),
        "lnf_b": jnp.zeros((1, H), jnp.float32),
        "layers": [],
    }
    for _ in range(N_LAYER):
        params["layers"].append({
            "ln1_g": jnp.ones((1, H), jnp.float32),
            "ln1_b": jnp.zeros((1, H), jnp.float32),
            "w_qkv": nrm(next(keys), (H, 3 * H)),
            "b_qkv": jnp.zeros((1, 3 * H), jnp.float32),
            "w_proj": nrm(next(keys), (H, H)),
            "b_proj": jnp.zeros((1, H), jnp.float32),
            "ln2_g": jnp.ones((1, H), jnp.float32),
            "ln2_b": jnp.zeros((1, H), jnp.float32),
            "w_fc": nrm(next(keys), (H, 4 * H)),
            "b_fc": jnp.zeros((1, 4 * H), jnp.float32),
            "w_out": nrm(next(keys), (4 * H, H)),
            "b_out": jnp.zeros((1, H), jnp.float32),
        })
    return params


# ------------------------------ main ------------------------------------------
if __name__ == "__main__":
    key = jax.random.PRNGKey(0)
    pkey, skey = jax.random.split(key)
    params = init_params(pkey)
    packed = pack_params(params)        # one-time packing, not per-call

    sent = jax.random.randint(skey, (B, S), 0, V, dtype=jnp.int32)
    sent_length = jnp.array([S, S - 2], dtype=jnp.int32)   # per-sample valid lengths (>= 2)

    loss, ppl = gen_network_forward(packed, sent, sent_length)
    jax.block_until_ready((loss, ppl))

    ref_loss, ref_ppl = reference_forward(params, sent, sent_length)
    assert bool(jnp.isfinite(loss)) and bool(jnp.isfinite(ppl))
    # tolerance loosened slightly: pl.reciprocal(approx=True) in the softmax
    assert jnp.allclose(loss, ref_loss, rtol=5e-3, atol=5e-3), (loss, ref_loss)
    assert jnp.allclose(ppl, ref_ppl, rtol=5e-3, atol=5e-3), (ppl, ref_ppl)

    print("KERNEL_OK")
</pallas_src>

<mosaic_0001>
module attributes {stable_mosaic.version = 11 : i64} {
  func.func @gen_forward_kernel(%arg0: i32, %arg1: memref<2xi32, #tpu.memory_space<smem>>, %arg2: memref<8x1xi32, #tpu.memory_space<vmem>>, %arg3: memref<64x32xf32, #tpu.memory_space<vmem>>, %arg4: memref<32x64xf32, #tpu.memory_space<vmem>>, %arg5: memref<16x32xf32, #tpu.memory_space<vmem>>, %arg6: memref<2x1x32xf32, #tpu.memory_space<vmem>>, %arg7: memref<2x1x32xf32, #tpu.memory_space<vmem>>, %arg8: memref<2x2x32x16xf32, #tpu.memory_space<vmem>>, %arg9: memref<2x2x32x16xf32, #tpu.memory_space<vmem>>, %arg10: memref<2x2x32x16xf32, #tpu.memory_space<vmem>>, %arg11: memref<2x2x1x16xf32, #tpu.memory_space<vmem>>, %arg12: memref<2x2x1x16xf32, #tpu.memory_space<vmem>>, %arg13: memref<2x2x1x16xf32, #tpu.memory_space<vmem>>, %arg14: memref<2x2x16x32xf32, #tpu.memory_space<vmem>>, %arg15: memref<2x1x32xf32, #tpu.memory_space<vmem>>, %arg16: memref<2x1x32xf32, #tpu.memory_space<vmem>>, %arg17: memref<2x1x32xf32, #tpu.memory_space<vmem>>, %arg18: memref<2x32x128xf32, #tpu.memory_space<vmem>>, %arg19: memref<2x1x128xf32, #tpu.memory_space<vmem>>, %arg20: memref<2x128x32xf32, #tpu.memory_space<vmem>>, %arg21: memref<2x1x32xf32, #tpu.memory_space<vmem>>, %arg22: memref<1x32xf32, #tpu.memory_space<vmem>>, %arg23: memref<1x32xf32, #tpu.memory_space<vmem>>, %arg24: memref<1x1x2xf32, #tpu.memory_space<vmem>>) attributes {dimension_semantics = [#tpu.dimension_semantics<parallel>], iteration_bounds = array<i64: 2>, scalar_prefetch = 1 : i64, scratch_operands = 0 : i64, tpu.core_type = #tpu.core_type<tc>, window_params = [{transform_indices = @transform_0, window_bounds = array<i64: 8, 1>}, {pipeline_mode = #tpu.pipeline_mode<synchronous>, transform_indices = @transform_1, window_bounds = array<i64: 64, 32>}, {pipeline_mode = #tpu.pipeline_mode<synchronous>, transform_indices = @transform_2, window_bounds = array<i64: 32, 64>}, {pipeline_mode = #tpu.pipeline_mode<synchronous>, transform_indices = @transform_3, window_bounds = array<i64: 16, 32>}, {pipeline_mode = #tpu.pipeline_mode<synchronous>, transform_indices = @transform_4, window_bounds = array<i64: 2, 1, 32>}, {pipeline_mode = #tpu.pipeline_mode<synchronous>, transform_indices = @transform_5, window_bounds = array<i64: 2, 1, 32>}, {pipeline_mode = #tpu.pipeline_mode<synchronous>, transform_indices = @transform_6, window_bounds = array<i64: 2, 2, 32, 16>}, {pipeline_mode = #tpu.pipeline_mode<synchronous>, transform_indices = @transform_7, window_bounds = array<i64: 2, 2, 32, 16>}, {pipeline_mode = #tpu.pipeline_mode<synchronous>, transform_indices = @transform_8, window_bounds = array<i64: 2, 2, 32, 16>}, {pipeline_mode = #tpu.pipeline_mode<synchronous>, transform_indices = @transform_9, window_bounds = array<i64: 2, 2, 1, 16>}, {pipeline_mode = #tpu.pipeline_mode<synchronous>, transform_indices = @transform_10, window_bounds = array<i64: 2, 2, 1, 16>}, {pipeline_mode = #tpu.pipeline_mode<synchronous>, transform_indices = @transform_11, window_bounds = array<i64: 2, 2, 1, 16>}, {pipeline_mode = #tpu.pipeline_mode<synchronous>, transform_indices = @transform_12, window_bounds = array<i64: 2, 2, 16, 32>}, {pipeline_mode = #tpu.pipeline_mode<synchronous>, transform_indices = @transform_13, window_bounds = array<i64: 2, 1, 32>}, {pipeline_mode = #tpu.pipeline_mode<synchronous>, transform_indices = @transform_14, window_bounds = array<i64: 2, 1, 32>}, {pipeline_mode = #tpu.pipeline_mode<synchronous>, transform_indices = @transform_15, window_bounds = array<i64: 2, 1, 32>}, {pipeline_mode = #tpu.pipeline_mode<synchronous>, transform_indices = @transform_16, window_bounds = array<i64: 2, 32, 128>}, {pipeline_mode = #tpu.pipeline_mode<synchronous>, transform_indices = @transform_17, window_bounds = array<i64: 2, 1, 128>}, {pipeline_mode = #tpu.pipeline_mode<synchronous>, transform_indices = @transform_18, window_bounds = array<i64: 2, 128, 32>}, {pipeline_mode = #tpu.pipeline_mode<synchronous>, transform_indices = @transform_19, window_bounds = array<i64: 2, 1, 32>}, {pipeline_mode = #tpu.pipeline_mode<synchronous>, transform_indices = @transform_20, window_bounds = array<i64: 1, 32>}, {pipeline_mode = #tpu.pipeline_mode<synchronous>, transform_indices = @transform_21, window_bounds = array<i64: 1, 32>}, {transform_indices = @transform_22, window_bounds = array<i64: 1, 1, 2>}]} {
    %0 = arith.index_cast %arg0 : i32 to index
    %1 = memref.load %arg1[%0] : memref<2xi32, #tpu.memory_space<smem>>
    %c0 = arith.constant 0 : index
    %c0_0 = arith.constant 0 : index
    %2 = vector.load %arg2[%c0, %c0_0] : memref<8x1xi32, #tpu.memory_space<vmem>>, vector<8x1xi32>
    %3 = tpu.iota {dimensions = array<i32: 1>} : vector<8x64xi32>
    %4 = vector.broadcast %2 : vector<8x1xi32> to vector<8x64xi32>
    %5 = arith.cmpi eq, %3, %4 : vector<8x64xi32>
    %6 = arith.extui %5 : vector<8x64xi1> to vector<8x64xi32>
    %7 = arith.sitofp %6 : vector<8x64xi32> to vector<8x64xf32>
    %c0_1 = arith.constant 0 : index
    %c0_2 = arith.constant 0 : index
    %8 = vector.load %arg3[%c0_1, %c0_2] : memref<64x32xf32, #tpu.memory_space<vmem>>, vector<64x32xf32>
    %cst = arith.constant dense<0.000000e+00> : vector<8x32xf32>
    %9 = tpu.matmul %7, %8, %cst {dimension_numbers = #tpu.dot_dimension_numbers<[1], [0], [0], [1], [0, 0, 1, 1], [], []>} : vector<8x64xf32>, vector<64x32xf32>, vector<8x32xf32> -> vector<8x32xf32>
    %c0_3 = arith.constant 0 : index
    %c0_4 = arith.constant 0 : index
    %10 = vector.load %arg5[%c0_3, %c0_4] : memref<16x32xf32, #tpu.memory_space<vmem>>, vector<8x32xf32>
    %11 = arith.addf %9, %10 : vector<8x32xf32>
    %12 = tpu.iota {dimensions = array<i32: 0>} : vector<8x8xi32>
    %13 = tpu.iota {dimensions = array<i32: 1>} : vector<8x8xi32>
    %14 = arith.cmpi sge, %12, %13 : vector<8x8xi32>
    %15 = vector.broadcast %1 : i32 to vector<8x8xi32>
    %16 = arith.cmpi slt, %13, %15 : vector<8x8xi32>
    %17 = arith.andi %14, %16 : vector<8x8xi1>
    %cst_5 = arith.constant 0.000000e+00 : f32
    %cst_6 = arith.constant -1.000000e+09 : f32
    %18 = vector.broadcast %cst_5 : f32 to vector<8x8xf32>
    %19 = vector.broadcast %cst_6 : f32 to vector<8x8xf32>
    %20 = arith.select %17, %18, %19 : vector<8x8xi1>, vector<8x8xf32>
    %c0_7 = arith.constant 0 : index
    %c0_8 = arith.constant 0 : index
    %c0_9 = arith.constant 0 : index
    %21 = vector.load %arg6[%c0_7, %c0_8, %c0_9] : memref<2x1x32xf32, #tpu.memory_space<vmem>>, vector<1x1x32xf32>
    %22 = vector.shape_cast %21 : vector<1x1x32xf32> to vector<1x32xf32>
    %c0_10 = arith.constant 0 : index
    %c0_11 = arith.constant 0 : index
    %c0_12 = arith.constant 0 : index
    %23 = vector.load %arg7[%c0_10, %c0_11, %c0_12] : memref<2x1x32xf32, #tpu.memory_space<vmem>>, vector<1x1x32xf32>
    %24 = vector.shape_cast %23 : vector<1x1x32xf32> to vector<1x32xf32>
    %cst_13 = arith.constant dense<0.000000e+00> : vector<8xf32>
    %25 = vector.multi_reduction <add>, %11, %cst_13 [1] : vector<8x32xf32> to vector<8xf32>
    %26 = vector.shape_cast %25 : vector<8xf32> to vector<8x1xf32>
    %cst_14 = arith.constant 3.200000e+01 : f32
    %27 = vector.broadcast %cst_14 : f32 to vector<8x1xf32>
    %28 = arith.divf %26, %27 : vector<8x1xf32>
    %29 = vector.broadcast %28 : vector<8x1xf32> to vector<8x32xf32>
    %30 = arith.subf %11, %29 : vector<8x32xf32>
    %31 = arith.mulf %30, %30 : vector<8x32xf32>
    %cst_15 = arith.constant dense<0.000000e+00> : vector<8xf32>
    %32 = vector.multi_reduction <add>, %31, %cst_15 [1] : vector<8x32xf32> to vector<8xf32>
    %33 = vector.shape_cast %32 : vector<8xf32> to vector<8x1xf32>
    %cst_16 = arith.constant 3.200000e+01 : f32
    %34 = vector.broadcast %cst_16 : f32 to vector<8x1xf32>
    %35 = arith.divf %33, %34 : vector<8x1xf32>
    %36 = vector.broadcast %28 : vector<8x1xf32> to vector<8x32xf32>
    %37 = arith.subf %11, %36 : vector<8x32xf32>
    %cst_17 = arith.constant 9.99999974E-6 : f32
    %38 = vector.broadcast %cst_17 : f32 to vector<8x1xf32>
    %39 = arith.addf %35, %38 : vector<8x1xf32>
    %40 = math.rsqrt %39 : vector<8x1xf32>
    %41 = vector.broadcast %40 : vector<8x1xf32> to vector<8x32xf32>
    %42 = arith.mulf %37, %41 : vector<8x32xf32>
    %43 = vector.broadcast %22 : vector<1x32xf32> to vector<8x32xf32>
    %44 = arith.mulf %42, %43 : vector<8x32xf32>
    %45 = vector.broadcast %24 : vector<1x32xf32> to vector<8x32xf32>
    %46 = arith.addf %44, %45 : vector<8x32xf32>
    %c0_18 = arith.constant 0 : index
    %c0_19 = arith.constant 0 : index
    %c0_20 = arith.constant 0 : index
    %47 = vector.load %arg15[%c0_18, %c0_19, %c0_20] : memref<2x1x32xf32, #tpu.memory_space<vmem>>, vector<1x1x32xf32>
    %48 = vector.shape_cast %47 : vector<1x1x32xf32> to vector<1x32xf32>
    %49 = vector.broadcast %48 : vector<1x32xf32> to vector<8x32xf32>
    %50 = arith.addf %11, %49 : vector<8x32xf32>
    %c0_21 = arith.constant 0 : index
    %c0_22 = arith.constant 0 : index
    %c0_23 = arith.constant 0 : index
    %c0_24 = arith.constant 0 : index
    %51 = vector.load %arg8[%c0_21, %c0_22, %c0_23, %c0_24] : memref<2x2x32x16xf32, #tpu.memory_space<vmem>>, vector<1x1x32x16xf32>
    %52 = vector.shape_cast %51 : vector<1x1x32x16xf32> to vector<32x16xf32>
    %cst_25 = arith.constant dense<0.000000e+00> : vector<8x16xf32>
    %53 = tpu.matmul %46, %52, %cst_25 {dimension_numbers = #tpu.dot_dimension_numbers<[1], [0], [0], [1], [0, 0, 1, 1], [], []>} : vector<8x32xf32>, vector<32x16xf32>, vector<8x16xf32> -> vector<8x16xf32>
    %c0_26 = arith.constant 0 : index
    %c0_27 = arith.constant 0 : index
    %c0_28 = arith.constant 0 : index
    %c0_29 = arith.constant 0 : index
    %54 = vector.load %arg11[%c0_26, %c0_27, %c0_28, %c0_29] : memref<2x2x1x16xf32, #tpu.memory_space<vmem>>, vector<1x1x1x16xf32>
    %55 = vector.shape_cast %54 : vector<1x1x1x16xf32> to vector<1x16xf32>
    %56 = vector.broadcast %55 : vector<1x16xf32> to vector<8x16xf32>
    %57 = arith.addf %53, %56 : vector<8x16xf32>
    %c0_30 = arith.constant 0 : index
    %c0_31 = arith.constant 0 : index
    %c0_32 = arith.constant 0 : index
    %c0_33 = arith.constant 0 : index
    %58 = vector.load %arg9[%c0_30, %c0_31, %c0_32, %c0_33] : memref<2x2x32x16xf32, #tpu.memory_space<vmem>>, vector<1x1x32x16xf32>
    %59 = vector.shape_cast %58 : vector<1x1x32x16xf32> to vector<32x16xf32>
    %cst_34 = arith.constant dense<0.000000e+00> : vector<8x16xf32>
    %60 = tpu.matmul %46, %59, %cst_34 {dimension_numbers = #tpu.dot_dimension_numbers<[1], [0], [0], [1], [0, 0, 1, 1], [], []>} : vector<8x32xf32>, vector<32x16xf32>, vector<8x16xf32> -> vector<8x16xf32>
    %c0_35 = arith.constant 0 : index
    %c0_36 = arith.constant 0 : index
    %c0_37 = arith.constant 0 : index
    %c0_38 = arith.constant 0 : index
    %61 = vector.load %arg12[%c0_35, %c0_36, %c0_37, %c0_38] : memref<2x2x1x16xf32, #tpu.memory_space<vmem>>, vector<1x1x1x16xf32>
    %62 = vector.shape_cast %61 : vector<1x1x1x16xf32> to vector<1x16xf32>
    %63 = vector.broadcast %62 : vector<1x16xf32> to vector<8x16xf32>
    %64 = arith.addf %60, %63 : vector<8x16xf32>
    %c0_39 = arith.constant 0 : index
    %c0_40 = arith.constant 0 : index
    %c0_41 = arith.constant 0 : index
    %c0_42 = arith.constant 0 : index
    %65 = vector.load %arg10[%c0_39, %c0_40, %c0_41, %c0_42] : memref<2x2x32x16xf32, #tpu.memory_space<vmem>>, vector<1x1x32x16xf32>
    %66 = vector.shape_cast %65 : vector<1x1x32x16xf32> to vector<32x16xf32>
    %cst_43 = arith.constant dense<0.000000e+00> : vector<8x16xf32>
    %67 = tpu.matmul %46, %66, %cst_43 {dimension_numbers = #tpu.dot_dimension_numbers<[1], [0], [0], [1], [0, 0, 1, 1], [], []>} : vector<8x32xf32>, vector<32x16xf32>, vector<8x16xf32> -> vector<8x16xf32>
    %c0_44 = arith.constant 0 : index
    %c0_45 = arith.constant 0 : index
    %c0_46 = arith.constant 0 : index
    %c0_47 = arith.constant 0 : index
    %68 = vector.load %arg13[%c0_44, %c0_45, %c0_46, %c0_47] : memref<2x2x1x16xf32, #tpu.memory_space<vmem>>, vector<1x1x1x16xf32>
    %69 = vector.shape_cast %68 : vector<1x1x1x16xf32> to vector<1x16xf32>
    %70 = vector.broadcast %69 : vector<1x16xf32> to vector<8x16xf32>
    %71 = arith.addf %67, %70 : vector<8x16xf32>
    %cst_48 = arith.constant dense<0.000000e+00> : vector<8x8xf32>
    %72 = tpu.matmul %57, %64, %cst_48 {dimension_numbers = #tpu.dot_dimension_numbers<[1], [1], [0], [0], [0, 0, 1, 0], [], []>} : vector<8x16xf32>, vector<8x16xf32>, vector<8x8xf32> -> vector<8x8xf32>
    %cst_49 = arith.constant 2.500000e-01 : f32
    %73 = vector.broadcast %cst_49 : f32 to vector<8x8xf32>
    %74 = arith.mulf %72, %73 : vector<8x8xf32>
    %75 = arith.addf %74, %20 : vector<8x8xf32>
    %cst_50 = arith.constant dense<0xFF800000> : vector<8xf32>
    %76 = vector.multi_reduction <maximumf>, %75, %cst_50 [1] : vector<8x8xf32> to vector<8xf32>
    %77 = vector.shape_cast %76 : vector<8xf32> to vector<8x1xf32>
    %78 = vector.broadcast %77 : vector<8x1xf32> to vector<8x8xf32>
    %79 = arith.subf %75, %78 : vector<8x8xf32>
    %80 = math.exp %79 : vector<8x8xf32>
    %cst_51 = arith.constant dense<0.000000e+00> : vector<8xf32>
    %81 = vector.multi_reduction <add>, %80, %cst_51 [1] : vector<8x8xf32> to vector<8xf32>
    %82 = vector.shape_cast %81 : vector<8xf32> to vector<8x1xf32>
    %83 = tpu.reciprocal %82 {approx = true} : vector<8x1xf32> -> vector<8x1xf32>
    %84 = vector.broadcast %83 : vector<8x1xf32> to vector<8x8xf32>
    %85 = arith.mulf %80, %84 : vector<8x8xf32>
    %cst_52 = arith.constant dense<0.000000e+00> : vector<8x16xf32>
    %86 = tpu.matmul %85, %71, %cst_52 {dimension_numbers = #tpu.dot_dimension_numbers<[1], [0], [0], [1], [0, 0, 1, 1], [], []>} : vector<8x8xf32>, vector<8x16xf32>, vector<8x16xf32> -> vector<8x16xf32>
    %c0_53 = arith.constant 0 : index
    %c0_54 = arith.constant 0 : index
    %c0_55 = arith.constant 0 : index
    %c0_56 = arith.constant 0 : index
    %87 = vector.load %arg14[%c0_53, %c0_54, %c0_55, %c0_56] : memref<2x2x16x32xf32, #tpu.memory_space<vmem>>, vector<1x1x16x32xf32>
    %88 = vector.shape_cast %87 : vector<1x1x16x32xf32> to vector<16x32xf32>
    %cst_57 = arith.constant dense<0.000000e+00> : vector<8x32xf32>
    %89 = tpu.matmul %86, %88, %cst_57 {dimension_numbers = #tpu.dot_dimension_numbers<[1], [0], [0], [1], [0, 0, 1, 1], [], []>} : vector<8x16xf32>, vector<16x32xf32>, vector<8x32xf32> -> vector<8x32xf32>
    %90 = arith.addf %50, %89 : vector<8x32xf32>
    %c0_58 = arith.constant 0 : index
    %c1 = arith.constant 1 : index
    %c0_59 = arith.constant 0 : index
    %c0_60 = arith.constant 0 : index
    %91 = vector.load %arg8[%c0_58, %c1, %c0_59, %c0_60] : memref<2x2x32x16xf32, #tpu.memory_space<vmem>>, vector<1x1x32x16xf32>
    %92 = vector.shape_cast %91 : vector<1x1x32x16xf32> to vector<32x16xf32>
    %cst_61 = arith.constant dense<0.000000e+00> : vector<8x16xf32>
    %93 = tpu.matmul %46, %92, %cst_61 {dimension_numbers = #tpu.dot_dimension_numbers<[1], [0], [0], [1], [0, 0, 1, 1], [], []>} : vector<8x32xf32>, vector<32x16xf32>, vector<8x16xf32> -> vector<8x16xf32>
    %c0_62 = arith.constant 0 : index
    %c1_63 = arith.constant 1 : index
    %c0_64 = arith.constant 0 : index
    %c0_65 = arith.constant 0 : index
    %94 = vector.load %arg11[%c0_62, %c1_63, %c0_64, %c0_65] : memref<2x2x1x16xf32, #tpu.memory_space<vmem>>, vector<1x1x1x16xf32>
    %95 = vector.shape_cast %94 : vector<1x1x1x16xf32> to vector<1x16xf32>
    %96 = vector.broadcast %95 : vector<1x16xf32> to vector<8x16xf32>
    %97 = arith.addf %93, %96 : vector<8x16xf32>
    %c0_66 = arith.constant 0 : index
    %c1_67 = arith.constant 1 : index
    %c0_68 = arith.constant 0 : index
    %c0_69 = arith.constant 0 : index
    %98 = vector.load %arg9[%c0_66, %c1_67, %c0_68, %c0_69] : memref<2x2x32x16xf32, #tpu.memory_space<vmem>>, vector<1x1x32x16xf32>
    %99 = vector.shape_cast %98 : vector<1x1x32x16xf32> to vector<32x16xf32>
    %cst_70 = arith.constant dense<0.000000e+00> : vector<8x16xf32>
    %100 = tpu.matmul %46, %99, %cst_70 {dimension_numbers = #tpu.dot_dimension_numbers<[1], [0], [0], [1], [0, 0, 1, 1], [], []>} : vector<8x32xf32>, vector<32x16xf32>, vector<8x16xf32> -> vector<8x16xf32>
    %c0_71 = arith.constant 0 : index
    %c1_72 = arith.constant 1 : index
    %c0_73 = arith.constant 0 : index
    %c0_74 = arith.constant 0 : index
    %101 = vector.load %arg12[%c0_71, %c1_72, %c0_73, %c0_74] : memref<2x2x1x16xf32, #tpu.memory_space<vmem>>, vector<1x1x1x16xf32>
    %102 = vector.shape_cast %101 : vector<1x1x1x16xf32> to vector<1x16xf32>
    %103 = vector.broadcast %102 : vector<1x16xf32> to vector<8x16xf32>
    %104 = arith.addf %100, %103 : vector<8x16xf32>
    %c0_75 = arith.constant 0 : index
    %c1_76 = arith.constant 1 : index
    %c0_77 = arith.constant 0 : index
    %c0_78 = arith.constant 0 : index
    %105 = vector.load %arg10[%c0_75, %c1_76, %c0_77, %c0_78] : memref<2x2x32x16xf32, #tpu.memory_space<vmem>>, vector<1x1x32x16xf32>
    %106 = vector.shape_cast %105 : vector<1x1x32x16xf32> to vector<32x16xf32>
    %cst_79 = arith.constant dense<0.000000e+00> : vector<8x16xf32>
    %107 = tpu.matmul %46, %106, %cst_79 {dimension_numbers = #tpu.dot_dimension_numbers<[1], [0], [0], [1], [0, 0, 1, 1], [], []>} : vector<8x32xf32>, vector<32x16xf32>, vector<8x16xf32> -> vector<8x16xf32>
    %c0_80 = arith.constant 0 : index
    %c1_81 = arith.constant 1 : index
    %c0_82 = arith.constant 0 : index
    %c0_83 = arith.constant 0 : index
    %108 = vector.load %arg13[%c0_80, %c1_81, %c0_82, %c0_83] : memref<2x2x1x16xf32, #tpu.memory_space<vmem>>, vector<1x1x1x16xf32>
    %109 = vector.shape_cast %108 : vector<1x1x1x16xf32> to vector<1x16xf32>
    %110 = vector.broadcast %109 : vector<1x16xf32> to vector<8x16xf32>
    %111 = arith.addf %107, %110 : vector<8x16xf32>
    %cst_84 = arith.constant dense<0.000000e+00> : vector<8x8xf32>
    %112 = tpu.matmul %97, %104, %cst_84 {dimension_numbers = #tpu.dot_dimension_numbers<[1], [1], [0], [0], [0, 0, 1, 0], [], []>} : vector<8x16xf32>, vector<8x16xf32>, vector<8x8xf32> -> vector<8x8xf32>
    %cst_85 = arith.constant 2.500000e-01 : f32
    %113 = vector.broadcast %cst_85 : f32 to vector<8x8xf32>
    %114 = arith.mulf %112, %113 : vector<8x8xf32>
    %115 = arith.addf %114, %20 : vector<8x8xf32>
    %cst_86 = arith.constant dense<0xFF800000> : vector<8xf32>
    %116 = vector.multi_reduction <maximumf>, %115, %cst_86 [1] : vector<8x8xf32> to vector<8xf32>
    %117 = vector.shape_cast %116 : vector<8xf32> to vector<8x1xf32>
    %118 = vector.broadcast %117 : vector<8x1xf32> to vector<8x8xf32>
    %119 = arith.subf %115, %118 : vector<8x8xf32>
    %120 = math.exp %119 : vector<8x8xf32>
    %cst_87 = arith.constant dense<0.000000e+00> : vector<8xf32>
    %121 = vector.multi_reduction <add>, %120, %cst_87 [1] : vector<8x8xf32> to vector<8xf32>
    %122 = vector.shape_cast %121 : vector<8xf32> to vector<8x1xf32>
    %123 = tpu.reciprocal %122 {approx = true} : vector<8x1xf32> -> vector<8x1xf32>
    %124 = vector.broadcast %123 : vector<8x1xf32> to vector<8x8xf32>
    %125 = arith.mulf %120, %124 : vector<8x8xf32>
    %cst_88 = arith.constant dense<0.000000e+00> : vector<8x16xf32>
    %126 = tpu.matmul %125, %111, %cst_88 {dimension_numbers = #tpu.dot_dimension_numbers<[1], [0], [0], [1], [0, 0, 1, 1], [], []>} : vector<8x8xf32>, vector<8x16xf32>, vector<8x16xf32> -> vector<8x16xf32>
    %c0_89 = arith.constant 0 : index
    %c1_90 = arith.constant 1 : index
    %c0_91 = arith.constant 0 : index
    %c0_92 = arith.constant 0 : index
    %127 = vector.load %arg14[%c0_89, %c1_90, %c0_91, %c0_92] : memref<2x2x16x32xf32, #tpu.memory_space<vmem>>, vector<1x1x16x32xf32>
    %128 = vector.shape_cast %127 : vector<1x1x16x32xf32> to vector<16x32xf32>
    %cst_93 = arith.constant dense<0.000000e+00> : vector<8x32xf32>
    %129 = tpu.matmul %126, %128, %cst_93 {dimension_numbers = #tpu.dot_dimension_numbers<[1], [0], [0], [1], [0, 0, 1, 1], [], []>} : vector<8x16xf32>, vector<16x32xf32>, vector<8x32xf32> -> vector<8x32xf32>
    %130 = arith.addf %90, %129 : vector<8x32xf32>
    %c0_94 = arith.constant 0 : index
    %c0_95 = arith.constant 0 : index
    %c0_96 = arith.constant 0 : index
    %131 = vector.load %arg16[%c0_94, %c0_95, %c0_96] : memref<2x1x32xf32, #tpu.memory_space<vmem>>, vector<1x1x32xf32>
    %132 = vector.shape_cast %131 : vector<1x1x32xf32> to vector<1x32xf32>
    %c0_97 = arith.constant 0 : index
    %c0_98 = arith.constant 0 : index
    %c0_99 = arith.constant 0 : index
    %133 = vector.load %arg17[%c0_97, %c0_98, %c0_99] : memref<2x1x32xf32, #tpu.memory_space<vmem>>, vector<1x1x32xf32>
    %134 = vector.shape_cast %133 : vector<1x1x32xf32> to vector<1x32xf32>
    %cst_100 = arith.constant dense<0.000000e+00> : vector<8xf32>
    %135 = vector.multi_reduction <add>, %130, %cst_100 [1] : vector<8x32xf32> to vector<8xf32>
    %136 = vector.shape_cast %135 : vector<8xf32> to vector<8x1xf32>
    %cst_101 = arith.constant 3.200000e+01 : f32
    %137 = vector.broadcast %cst_101 : f32 to vector<8x1xf32>
    %138 = arith.divf %136, %137 : vector<8x1xf32>
    %139 = vector.broadcast %138 : vector<8x1xf32> to vector<8x32xf32>
    %140 = arith.subf %130, %139 : vector<8x32xf32>
    %141 = arith.mulf %140, %140 : vector<8x32xf32>
    %cst_102 = arith.constant dense<0.000000e+00> : vector<8xf32>
    %142 = vector.multi_reduction <add>, %141, %cst_102 [1] : vector<8x32xf32> to vector<8xf32>
    %143 = vector.shape_cast %142 : vector<8xf32> to vector<8x1xf32>
    %cst_103 = arith.constant 3.200000e+01 : f32
    %144 = vector.broadcast %cst_103 : f32 to vector<8x1xf32>
    %145 = arith.divf %143, %144 : vector<8x1xf32>
    %146 = vector.broadcast %138 : vector<8x1xf32> to vector<8x32xf32>
    %147 = arith.subf %130, %146 : vector<8x32xf32>
    %cst_104 = arith.constant 9.99999974E-6 : f32
    %148 = vector.broadcast %cst_104 : f32 to vector<8x1xf32>
    %149 = arith.addf %145, %148 : vector<8x1xf32>
    %150 = math.rsqrt %149 : vector<8x1xf32>
    %151 = vector.broadcast %150 : vector<8x1xf32> to vector<8x32xf32>
    %152 = arith.mulf %147, %151 : vector<8x32xf32>
    %153 = vector.broadcast %132 : vector<1x32xf32> to vector<8x32xf32>
    %154 = arith.mulf %152, %153 : vector<8x32xf32>
    %155 = vector.broadcast %134 : vector<1x32xf32> to vector<8x32xf32>
    %156 = arith.addf %154, %155 : vector<8x32xf32>
    %c0_105 = arith.constant 0 : index
    %c0_106 = arith.constant 0 : index
    %c0_107 = arith.constant 0 : index
    %157 = vector.load %arg18[%c0_105, %c0_106, %c0_107] : memref<2x32x128xf32, #tpu.memory_space<vmem>>, vector<1x32x128xf32>
    %158 = vector.shape_cast %157 : vector<1x32x128xf32> to vector<32x128xf32>
    %cst_108 = arith.constant dense<0.000000e+00> : vector<8x128xf32>
    %159 = tpu.matmul %156, %158, %cst_108 {dimension_numbers = #tpu.dot_dimension_numbers<[1], [0], [0], [1], [0, 0, 1, 1], [], []>} : vector<8x32xf32>, vector<32x128xf32>, vector<8x128xf32> -> vector<8x128xf32>
    %c0_109 = arith.constant 0 : index
    %c0_110 = arith.constant 0 : index
    %c0_111 = arith.constant 0 : index
    %160 = vector.load %arg19[%c0_109, %c0_110, %c0_111] : memref<2x1x128xf32, #tpu.memory_space<vmem>>, vector<1x1x128xf32>
    %161 = vector.shape_cast %160 : vector<1x1x128xf32> to vector<1x128xf32>
    %162 = vector.broadcast %161 : vector<1x128xf32> to vector<8x128xf32>
    %163 = arith.addf %159, %162 : vector<8x128xf32>
    %164 = arith.mulf %163, %163 : vector<8x128xf32>
    %165 = arith.mulf %163, %164 : vector<8x128xf32>
    %cst_112 = arith.constant 4.471500e-02 : f32
    %166 = vector.broadcast %cst_112 : f32 to vector<8x128xf32>
    %167 = arith.mulf %166, %165 : vector<8x128xf32>
    %168 = arith.addf %163, %167 : vector<8x128xf32>
    %cst_113 = arith.constant 0.797884583 : f32
    %169 = vector.broadcast %cst_113 : f32 to vector<8x128xf32>
    %170 = arith.mulf %169, %168 : vector<8x128xf32>
    %171 = math.tanh %170 : vector<8x128xf32>
    %cst_114 = arith.constant 1.000000e+00 : f32
    %172 = vector.broadcast %cst_114 : f32 to vector<8x128xf32>
    %173 = arith.addf %172, %171 : vector<8x128xf32>
    %cst_115 = arith.constant 5.000000e-01 : f32
    %174 = vector.broadcast %cst_115 : f32 to vector<8x128xf32>
    %175 = arith.mulf %174, %173 : vector<8x128xf32>
    %176 = arith.mulf %163, %175 : vector<8x128xf32>
    %c0_116 = arith.constant 0 : index
    %c0_117 = arith.constant 0 : index
    %c0_118 = arith.constant 0 : index
    %177 = vector.load %arg20[%c0_116, %c0_117, %c0_118] : memref<2x128x32xf32, #tpu.memory_space<vmem>>, vector<1x128x32xf32>
    %178 = vector.shape_cast %177 : vector<1x128x32xf32> to vector<128x32xf32>
    %cst_119 = arith.constant dense<0.000000e+00> : vector<8x32xf32>
    %179 = tpu.matmul %176, %178, %cst_119 {dimension_numbers = #tpu.dot_dimension_numbers<[1], [0], [0], [1], [0, 0, 1, 1], [], []>} : vector<8x128xf32>, vector<128x32xf32>, vector<8x32xf32> -> vector<8x32xf32>
    %180 = arith.addf %130, %179 : vector<8x32xf32>
    %c0_120 = arith.constant 0 : index
    %c0_121 = arith.constant 0 : index
    %c0_122 = arith.constant 0 : index
    %181 = vector.load %arg21[%c0_120, %c0_121, %c0_122] : memref<2x1x32xf32, #tpu.memory_space<vmem>>, vector<1x1x32xf32>
    %182 = vector.shape_cast %181 : vector<1x1x32xf32> to vector<1x32xf32>
    %183 = vector.broadcast %182 : vector<1x32xf32> to vector<8x32xf32>
    %184 = arith.addf %180, %183 : vector<8x32xf32>
    %c1_123 = arith.constant 1 : index
    %c0_124 = arith.constant 0 : index
    %c0_125 = arith.constant 0 : index
    %185 = vector.load %arg6[%c1_123, %c0_124, %c0_125] : memref<2x1x32xf32, #tpu.memory_space<vmem>>, vector<1x1x32xf32>
    %186 = vector.shape_cast %185 : vector<1x1x32xf32> to vector<1x32xf32>
    %c1_126 = arith.constant 1 : index
    %c0_127 = arith.constant 0 : index
    %c0_128 = arith.constant 0 : index
    %187 = vector.load %arg7[%c1_126, %c0_127, %c0_128] : memref<2x1x32xf32, #tpu.memory_space<vmem>>, vector<1x1x32xf32>
    %188 = vector.shape_cast %187 : vector<1x1x32xf32> to vector<1x32xf32>
    %cst_129 = arith.constant dense<0.000000e+00> : vector<8xf32>
    %189 = vector.multi_reduction <add>, %184, %cst_129 [1] : vector<8x32xf32> to vector<8xf32>
    %190 = vector.shape_cast %189 : vector<8xf32> to vector<8x1xf32>
    %cst_130 = arith.constant 3.200000e+01 : f32
    %191 = vector.broadcast %cst_130 : f32 to vector<8x1xf32>
    %192 = arith.divf %190, %191 : vector<8x1xf32>
    %193 = vector.broadcast %192 : vector<8x1xf32> to vector<8x32xf32>
    %194 = arith.subf %184, %193 : vector<8x32xf32>
    %195 = arith.mulf %194, %194 : vector<8x32xf32>
    %cst_131 = arith.constant dense<0.000000e+00> : vector<8xf32>
    %196 = vector.multi_reduction <add>, %195, %cst_131 [1] : vector<8x32xf32> to vector<8xf32>
    %197 = vector.shape_cast %196 : vector<8xf32> to vector<8x1xf32>
    %cst_132 = arith.constant 3.200000e+01 : f32
    %198 = vector.broadcast %cst_132 : f32 to vector<8x1xf32>
    %199 = arith.divf %197, %198 : vector<8x1xf32>
    %200 = vector.broadcast %192 : vector<8x1xf32> to vector<8x32xf32>
    %201 = arith.subf %184, %200 : vector<8x32xf32>
    %cst_133 = arith.constant 9.99999974E-6 : f32
    %202 = vector.broadcast %cst_133 : f32 to vector<8x1xf32>
    %203 = arith.addf %199, %202 : vector<8x1xf32>
    %204 = math.rsqrt %203 : vector<8x1xf32>
    %205 = vector.broadcast %204 : vector<8x1xf32> to vector<8x32xf32>
    %206 = arith.mulf %201, %205 : vector<8x32xf32>
    %207 = vector.broadcast %186 : vector<1x32xf32> to vector<8x32xf32>
    %208 = arith.mulf %206, %207 : vector<8x32xf32>
    %209 = vector.broadcast %188 : vector<1x32xf32> to vector<8x32xf32>
    %210 = arith.addf %208, %209 : vector<8x32xf32>
    %c1_134 = arith.constant 1 : index
    %c0_135 = arith.constant 0 : index
    %c0_136 = arith.constant 0 : index
    %211 = vector.load %arg15[%c1_134, %c0_135, %c0_136] : memref<2x1x32xf32, #tpu.memory_space<vmem>>, vector<1x1x32xf32>
    %212 = vector.shape_cast %211 : vector<1x1x32xf32> to vector<1x32xf32>
    %213 = vector.broadcast %212 : vector<1x32xf32> to vector<8x32xf32>
    %214 = arith.addf %184, %213 : vector<8x32xf32>
    %c1_137 = arith.constant 1 : index
    %c0_138 = arith.constant 0 : index
    %c0_139 = arith.constant 0 : index
    %c0_140 = arith.constant 0 : index
    %215 = vector.load %arg8[%c1_137, %c0_138, %c0_139, %c0_140] : memref<2x2x32x16xf32, #tpu.memory_space<vmem>>, vector<1x1x32x16xf32>
    %216 = vector.shape_cast %215 : vector<1x1x32x16xf32> to vector<32x16xf32>
    %cst_141 = arith.constant dense<0.000000e+00> : vector<8x16xf32>
    %217 = tpu.matmul %210, %216, %cst_141 {dimension_numbers = #tpu.dot_dimension_numbers<[1], [0], [0], [1], [0, 0, 1, 1], [], []>} : vector<8x32xf32>, vector<32x16xf32>, vector<8x16xf32> -> vector<8x16xf32>
    %c1_142 = arith.constant 1 : index
    %c0_143 = arith.constant 0 : index
    %c0_144 = arith.constant 0 : index
    %c0_145 = arith.constant 0 : index
    %218 = vector.load %arg11[%c1_142, %c0_143, %c0_144, %c0_145] : memref<2x2x1x16xf32, #tpu.memory_space<vmem>>, vector<1x1x1x16xf32>
    %219 = vector.shape_cast %218 : vector<1x1x1x16xf32> to vector<1x16xf32>
    %220 = vector.broadcast %219 : vector<1x16xf32> to vector<8x16xf32>
    %221 = arith.addf %217, %220 : vector<8x16xf32>
    %c1_146 = arith.constant 1 : index
    %c0_147 = arith.constant 0 : index
    %c0_148 = arith.constant 0 : index
    %c0_149 = arith.constant 0 : index
    %222 = vector.load %arg9[%c1_146, %c0_147, %c0_148, %c0_149] : memref<2x2x32x16xf32, #tpu.memory_space<vmem>>, vector<1x1x32x16xf32>
    %223 = vector.shape_cast %222 : vector<1x1x32x16xf32> to vector<32x16xf32>
    %cst_150 = arith.constant dense<0.000000e+00> : vector<8x16xf32>
    %224 = tpu.matmul %210, %223, %cst_150 {dimension_numbers = #tpu.dot_dimension_numbers<[1], [0], [0], [1], [0, 0, 1, 1], [], []>} : vector<8x32xf32>, vector<32x16xf32>, vector<8x16xf32> -> vector<8x16xf32>
    %c1_151 = arith.constant 1 : index
    %c0_152 = arith.constant 0 : index
    %c0_153 = arith.constant 0 : index
    %c0_154 = arith.constant 0 : index
    %225 = vector.load %arg12[%c1_151, %c0_152, %c0_153, %c0_154] : memref<2x2x1x16xf32, #tpu.memory_space<vmem>>, vector<1x1x1x16xf32>
    %226 = vector.shape_cast %225 : vector<1x1x1x16xf32> to vector<1x16xf32>
    %227 = vector.broadcast %226 : vector<1x16xf32> to vector<8x16xf32>
    %228 = arith.addf %224, %227 : vector<8x16xf32>
    %c1_155 = arith.constant 1 : index
    %c0_156 = arith.constant 0 : index
    %c0_157 = arith.constant 0 : index
    %c0_158 = arith.constant 0 : index
    %229 = vector.load %arg10[%c1_155, %c0_156, %c0_157, %c0_158] : memref<2x2x32x16xf32, #tpu.memory_space<vmem>>, vector<1x1x32x16xf32>
    %230 = vector.shape_cast %229 : vector<1x1x32x16xf32> to vector<32x16xf32>
    %cst_159 = arith.constant dense<0.000000e+00> : vector<8x16xf32>
    %231 = tpu.matmul %210, %230, %cst_159 {dimension_numbers = #tpu.dot_dimension_numbers<[1], [0], [0], [1], [0, 0, 1, 1], [], []>} : vector<8x32xf32>, vector<32x16xf32>, vector<8x16xf32> -> vector<8x16xf32>
    %c1_160 = arith.constant 1 : index
    %c0_161 = arith.constant 0 : index
    %c0_162 = arith.constant 0 : index
    %c0_163 = arith.constant 0 : index
    %232 = vector.load %arg13[%c1_160, %c0_161, %c0_162, %c0_163] : memref<2x2x1x16xf32, #tpu.memory_space<vmem>>, vector<1x1x1x16xf32>
    %233 = vector.shape_cast %232 : vector<1x1x1x16xf32> to vector<1x16xf32>
    %234 = vector.broadcast %233 : vector<1x16xf32> to vector<8x16xf32>
    %235 = arith.addf %231, %234 : vector<8x16xf32>
    %cst_164 = arith.constant dense<0.000000e+00> : vector<8x8xf32>
    %236 = tpu.matmul %221, %228, %cst_164 {dimension_numbers = #tpu.dot_dimension_numbers<[1], [1], [0], [0], [0, 0, 1, 0], [], []>} : vector<8x16xf32>, vector<8x16xf32>, vector<8x8xf32> -> vector<8x8xf32>
    %cst_165 = arith.constant 2.500000e-01 : f32
    %237 = vector.broadcast %cst_165 : f32 to vector<8x8xf32>
    %238 = arith.mulf %236, %237 : vector<8x8xf32>
    %239 = arith.addf %238, %20 : vector<8x8xf32>
    %cst_166 = arith.constant dense<0xFF800000> : vector<8xf32>
    %240 = vector.multi_reduction <maximumf>, %239, %cst_166 [1] : vector<8x8xf32> to vector<8xf32>
    %241 = vector.shape_cast %240 : vector<8xf32> to vector<8x1xf32>
    %242 = vector.broadcast %241 : vector<8x1xf32> to vector<8x8xf32>
    %243 = arith.subf %239, %242 : vector<8x8xf32>
    %244 = math.exp %243 : vector<8x8xf32>
    %cst_167 = arith.constant dense<0.000000e+00> : vector<8xf32>
    %245 = vector.multi_reduction <add>, %244, %cst_167 [1] : vector<8x8xf32> to vector<8xf32>
    %246 = vector.shape_cast %245 : vector<8xf32> to vector<8x1xf32>
    %247 = tpu.reciprocal %246 {approx = true} : vector<8x1xf32> -> vector<8x1xf32>
    %248 = vector.broadcast %247 : vector<8x1xf32> to vector<8x8xf32>
    %249 = arith.mulf %244, %248 : vector<8x8xf32>
    %cst_168 = arith.constant dense<0.000000e+00> : vector<8x16xf32>
    %250 = tpu.matmul %249, %235, %cst_168 {dimension_numbers = #tpu.dot_dimension_numbers<[1], [0], [0], [1], [0, 0, 1, 1], [], []>} : vector<8x8xf32>, vector<8x16xf32>, vector<8x16xf32> -> vector<8x16xf32>
    %c1_169 = arith.constant 1 : index
    %c0_170 = arith.constant 0 : index
    %c0_171 = arith.constant 0 : index
    %c0_172 = arith.constant 0 : index
    %251 = vector.load %arg14[%c1_169, %c0_170, %c0_171, %c0_172] : memref<2x2x16x32xf32, #tpu.memory_space<vmem>>, vector<1x1x16x32xf32>
    %252 = vector.shape_cast %251 : vector<1x1x16x32xf32> to vector<16x32xf32>
    %cst_173 = arith.constant dense<0.000000e+00> : vector<8x32xf32>
    %253 = tpu.matmul %250, %252, %cst_173 {dimension_numbers = #tpu.dot_dimension_numbers<[1], [0], [0], [1], [0, 0, 1, 1], [], []>} : vector<8x16xf32>, vector<16x32xf32>, vector<8x32xf32> -> vector<8x32xf32>
    %254 = arith.addf %214, %253 : vector<8x32xf32>
    %c1_174 = arith.constant 1 : index
    %c1_175 = arith.constant 1 : index
    %c0_176 = arith.constant 0 : index
    %c0_177 = arith.constant 0 : index
    %255 = vector.load %arg8[%c1_174, %c1_175, %c0_176, %c0_177] : memref<2x2x32x16xf32, #tpu.memory_space<vmem>>, vector<1x1x32x16xf32>
    %256 = vector.shape_cast %255 : vector<1x1x32x16xf32> to vector<32x16xf32>
    %cst_178 = arith.constant dense<0.000000e+00> : vector<8x16xf32>
    %257 = tpu.matmul %210, %256, %cst_178 {dimension_numbers = #tpu.dot_dimension_numbers<[1], [0], [0], [1], [0, 0, 1, 1], [], []>} : vector<8x32xf32>, vector<32x16xf32>, vector<8x16xf32> -> vector<8x16xf32>
    %c1_179 = arith.constant 1 : index
    %c1_180 = arith.constant 1 : index
    %c0_181 = arith.constant 0 : index
    %c0_182 = arith.constant 0 : index
    %258 = vector.load %arg11[%c1_179, %c1_180, %c0_181, %c0_182] : memref<2x2x1x16xf32, #tpu.memory_space<vmem>>, vector<1x1x1x16xf32>
    %259 = vector.shape_cast %258 : vector<1x1x1x16xf32> to vector<1x16xf32>
    %260 = vector.broadcast %259 : vector<1x16xf32> to vector<8x16xf32>
    %261 = arith.addf %257, %260 : vector<8x16xf32>
    %c1_183 = arith.constant 1 : index
    %c1_184 = arith.constant 1 : index
    %c0_185 = arith.constant 0 : index
    %c0_186 = arith.constant 0 : index
    %262 = vector.load %arg9[%c1_183, %c1_184, %c0_185, %c0_186] : memref<2x2x32x16xf32, #tpu.memory_space<vmem>>, vector<1x1x32x16xf32>
    %263 = vector.shape_cast %262 : vector<1x1x32x16xf32> to vector<32x16xf32>
    %cst_187 = arith.constant dense<0.000000e+00> : vector<8x16xf32>
    %264 = tpu.matmul %210, %263, %cst_187 {dimension_numbers = #tpu.dot_dimension_numbers<[1], [0], [0], [1], [0, 0, 1, 1], [], []>} : vector<8x32xf32>, vector<32x16xf32>, vector<8x16xf32> -> vector<8x16xf32>
    %c1_188 = arith.constant 1 : index
    %c1_189 = arith.constant 1 : index
    %c0_190 = arith.constant 0 : index
    %c0_191 = arith.constant 0 : index
    %265 = vector.load %arg12[%c1_188, %c1_189, %c0_190, %c0_191] : memref<2x2x1x16xf32, #tpu.memory_space<vmem>>, vector<1x1x1x16xf32>
    %266 = vector.shape_cast %265 : vector<1x1x1x16xf32> to vector<1x16xf32>
    %267 = vector.broadcast %266 : vector<1x16xf32> to vector<8x16xf32>
    %268 = arith.addf %264, %267 : vector<8x16xf32>
    %c1_192 = arith.constant 1 : index
    %c1_193 = arith.constant 1 : index
    %c0_194 = arith.constant 0 : index
    %c0_195 = arith.constant 0 : index
    %269 = vector.load %arg10[%c1_192, %c1_193, %c0_194, %c0_195] : memref<2x2x32x16xf32, #tpu.memory_space<vmem>>, vector<1x1x32x16xf32>
    %270 = vector.shape_cast %269 : vector<1x1x32x16xf32> to vector<32x16xf32>
    %cst_196 = arith.constant dense<0.000000e+00> : vector<8x16xf32>
    %271 = tpu.matmul %210, %270, %cst_196 {dimension_numbers = #tpu.dot_dimension_numbers<[1], [0], [0], [1], [0, 0, 1, 1], [], []>} : vector<8x32xf32>, vector<32x16xf32>, vector<8x16xf32> -> vector<8x16xf32>
    %c1_197 = arith.constant 1 : index
    %c1_198 = arith.constant 1 : index
    %c0_199 = arith.constant 0 : index
    %c0_200 = arith.constant 0 : index
    %272 = vector.load %arg13[%c1_197, %c1_198, %c0_199, %c0_200] : memref<2x2x1x16xf32, #tpu.memory_space<vmem>>, vector<1x1x1x16xf32>
    %273 = vector.shape_cast %272 : vector<1x1x1x16xf32> to vector<1x16xf32>
    %274 = vector.broadcast %273 : vector<1x16xf32> to vector<8x16xf32>
    %275 = arith.addf %271, %274 : vector<8x16xf32>
    %cst_201 = arith.constant dense<0.000000e+00> : vector<8x8xf32>
    %276 = tpu.matmul %261, %268, %cst_201 {dimension_numbers = #tpu.dot_dimension_numbers<[1], [1], [0], [0], [0, 0, 1, 0], [], []>} : vector<8x16xf32>, vector<8x16xf32>, vector<8x8xf32> -> vector<8x8xf32>
    %cst_202 = arith.constant 2.500000e-01 : f32
    %277 = vector.broadcast %cst_202 : f32 to vector<8x8xf32>
    %278 = arith.mulf %276, %277 : vector<8x8xf32>
    %279 = arith.addf %278, %20 : vector<8x8xf32>
    %cst_203 = arith.constant dense<0xFF800000> : vector<8xf32>
    %280 = vector.multi_reduction <maximumf>, %279, %cst_203 [1] : vector<8x8xf32> to vector<8xf32>
    %281 = vector.shape_cast %280 : vector<8xf32> to vector<8x1xf32>
    %282 = vector.broadcast %281 : vector<8x1xf32> to vector<8x8xf32>
    %283 = arith.subf %279, %282 : vector<8x8xf32>
    %284 = math.exp %283 : vector<8x8xf32>
    %cst_204 = arith.constant dense<0.000000e+00> : vector<8xf32>
    %285 = vector.multi_reduction <add>, %284, %cst_204 [1] : vector<8x8xf32> to vector<8xf32>
    %286 = vector.shape_cast %285 : vector<8xf32> to vector<8x1xf32>
    %287 = tpu.reciprocal %286 {approx = true} : vector<8x1xf32> -> vector<8x1xf32>
    %288 = vector.broadcast %287 : vector<8x1xf32> to vector<8x8xf32>
    %289 = arith.mulf %284, %288 : vector<8x8xf32>
    %cst_205 = arith.constant dense<0.000000e+00> : vector<8x16xf32>
    %290 = tpu.matmul %289, %275, %cst_205 {dimension_numbers = #tpu.dot_dimension_numbers<[1], [0], [0], [1], [0, 0, 1, 1], [], []>} : vector<8x8xf32>, vector<8x16xf32>, vector<8x16xf32> -> vector<8x16xf32>
    %c1_206 = arith.constant 1 : index
    %c1_207 = arith.constant 1 : index
    %c0_208 = arith.constant 0 : index
    %c0_209 = arith.constant 0 : index
    %291 = vector.load %arg14[%c1_206, %c1_207, %c0_208, %c0_209] : memref<2x2x16x32xf32, #tpu.memory_space<vmem>>, vector<1x1x16x32xf32>
    %292 = vector.shape_cast %291 : vector<1x1x16x32xf32> to vector<16x32xf32>
    %cst_210 = arith.constant dense<0.000000e+00> : vector<8x32xf32>
    %293 = tpu.matmul %290, %292, %cst_210 {dimension_numbers = #tpu.dot_dimension_numbers<[1], [0], [0], [1], [0, 0, 1, 1], [], []>} : vector<8x16xf32>, vector<16x32xf32>, vector<8x32xf32> -> vector<8x32xf32>
    %294 = arith.addf %254, %293 : vector<8x32xf32>
    %c1_211 = arith.constant 1 : index
    %c0_212 = arith.constant 0 : index
    %c0_213 = arith.constant 0 : index
    %295 = vector.load %arg16[%c1_211, %c0_212, %c0_213] : memref<2x1x32xf32, #tpu.memory_space<vmem>>, vector<1x1x32xf32>
    %296 = vector.shape_cast %295 : vector<1x1x32xf32> to vector<1x32xf32>
    %c1_214 = arith.constant 1 : index
    %c0_215 = arith.constant 0 : index
    %c0_216 = arith.constant 0 : index
    %297 = vector.load %arg17[%c1_214, %c0_215, %c0_216] : memref<2x1x32xf32, #tpu.memory_space<vmem>>, vector<1x1x32xf32>
    %298 = vector.shape_cast %297 : vector<1x1x32xf32> to vector<1x32xf32>
    %cst_217 = arith.constant dense<0.000000e+00> : vector<8xf32>
    %299 = vector.multi_reduction <add>, %294, %cst_217 [1] : vector<8x32xf32> to vector<8xf32>
    %300 = vector.shape_cast %299 : vector<8xf32> to vector<8x1xf32>
    %cst_218 = arith.constant 3.200000e+01 : f32
    %301 = vector.broadcast %cst_218 : f32 to vector<8x1xf32>
    %302 = arith.divf %300, %301 : vector<8x1xf32>
    %303 = vector.broadcast %302 : vector<8x1xf32> to vector<8x32xf32>
    %304 = arith.subf %294, %303 : vector<8x32xf32>
    %305 = arith.mulf %304, %304 : vector<8x32xf32>
    %cst_219 = arith.constant dense<0.000000e+00> : vector<8xf32>
    %306 = vector.multi_reduction <add>, %305, %cst_219 [1] : vector<8x32xf32> to vector<8xf32>
    %307 = vector.shape_cast %306 : vector<8xf32> to vector<8x1xf32>
    %cst_220 = arith.constant 3.200000e+01 : f32
    %308 = vector.broadcast %cst_220 : f32 to vector<8x1xf32>
    %309 = arith.divf %307, %308 : vector<8x1xf32>
    %310 = vector.broadcast %302 : vector<8x1xf32> to vector<8x32xf32>
    %311 = arith.subf %294, %310 : vector<8x32xf32>
    %cst_221 = arith.constant 9.99999974E-6 : f32
    %312 = vector.broadcast %cst_221 : f32 to vector<8x1xf32>
    %313 = arith.addf %309, %312 : vector<8x1xf32>
    %314 = math.rsqrt %313 : vector<8x1xf32>
    %315 = vector.broadcast %314 : vector<8x1xf32> to vector<8x32xf32>
    %316 = arith.mulf %311, %315 : vector<8x32xf32>
    %317 = vector.broadcast %296 : vector<1x32xf32> to vector<8x32xf32>
    %318 = arith.mulf %316, %317 : vector<8x32xf32>
    %319 = vector.broadcast %298 : vector<1x32xf32> to vector<8x32xf32>
    %320 = arith.addf %318, %319 : vector<8x32xf32>
    %c1_222 = arith.constant 1 : index
    %c0_223 = arith.constant 0 : index
    %c0_224 = arith.constant 0 : index
    %321 = vector.load %arg18[%c1_222, %c0_223, %c0_224] : memref<2x32x128xf32, #tpu.memory_space<vmem>>, vector<1x32x128xf32>
    %322 = vector.shape_cast %321 : vector<1x32x128xf32> to vector<32x128xf32>
    %cst_225 = arith.constant dense<0.000000e+00> : vector<8x128xf32>
    %323 = tpu.matmul %320, %322, %cst_225 {dimension_numbers = #tpu.dot_dimension_numbers<[1], [0], [0], [1], [0, 0, 1, 1], [], []>} : vector<8x32xf32>, vector<32x128xf32>, vector<8x128xf32> -> vector<8x128xf32>
    %c1_226 = arith.constant 1 : index
    %c0_227 = arith.constant 0 : index
    %c0_228 = arith.constant 0 : index
    %324 = vector.load %arg19[%c1_226, %c0_227, %c0_228] : memref<2x1x128xf32, #tpu.memory_space<vmem>>, vector<1x1x128xf32>
    %325 = vector.shape_cast %324 : vector<1x1x128xf32> to vector<1x128xf32>
    %326 = vector.broadcast %325 : vector<1x128xf32> to vector<8x128xf32>
    %327 = arith.addf %323, %326 : vector<8x128xf32>
    %328 = arith.mulf %327, %327 : vector<8x128xf32>
    %329 = arith.mulf %327, %328 : vector<8x128xf32>
    %cst_229 = arith.constant 4.471500e-02 : f32
    %330 = vector.broadcast %cst_229 : f32 to vector<8x128xf32>
    %331 = arith.mulf %330, %329 : vector<8x128xf32>
    %332 = arith.addf %327, %331 : vector<8x128xf32>
    %cst_230 = arith.constant 0.797884583 : f32
    %333 = vector.broadcast %cst_230 : f32 to vector<8x128xf32>
    %334 = arith.mulf %333, %332 : vector<8x128xf32>
    %335 = math.tanh %334 : vector<8x128xf32>
    %cst_231 = arith.constant 1.000000e+00 : f32
    %336 = vector.broadcast %cst_231 : f32 to vector<8x128xf32>
    %337 = arith.addf %336, %335 : vector<8x128xf32>
    %cst_232 = arith.constant 5.000000e-01 : f32
    %338 = vector.broadcast %cst_232 : f32 to vector<8x128xf32>
    %339 = arith.mulf %338, %337 : vector<8x128xf32>
    %340 = arith.mulf %327, %339 : vector<8x128xf32>
    %c1_233 = arith.constant 1 : index
    %c0_234 = arith.constant 0 : index
    %c0_235 = arith.constant 0 : index
    %341 = vector.load %arg20[%c1_233, %c0_234, %c0_235] : memref<2x128x32xf32, #tpu.memory_space<vmem>>, vector<1x128x32xf32>
    %342 = vector.shape_cast %341 : vector<1x128x32xf32> to vector<128x32xf32>
    %cst_236 = arith.constant dense<0.000000e+00> : vector<8x32xf32>
    %343 = tpu.matmul %340, %342, %cst_236 {dimension_numbers = #tpu.dot_dimension_numbers<[1], [0], [0], [1], [0, 0, 1, 1], [], []>} : vector<8x128xf32>, vector<128x32xf32>, vector<8x32xf32> -> vector<8x32xf32>
    %344 = arith.addf %294, %343 : vector<8x32xf32>
    %c1_237 = arith.constant 1 : index
    %c0_238 = arith.constant 0 : index
    %c0_239 = arith.constant 0 : index
    %345 = vector.load %arg21[%c1_237, %c0_238, %c0_239] : memref<2x1x32xf32, #tpu.memory_space<vmem>>, vector<1x1x32xf32>
    %346 = vector.shape_cast %345 : vector<1x1x32xf32> to vector<1x32xf32>
    %347 = vector.broadcast %346 : vector<1x32xf32> to vector<8x32xf32>
    %348 = arith.addf %344, %347 : vector<8x32xf32>
    %c0_240 = arith.constant 0 : index
    %c0_241 = arith.constant 0 : index
    %349 = vector.load %arg22[%c0_240, %c0_241] : memref<1x32xf32, #tpu.memory_space<vmem>>, vector<1x32xf32>
    %c0_242 = arith.constant 0 : index
    %c0_243 = arith.constant 0 : index
    %350 = vector.load %arg23[%c0_242, %c0_243] : memref<1x32xf32, #tpu.memory_space<vmem>>, vector<1x32xf32>
    %cst_244 = arith.constant dense<0.000000e+00> : vector<8xf32>
    %351 = vector.multi_reduction <add>, %348, %cst_244 [1] : vector<8x32xf32> to vector<8xf32>
    %352 = vector.shape_cast %351 : vector<8xf32> to vector<8x1xf32>
    %cst_245 = arith.constant 3.200000e+01 : f32
    %353 = vector.broadcast %cst_245 : f32 to vector<8x1xf32>
    %354 = arith.divf %352, %353 : vector<8x1xf32>
    %355 = vector.broadcast %354 : vector<8x1xf32> to vector<8x32xf32>
    %356 = arith.subf %348, %355 : vector<8x32xf32>
    %357 = arith.mulf %356, %356 : vector<8x32xf32>
    %cst_246 = arith.constant dense<0.000000e+00> : vector<8xf32>
    %358 = vector.multi_reduction <add>, %357, %cst_246 [1] : vector<8x32xf32> to vector<8xf32>
    %359 = vector.shape_cast %358 : vector<8xf32> to vector<8x1xf32>
    %cst_247 = arith.constant 3.200000e+01 : f32
    %360 = vector.broadcast %cst_247 : f32 to vector<8x1xf32>
    %361 = arith.divf %359, %360 : vector<8x1xf32>
    %362 = vector.broadcast %354 : vector<8x1xf32> to vector<8x32xf32>
    %363 = arith.subf %348, %362 : vector<8x32xf32>
    %cst_248 = arith.constant 9.99999974E-6 : f32
    %364 = vector.broadcast %cst_248 : f32 to vector<8x1xf32>
    %365 = arith.addf %361, %364 : vector<8x1xf32>
    %366 = math.rsqrt %365 : vector<8x1xf32>
    %367 = vector.broadcast %366 : vector<8x1xf32> to vector<8x32xf32>
    %368 = arith.mulf %363, %367 : vector<8x32xf32>
    %369 = vector.broadcast %349 : vector<1x32xf32> to vector<8x32xf32>
    %370 = arith.mulf %368, %369 : vector<8x32xf32>
    %371 = vector.broadcast %350 : vector<1x32xf32> to vector<8x32xf32>
    %372 = arith.addf %370, %371 : vector<8x32xf32>
    %c0_249 = arith.constant 0 : index
    %c0_250 = arith.constant 0 : index
    %373 = vector.load %arg4[%c0_249, %c0_250] : memref<32x64xf32, #tpu.memory_space<vmem>>, vector<32x64xf32>
    %cst_251 = arith.constant dense<0.000000e+00> : vector<8x64xf32>
    %374 = tpu.matmul %372, %373, %cst_251 {dimension_numbers = #tpu.dot_dimension_numbers<[1], [0], [0], [1], [0, 0, 1, 1], [], []>} : vector<8x32xf32>, vector<32x64xf32>, vector<8x64xf32> -> vector<8x64xf32>
    %cst_252 = arith.constant dense<0.000000e+00> : vector<8x8xf32>
    %375 = tpu.matmul %374, %7, %cst_252 {dimension_numbers = #tpu.dot_dimension_numbers<[1], [1], [0], [0], [0, 0, 1, 0], [], []>} : vector<8x64xf32>, vector<8x64xf32>, vector<8x8xf32> -> vector<8x8xf32>
    %c1_i32 = arith.constant 1 : i32
    %376 = vector.broadcast %c1_i32 : i32 to vector<8x8xi32>
    %377 = arith.addi %12, %376 : vector<8x8xi32>
    %378 = arith.cmpi eq, %13, %377 : vector<8x8xi32>
    %cst_253 = arith.constant 0.000000e+00 : f32
    %379 = vector.broadcast %cst_253 : f32 to vector<8x8xf32>
    %380 = arith.select %378, %375, %379 : vector<8x8xi1>, vector<8x8xf32>
    %cst_254 = arith.constant dense<0.000000e+00> : vector<8xf32>
    %381 = vector.multi_reduction <add>, %380, %cst_254 [1] : vector<8x8xf32> to vector<8xf32>
    %382 = vector.shape_cast %381 : vector<8xf32> to vector<8x1xf32>
    %383 = tpu.iota {dimensions = array<i32: 0>} : vector<8x1xi32>
    %c1_i32_255 = arith.constant 1 : i32
    %384 = arith.subi %1, %c1_i32_255 : i32
    %385 = vector.broadcast %384 : i32 to vector<8x1xi32>
    %386 = arith.cmpi slt, %383, %385 : vector<8x1xi32>
    %387 = arith.extui %386 : vector<8x1xi1> to vector<8x1xi32>
    %388 = arith.sitofp %387 : vector<8x1xi32> to vector<8x1xf32>
    %cst_256 = arith.constant dense<0xFF800000> : vector<8xf32>
    %389 = vector.multi_reduction <maximumf>, %374, %cst_256 [1] : vector<8x64xf32> to vector<8xf32>
    %390 = vector.shape_cast %389 : vector<8xf32> to vector<8x1xf32>
    %391 = vector.broadcast %390 : vector<8x1xf32> to vector<8x64xf32>
    %392 = arith.subf %374, %391 : vector<8x64xf32>
    %393 = math.exp %392 : vector<8x64xf32>
    %cst_257 = arith.constant dense<0.000000e+00> : vector<8xf32>
    %394 = vector.multi_reduction <add>, %393, %cst_257 [1] : vector<8x64xf32> to vector<8xf32>
    %395 = vector.shape_cast %394 : vector<8xf32> to vector<8x1xf32>
    %396 = math.log %395 : vector<8x1xf32>
    %397 = arith.addf %390, %396 : vector<8x1xf32>
    %398 = arith.subf %397, %382 : vector<8x1xf32>
    %399 = arith.mulf %398, %388 : vector<8x1xf32>
    %cst_258 = arith.constant dense<0.000000e+00> : vector<1xf32>
    %400 = vector.multi_reduction <add>, %399, %cst_258 [0] : vector<8x1xf32> to vector<1xf32>
    %401 = vector.shape_cast %400 : vector<1xf32> to vector<1x1xf32>
    %cst_259 = arith.constant dense<0.000000e+00> : vector<1xf32>
    %402 = vector.multi_reduction <add>, %388, %cst_259 [0] : vector<8x1xf32> to vector<1xf32>
    %403 = vector.shape_cast %402 : vector<1xf32> to vector<1x1xf32>
    %404 = tpu.iota {dimensions = array<i32: 1>} : vector<1x2xi32>
    %c0_i32 = arith.constant 0 : i32
    %405 = vector.broadcast %c0_i32 : i32 to vector<1x2xi32>
    %406 = arith.cmpi eq, %404, %405 : vector<1x2xi32>
    %407 = vector.shape_cast %401 : vector<1x1xf32> to vector<1x1xf32>
    %408 = vector.broadcast %407 : vector<1x1xf32> to vector<1x2xf32>
    %409 = vector.shape_cast %403 : vector<1x1xf32> to vector<1x1xf32>
    %410 = vector.broadcast %409 : vector<1x1xf32> to vector<1x2xf32>
    %411 = arith.select %406, %408, %410 : vector<1x2xi1>, vector<1x2xf32>
    %c0_260 = arith.constant 0 : index
    %c0_261 = arith.constant 0 : index
    %c0_262 = arith.constant 0 : index
    %412 = vector.load %arg24[%c0_260, %c0_261, %c0_262] : memref<1x1x2xf32, #tpu.memory_space<vmem>>, vector<1x1x2xf32>
    %413 = vector.shape_cast %412 : vector<1x1x2xf32> to vector<1x2xf32>
    %414 = vector.shape_cast %411 : vector<1x2xf32> to vector<1x1x2xf32>
    tpu.vector_store %arg24[%c0_260, %c0_261, %c0_262], %414 {strides = array<i32>} : memref<1x1x2xf32, #tpu.memory_space<vmem>>, vector<1x1x2xf32>,
    return
  }
  func.func @transform_0(%arg0: i32, %arg1: memref<2xi32, #tpu.memory_space<smem>>) -> (i32, i32) {
    %c0_i32 = arith.constant 0 : i32
    %c0_i32_0 = arith.constant 0 : i32
    return %arg0, %c0_i32 : i32, i32
  }
  func.func @transform_1(%arg0: i32, %arg1: memref<2xi32, #tpu.memory_space<smem>>) -> (i32, i32) {
    %c0_i32 = arith.constant 0 : i32
    %c0_i32_0 = arith.constant 0 : i32
    %c0_i32_1 = arith.constant 0 : i32
    return %c0_i32, %c0_i32_0 : i32, i32
  }
  func.func @transform_2(%arg0: i32, %arg1: memref<2xi32, #tpu.memory_space<smem>>) -> (i32, i32) {
    %c0_i32 = arith.constant 0 : i32
    %c0_i32_0 = arith.constant 0 : i32
    %c0_i32_1 = arith.constant 0 : i32
    return %c0_i32, %c0_i32_0 : i32, i32
  }
  func.func @transform_3(%arg0: i32, %arg1: memref<2xi32, #tpu.memory_space<smem>>) -> (i32, i32) {
    %c0_i32 = arith.constant 0 : i32
    %c0_i32_0 = arith.constant 0 : i32
    %c0_i32_1 = arith.constant 0 : i32
    return %c0_i32, %c0_i32_0 : i32, i32
  }
  func.func @transform_4(%arg0: i32, %arg1: memref<2xi32, #tpu.memory_space<smem>>) -> (i32, i32, i32) {
    %c0_i32 = arith.constant 0 : i32
    %c0_i32_0 = arith.constant 0 : i32
    %c0_i32_1 = arith.constant 0 : i32
    %c0_i32_2 = arith.constant 0 : i32
    return %c0_i32, %c0_i32_0, %c0_i32_1 : i32, i32, i32
  }
  func.func @transform_5(%arg0: i32, %arg1: memref<2xi32, #tpu.memory_space<smem>>) -> (i32, i32, i32) {
    %c0_i32 = arith.constant 0 : i32
    %c0_i32_0 = arith.constant 0 : i32
    %c0_i32_1 = arith.constant 0 : i32
    %c0_i32_2 = arith.constant 0 : i32
    return %c0_i32, %c0_i32_0, %c0_i32_1 : i32, i32, i32
  }
  func.func @transform_6(%arg0: i32, %arg1: memref<2xi32, #tpu.memory_space<smem>>) -> (i32, i32, i32, i32) {
    %c0_i32 = arith.constant 0 : i32
    %c0_i32_0 = arith.constant 0 : i32
    %c0_i32_1 = arith.constant 0 : i32
    %c0_i32_2 = arith.constant 0 : i32
    %c0_i32_3 = arith.constant 0 : i32
    return %c0_i32, %c0_i32_0, %c0_i32_1, %c0_i32_2 : i32, i32, i32, i32
  }
  func.func @transform_7(%arg0: i32, %arg1: memref<2xi32, #tpu.memory_space<smem>>) -> (i32, i32, i32, i32) {
    %c0_i32 = arith.constant 0 : i32
    %c0_i32_0 = arith.constant 0 : i32
    %c0_i32_1 = arith.constant 0 : i32
    %c0_i32_2 = arith.constant 0 : i32
    %c0_i32_3 = arith.constant 0 : i32
    return %c0_i32, %c0_i32_0, %c0_i32_1, %c0_i32_2 : i32, i32, i32, i32
  }
  func.func @transform_8(%arg0: i32, %arg1: memref<2xi32, #tpu.memory_space<smem>>) -> (i32, i32, i32, i32) {
    %c0_i32 = arith.constant 0 : i32
    %c0_i32_0 = arith.constant 0 : i32
    %c0_i32_1 = arith.constant 0 : i32
    %c0_i32_2 = arith.constant 0 : i32
    %c0_i32_3 = arith.constant 0 : i32
    return %c0_i32, %c0_i32_0, %c0_i32_1, %c0_i32_2 : i32, i32, i32, i32
  }
  func.func @transform_9(%arg0: i32, %arg1: memref<2xi32, #tpu.memory_space<smem>>) -> (i32, i32, i32, i32) {
    %c0_i32 = arith.constant 0 : i32
    %c0_i32_0 = arith.constant 0 : i32
    %c0_i32_1 = arith.constant 0 : i32
    %c0_i32_2 = arith.constant 0 : i32
    %c0_i32_3 = arith.constant 0 : i32
    return %c0_i32, %c0_i32_0, %c0_i32_1, %c0_i32_2 : i32, i32, i32, i32
  }
  func.func @transform_10(%arg0: i32, %arg1: memref<2xi32, #tpu.memory_space<smem>>) -> (i32, i32, i32, i32) {
    %c0_i32 = arith.constant 0 : i32
    %c0_i32_0 = arith.constant 0 : i32
    %c0_i32_1 = arith.constant 0 : i32
    %c0_i32_2 = arith.constant 0 : i32
    %c0_i32_3 = arith.constant 0 : i32
    return %c0_i32, %c0_i32_0, %c0_i32_1, %c0_i32_2 : i32, i32, i32, i32
  }
  func.func @transform_11(%arg0: i32, %arg1: memref<2xi32, #tpu.memory_space<smem>>) -> (i32, i32, i32, i32) {
    %c0_i32 = arith.constant 0 : i32
    %c0_i32_0 = arith.constant 0 : i32
    %c0_i32_1 = arith.constant 0 : i32
    %c0_i32_2 = arith.constant 0 : i32
    %c0_i32_3 = arith.constant 0 : i32
    return %c0_i32, %c0_i32_0, %c0_i32_1, %c0_i32_2 : i32, i32, i32, i32
  }
  func.func @transform_12(%arg0: i32, %arg1: memref<2xi32, #tpu.memory_space<smem>>) -> (i32, i32, i32, i32) {
    %c0_i32 = arith.constant 0 : i32
    %c0_i32_0 = arith.constant 0 : i32
    %c0_i32_1 = arith.constant 0 : i32
    %c0_i32_2 = arith.constant 0 : i32
    %c0_i32_3 = arith.constant 0 : i32
    return %c0_i32, %c0_i32_0, %c0_i32_1, %c0_i32_2 : i32, i32, i32, i32
  }
  func.func @transform_13(%arg0: i32, %arg1: memref<2xi32, #tpu.memory_space<smem>>) -> (i32, i32, i32) {
    %c0_i32 = arith.constant 0 : i32
    %c0_i32_0 = arith.constant 0 : i32
    %c0_i32_1 = arith.constant 0 : i32
    %c0_i32_2 = arith.constant 0 : i32
    return %c0_i32, %c0_i32_0, %c0_i32_1 : i32, i32, i32
  }
  func.func @transform_14(%arg0: i32, %arg1: memref<2xi32, #tpu.memory_space<smem>>) -> (i32, i32, i32) {
    %c0_i32 = arith.constant 0 : i32
    %c0_i32_0 = arith.constant 0 : i32
    %c0_i32_1 = arith.constant 0 : i32
    %c0_i32_2 = arith.constant 0 : i32
    return %c0_i32, %c0_i32_0, %c0_i32_1 : i32, i32, i32
  }
  func.func @transform_15(%arg0: i32, %arg1: memref<2xi32, #tpu.memory_space<smem>>) -> (i32, i32, i32) {
    %c0_i32 = arith.constant 0 : i32
    %c0_i32_0 = arith.constant 0 : i32
    %c0_i32_1 = arith.constant 0 : i32
    %c0_i32_2 = arith.constant 0 : i32
    return %c0_i32, %c0_i32_0, %c0_i32_1 : i32, i32, i32
  }
  func.func @transform_16(%arg0: i32, %arg1: memref<2xi32, #tpu.memory_space<smem>>) -> (i32, i32, i32) {
    %c0_i32 = arith.constant 0 : i32
    %c0_i32_0 = arith.constant 0 : i32
    %c0_i32_1 = arith.constant 0 : i32
    %c0_i32_2 = arith.constant 0 : i32
    return %c0_i32, %c0_i32_0, %c0_i32_1 : i32, i32, i32
  }
  func.func @transform_17(%arg0: i32, %arg1: memref<2xi32, #tpu.memory_space<smem>>) -> (i32, i32, i32) {
    %c0_i32 = arith.constant 0 : i32
    %c0_i32_0 = arith.constant 0 : i32
    %c0_i32_1 = arith.constant 0 : i32
    %c0_i32_2 = arith.constant 0 : i32
    return %c0_i32, %c0_i32_0, %c0_i32_1 : i32, i32, i32
  }
  func.func @transform_18(%arg0: i32, %arg1: memref<2xi32, #tpu.memory_space<smem>>) -> (i32, i32, i32) {
    %c0_i32 = arith.constant 0 : i32
    %c0_i32_0 = arith.constant 0 : i32
    %c0_i32_1 = arith.constant 0 : i32
    %c0_i32_2 = arith.constant 0 : i32
    return %c0_i32, %c0_i32_0, %c0_i32_1 : i32, i32, i32
  }
  func.func @transform_19(%arg0: i32, %arg1: memref<2xi32, #tpu.memory_space<smem>>) -> (i32, i32, i32) {
    %c0_i32 = arith.constant 0 : i32
    %c0_i32_0 = arith.constant 0 : i32
    %c0_i32_1 = arith.constant 0 : i32
    %c0_i32_2 = arith.constant 0 : i32
    return %c0_i32, %c0_i32_0, %c0_i32_1 : i32, i32, i32
  }
  func.func @transform_20(%arg0: i32, %arg1: memref<2xi32, #tpu.memory_space<smem>>) -> (i32, i32) {
    %c0_i32 = arith.constant 0 : i32
    %c0_i32_0 = arith.constant 0 : i32
    %c0_i32_1 = arith.constant 0 : i32
    return %c0_i32, %c0_i32_0 : i32, i32
  }
  func.func @transform_21(%arg0: i32, %arg1: memref<2xi32, #tpu.memory_space<smem>>) -> (i32, i32) {
    %c0_i32 = arith.constant 0 : i32
    %c0_i32_0 = arith.constant 0 : i32
    %c0_i32_1 = arith.constant 0 : i32
    return %c0_i32, %c0_i32_0 : i32, i32
  }
  func.func @transform_22(%arg0: i32, %arg1: memref<2xi32, #tpu.memory_space<smem>>) -> (i32, i32, i32) {
    %c0_i32 = arith.constant 0 : i32
    %c0_i32_0 = arith.constant 0 : i32
    %c0_i32_1 = arith.constant 0 : i32
    return %arg0, %c0_i32, %c0_i32_0 : i32, i32, i32
  }
}

</mosaic_0001>

<llo_original>
// kernel: gen_network_forward.1
$region0: #{gen_network_forward.1}
  #allocation0 [shape = 'u32[]', space=smem, size = 0x4, offset = 0x4, fixed_abs, tag = 'smem constant byte address 0x4 - core index']
  #allocation1 [shape = 'u32[72,128]{1,0:T(1,128)}', space=vmem, size = 0x9000, scoped, tag = 'internal scratch']
  #allocation2 [shape = 's32[1]{0}', space=sflag, size = 0x4, scoped, tag = 'scoped memory for gen_network_forward.1']
  #allocation3 [shape = 'u8[512]{0}', space=smem, size = 0x200, scoped, tag = 'prefetched SMEM operand 0']
  %s0 = inlined_call_operand.vmem [shape: s32[2], index: 0, kind: input, shape index: {}]
  %s1 = inlined_call_operand.vmem [shape: s32[16,1], index: 1, kind: input, shape index: {}]
  %s2 = inlined_call_operand.vmem [shape: f32[64,32], index: 2, kind: input, shape index: {}]
  %s3 = inlined_call_operand.vmem [shape: f32[32,64], index: 3, kind: input, shape index: {}]
  %s4 = inlined_call_operand.vmem [shape: f32[16,32], index: 4, kind: input, shape index: {}]
  %s5 = inlined_call_operand.vmem [shape: f32[2,1,32], index: 5, kind: input, shape index: {}]
  %s6 = inlined_call_operand.vmem [shape: f32[2,1,32], index: 6, kind: input, shape index: {}]
  %s7 = inlined_call_operand.vmem [shape: f32[2,2,32,16], index: 7, kind: input, shape index: {}]
  %s8 = inlined_call_operand.vmem [shape: f32[2,2,32,16], index: 8, kind: input, shape index: {}]
  %s9 = inlined_call_operand.vmem [shape: f32[2,2,32,16], index: 9, kind: input, shape index: {}]
  %s10 = inlined_call_operand.vmem [shape: f32[2,2,1,16], index: 10, kind: input, shape index: {}]
  %s11 = inlined_call_operand.vmem [shape: f32[2,2,1,16], index: 11, kind: input, shape index: {}]
  %s12 = inlined_call_operand.vmem [shape: f32[2,2,1,16], index: 12, kind: input, shape index: {}]
  %s13 = inlined_call_operand.vmem [shape: f32[2,2,16,32], index: 13, kind: input, shape index: {}]
  %s14 = inlined_call_operand.vmem [shape: f32[2,1,32], index: 14, kind: input, shape index: {}]
  %s15 = inlined_call_operand.vmem [shape: f32[2,1,32], index: 15, kind: input, shape index: {}]
  %s16 = inlined_call_operand.vmem [shape: f32[2,1,32], index: 16, kind: input, shape index: {}]
  %s17 = inlined_call_operand.vmem [shape: f32[2,32,128], index: 17, kind: input, shape index: {}]
  %s18 = inlined_call_operand.vmem [shape: f32[2,1,128], index: 18, kind: input, shape index: {}]
  %s19 = inlined_call_operand.vmem [shape: f32[2,128,32], index: 19, kind: input, shape index: {}]
  %s20 = inlined_call_operand.vmem [shape: f32[2,1,32], index: 20, kind: input, shape index: {}]
  %s21 = inlined_call_operand.vmem [shape: f32[1,32], index: 21, kind: input, shape index: {}]
  %s22 = inlined_call_operand.vmem [shape: f32[1,32], index: 22, kind: input, shape index: {}]
  %s23 = inlined_call_operand.vmem [shape: f32[2,1,2], index: 23, kind: output, shape index: {}]
  %s24 = sld [smem:[#allocation0]]
  $region121: #{gen_network_forward.1} parent=0
    _
  %s26 = ssub.s32 1, %s24
  %s27 = scalar_select 0, %s26, %s24
  %s29 = sshll.u32 %s0, 4
  %s30 = int_to_ptr.vmem [resolvable:$true] %s29
  %32 = dma.vmem_to_smem %s30, 16, [#allocation3], [#allocation2]
  %34 = dma.done [#allocation2], 16
  %35 = sfence
  loop: start=0, step=1, limit=4
  $region2: #{gen_network_forward.1} parent=0 // loop_pre_header
    _
  $region3: #{gen_network_forward.1} parent=0 // loop_header
    %s37 = sphi 0, %s41
    %p38 = scmp.ge.s32.totalorder %s37, 4
    %s47 = sphi 0, %s49
    %s50 = sphi 0, %s47
    %s51 = sphi 0, %s50
    %s67 = sphi 0, %s51
    %s71 = sphi 0, %s71
    %s73 = sphi 0, %s71
    %s74 = sphi 0, %s73
    %s88 = sphi 0, %s74
    %s92 = sphi 0, %s92
    %s94 = sphi 0, %s92
    %s95 = sphi 0, %s94
    %s109 = sphi 0, %s95
    %s113 = sphi 0, %s113
    %s115 = sphi 0, %s113
    %s116 = sphi 0, %s115
    %s130 = sphi 0, %s116
    %s134 = sphi 0, %s134
    %s136 = sphi 0, %s134
    %s137 = sphi 0, %s136
    %s151 = sphi 0, %s137
    %s155 = sphi 0, %s155
    %s157 = sphi 0, %s155
    %s158 = sphi 0, %s157
    %s172 = sphi 0, %s158
    %s176 = sphi 0, %s176
    %s178 = sphi 0, %s176
    %s179 = sphi 0, %s178
    %s193 = sphi 0, %s179
    %s197 = sphi 0, %s197
    %s199 = sphi 0, %s197
    %s200 = sphi 0, %s199
    %s214 = sphi 0, %s200
    %s218 = sphi 0, %s218
    %s220 = sphi 0, %s218
    %s221 = sphi 0, %s220
    %s235 = sphi 0, %s221
    %s239 = sphi 0, %s239
    %s241 = sphi 0, %s239
    %s242 = sphi 0, %s241
    %s256 = sphi 0, %s242
    %s260 = sphi 0, %s260
    %s262 = sphi 0, %s260
    %s263 = sphi 0, %s262
    %s277 = sphi 0, %s263
    %s281 = sphi 0, %s281
    %s283 = sphi 0, %s281
    %s284 = sphi 0, %s283
    %s298 = sphi 0, %s284
    %s302 = sphi 0, %s302
    %s304 = sphi 0, %s302
    %s305 = sphi 0, %s304
    %s319 = sphi 0, %s305
    %s323 = sphi 0, %s323
    %s325 = sphi 0, %s323
    %s326 = sphi 0, %s325
    %s340 = sphi 0, %s326
    %s344 = sphi 0, %s344
    %s346 = sphi 0, %s344
    %s347 = sphi 0, %s346
    %s361 = sphi 0, %s347
    %s365 = sphi 0, %s365
    %s367 = sphi 0, %s365
    %s368 = sphi 0, %s367
    %s382 = sphi 0, %s368
    %s386 = sphi 0, %s386
    %s388 = sphi 0, %s386
    %s389 = sphi 0, %s388
    %s403 = sphi 0, %s389
    %s407 = sphi 0, %s407
    %s409 = sphi 0, %s407
    %s410 = sphi 0, %s409
    %s424 = sphi 0, %s410
    %s428 = sphi 0, %s428
    %s430 = sphi 0, %s428
    %s431 = sphi 0, %s430
    %s445 = sphi 0, %s431
    %s449 = sphi 0, %s449
    %s451 = sphi 0, %s449
    %s452 = sphi 0, %s451
    %s466 = sphi 0, %s452
    %s470 = sphi 0, %s470
    %s472 = sphi 0, %s470
    %s473 = sphi 0, %s472
    %s487 = sphi 0, %s473
    %s491 = sphi 0, %s491
    %s493 = sphi 0, %s491
    %s494 = sphi 0, %s493
    %s508 = sphi 0, %s494
    %s514 = sphi 0, %s516
    %s517 = sphi 0, %s514
    %s518 = sphi 0, %s517
    %s534 = sphi 0, %s518
  $region4: #{gen_network_forward.1} parent=0 // loop_header_branch
    %40 = sbr.rel (%p38) target = $region8
  $region5: #{gen_network_forward.1} parent=0 // loop_body
    %s42 = ssub.s32 %s37, 1
    %s43 = ssub.s32 %s37, 2
    %s44 = sadd.s32 %s37, 1
    %s45 = ssub.s32 %s37, %s44
    %p46 = scmp.eq.s32.totalorder %s45, 0
    %s48 = sadd.s32 %s47, 1
    %s49 = scalar_select %p46, %s47, %s48
    %p52 = pneg %p46
    %p53 = scmp.eq.s32.totalorder %s37, 1
    %p54 = por %p52, %p53
    %p55 = scmp.ne.s32.totalorder %s47, %s50
    %p56 = scmp.eq.s32.totalorder %s37, 0
    %p57 = por %p55, %p56
    %p58 = scmp.ne.s32.totalorder %s47, %s50
    %p59 = scmp.eq.s32.totalorder %s42, 1
    %p60 = por %p58, %p59
    %p61 = scmp.ne.s32.totalorder %s50, %s51
    %p62 = scmp.eq.s32.totalorder %s42, 0
    %p63 = por %p61, %p62
    %p64 = scmp.ne.s32.totalorder %s50, %s51
    %p65 = scmp.eq.s32.totalorder %s43, 1
    %p66 = por %p64, %p65
    %p68 = scmp.ne.s32.totalorder %s51, %s67
    %p69 = scmp.eq.s32.totalorder %s43, 0
    %p70 = por %p68, %p69
    %s72 = sadd.s32 %s71, 1
    %p75 = scmp.eq.s32.totalorder %s37, 1
    %p76 = scmp.ne.s32.totalorder %s71, %s73
    %p77 = scmp.eq.s32.totalorder %s37, 0
    %p78 = por %p76, %p77
    %p79 = scmp.ne.s32.totalorder %s71, %s73
    %p80 = scmp.eq.s32.totalorder %s42, 1
    %p81 = por %p79, %p80
    %p82 = scmp.ne.s32.totalorder %s73, %s74
    %p83 = scmp.eq.s32.totalorder %s42, 0
    %p84 = por %p82, %p83
    %p85 = scmp.ne.s32.totalorder %s73, %s74
    %p86 = scmp.eq.s32.totalorder %s43, 1
    %p87 = por %p85, %p86
    %p89 = scmp.ne.s32.totalorder %s74, %s88
    %p90 = scmp.eq.s32.totalorder %s43, 0
    %p91 = por %p89, %p90
    %s93 = sadd.s32 %s92, 1
    %p96 = scmp.eq.s32.totalorder %s37, 1
    %p97 = scmp.ne.s32.totalorder %s92, %s94
    %p98 = scmp.eq.s32.totalorder %s37, 0
    %p99 = por %p97, %p98
    %p100 = scmp.ne.s32.totalorder %s92, %s94
    %p101 = scmp.eq.s32.totalorder %s42, 1
    %p102 = por %p100, %p101
    %p103 = scmp.ne.s32.totalorder %s94, %s95
    %p104 = scmp.eq.s32.totalorder %s42, 0
    %p105 = por %p103, %p104
    %p106 = scmp.ne.s32.totalorder %s94, %s95
    %p107 = scmp.eq.s32.totalorder %s43, 1
    %p108 = por %p106, %p107
    %p110 = scmp.ne.s32.totalorder %s95, %s109
    %p111 = scmp.eq.s32.totalorder %s43, 0
    %p112 = por %p110, %p111
    %s114 = sadd.s32 %s113, 1
    %p117 = scmp.eq.s32.totalorder %s37, 1
    %p118 = scmp.ne.s32.totalorder %s113, %s115
    %p119 = scmp.eq.s32.totalorder %s37, 0
    %p120 = por %p118, %p119
    %p121 = scmp.ne.s32.totalorder %s113, %s115
    %p122 = scmp.eq.s32.totalorder %s42, 1
    %p123 = por %p121, %p122
    %p124 = scmp.ne.s32.totalorder %s115, %s116
    %p125 = scmp.eq.s32.totalorder %s42, 0
    %p126 = por %p124, %p125
    %p127 = scmp.ne.s32.totalorder %s115, %s116
    %p128 = scmp.eq.s32.totalorder %s43, 1
    %p129 = por %p127, %p128
    %p131 = scmp.ne.s32.totalorder %s116, %s130
    %p132 = scmp.eq.s32.totalorder %s43, 0
    %p133 = por %p131, %p132
    %s135 = sadd.s32 %s134, 1
    %p138 = scmp.eq.s32.totalorder %s37, 1
    %p139 = scmp.ne.s32.totalorder %s134, %s136
    %p140 = scmp.eq.s32.totalorder %s37, 0
    %p141 = por %p139, %p140
    %p142 = scmp.ne.s32.totalorder %s134, %s136
    %p143 = scmp.eq.s32.totalorder %s42, 1
    %p144 = por %p142, %p143
    %p145 = scmp.ne.s32.totalorder %s136, %s137
    %p146 = scmp.eq.s32.totalorder %s42, 0
    %p147 = por %p145, %p146
    %p148 = scmp.ne.s32.totalorder %s136, %s137
    %p149 = scmp.eq.s32.totalorder %s43, 1
    %p150 = por %p148, %p149
    %p152 = scmp.ne.s32.totalorder %s137, %s151
    %p153 = scmp.eq.s32.totalorder %s43, 0
    %p154 = por %p152, %p153
    %s156 = sadd.s32 %s155, 1
    %p159 = scmp.eq.s32.totalorder %s37, 1
    %p160 = scmp.ne.s32.totalorder %s155, %s157
    %p161 = scmp.eq.s32.totalorder %s37, 0
    %p162 = por %p160, %p161
    %p163 = scmp.ne.s32.totalorder %s155, %s157
    %p164 = scmp.eq.s32.totalorder %s42, 1
    %p165 = por %p163, %p164
    %p166 = scmp.ne.s32.totalorder %s157, %s158
    %p167 = scmp.eq.s32.totalorder %s42, 0
    %p168 = por %p166, %p167
    %p169 = scmp.ne.s32.totalorder %s157, %s158
    %p170 = scmp.eq.s32.totalorder %s43, 1
    %p171 = por %p169, %p170
    %p173 = scmp.ne.s32.totalorder %s158, %s172
    %p174 = scmp.eq.s32.totalorder %s43, 0
    %p175 = por %p173, %p174
    %s177 = sadd.s32 %s176, 1
    %p180 = scmp.eq.s32.totalorder %s37, 1
    %p181 = scmp.ne.s32.totalorder %s176, %s178
    %p182 = scmp.eq.s32.totalorder %s37, 0
    %p183 = por %p181, %p182
    %p184 = scmp.ne.s32.totalorder %s176, %s178
    %p185 = scmp.eq.s32.totalorder %s42, 1
    %p186 = por %p184, %p185
    %p187 = scmp.ne.s32.totalorder %s178, %s179
    %p188 = scmp.eq.s32.totalorder %s42, 0
    %p189 = por %p187, %p188
    %p190 = scmp.ne.s32.totalorder %s178, %s179
    %p191 = scmp.eq.s32.totalorder %s43, 1
    %p192 = por %p190, %p191
    %p194 = scmp.ne.s32.totalorder %s179, %s193
    %p195 = scmp.eq.s32.totalorder %s43, 0
    %p196 = por %p194, %p195
    %s198 = sadd.s32 %s197, 1
    %p201 = scmp.eq.s32.totalorder %s37, 1
    %p202 = scmp.ne.s32.totalorder %s197, %s199
    %p203 = scmp.eq.s32.totalorder %s37, 0
    %p204 = por %p202, %p203
    %p205 = scmp.ne.s32.totalorder %s197, %s199
    %p206 = scmp.eq.s32.totalorder %s42, 1
    %p207 = por %p205, %p206
    %p208 = scmp.ne.s32.totalorder %s199, %s200
    %p209 = scmp.eq.s32.totalorder %s42, 0
    %p210 = por %p208, %p209
    %p211 = scmp.ne.s32.totalorder %s199, %s200
    %p212 = scmp.eq.s32.totalorder %s43, 1
    %p213 = por %p211, %p212
    %p215 = scmp.ne.s32.totalorder %s200, %s214
    %p216 = scmp.eq.s32.totalorder %s43, 0
    %p217 = por %p215, %p216
    %s219 = sadd.s32 %s218, 1
    %p222 = scmp.eq.s32.totalorder %s37, 1
    %p223 = scmp.ne.s32.totalorder %s218, %s220
    %p224 = scmp.eq.s32.totalorder %s37, 0
    %p225 = por %p223, %p224
    %p226 = scmp.ne.s32.totalorder %s218, %s220
    %p227 = scmp.eq.s32.totalorder %s42, 1
    %p228 = por %p226, %p227
    %p229 = scmp.ne.s32.totalorder %s220, %s221
    %p230 = scmp.eq.s32.totalorder %s42, 0
    %p231 = por %p229, %p230
    %p232 = scmp.ne.s32.totalorder %s220, %s221
    %p233 = scmp.eq.s32.totalorder %s43, 1
    %p234 = por %p232, %p233
    %p236 = scmp.ne.s32.totalorder %s221, %s235
    %p237 = scmp.eq.s32.totalorder %s43, 0
    %p238 = por %p236, %p237
    %s240 = sadd.s32 %s239, 1
    %p243 = scmp.eq.s32.totalorder %s37, 1
    %p244 = scmp.ne.s32.totalorder %s239, %s241
    %p245 = scmp.eq.s32.totalorder %s37, 0
    %p246 = por %p244, %p245
    %p247 = scmp.ne.s32.totalorder %s239, %s241
    %p248 = scmp.eq.s32.totalorder %s42, 1
    %p249 = por %p247, %p248
    %p250 = scmp.ne.s32.totalorder %s241, %s242
    %p251 = scmp.eq.s32.totalorder %s42, 0
    %p252 = por %p250, %p251
    %p253 = scmp.ne.s32.totalorder %s241, %s242
    %p254 = scmp.eq.s32.totalorder %s43, 1
    %p255 = por %p253, %p254
    %p257 = scmp.ne.s32.totalorder %s242, %s256
    %p258 = scmp.eq.s32.totalorder %s43, 0
    %p259 = por %p257, %p258
    %s261 = sadd.s32 %s260, 1
    %p264 = scmp.eq.s32.totalorder %s37, 1
    %p265 = scmp.ne.s32.totalorder %s260, %s262
    %p266 = scmp.eq.s32.totalorder %s37, 0
    %p267 = por %p265, %p266
    %p268 = scmp.ne.s32.totalorder %s260, %s262
    %p269 = scmp.eq.s32.totalorder %s42, 1
    %p270 = por %p268, %p269
    %p271 = scmp.ne.s32.totalorder %s262, %s263
    %p272 = scmp.eq.s32.totalorder %s42, 0
    %p273 = por %p271, %p272
    %p274 = scmp.ne.s32.totalorder %s262, %s263
    %p275 = scmp.eq.s32.totalorder %s43, 1
    %p276 = por %p274, %p275
    %p278 = scmp.ne.s32.totalorder %s263, %s277
    %p279 = scmp.eq.s32.totalorder %s43, 0
    %p280 = por %p278, %p279
    %s282 = sadd.s32 %s281, 1
    %p285 = scmp.eq.s32.totalorder %s37, 1
    %p286 = scmp.ne.s32.totalorder %s281, %s283
    %p287 = scmp.eq.s32.totalorder %s37, 0
    %p288 = por %p286, %p287
    %p289 = scmp.ne.s32.totalorder %s281, %s283
    %p290 = scmp.eq.s32.totalorder %s42, 1
    %p291 = por %p289, %p290
    %p292 = scmp.ne.s32.totalorder %s283, %s284
    %p293 = scmp.eq.s32.totalorder %s42, 0
    %p294 = por %p292, %p293
    %p295 = scmp.ne.s32.totalorder %s283, %s284
    %p296 = scmp.eq.s32.totalorder %s43, 1
    %p297 = por %p295, %p296
    %p299 = scmp.ne.s32.totalorder %s284, %s298
    %p300 = scmp.eq.s32.totalorder %s43, 0
    %p301 = por %p299, %p300
    %s303 = sadd.s32 %s302, 1
    %p306 = scmp.eq.s32.totalorder %s37, 1
    %p307 = scmp.ne.s32.totalorder %s302, %s304
    %p308 = scmp.eq.s32.totalorder %s37, 0
    %p309 = por %p307, %p308
    %p310 = scmp.ne.s32.totalorder %s302, %s304
    %p311 = scmp.eq.s32.totalorder %s42, 1
    %p312 = por %p310, %p311
    %p313 = scmp.ne.s32.totalorder %s304, %s305
    %p314 = scmp.eq.s32.totalorder %s42, 0
    %p315 = por %p313, %p314
    %p316 = scmp.ne.s32.totalorder %s304, %s305
    %p317 = scmp.eq.s32.totalorder %s43, 1
    %p318 = por %p316, %p317
    %p320 = scmp.ne.s32.totalorder %s305, %s319
    %p321 = scmp.eq.s32.totalorder %s43, 0
    %p322 = por %p320, %p321
    %s324 = sadd.s32 %s323, 1
    %p327 = scmp.eq.s32.totalorder %s37, 1
    %p328 = scmp.ne.s32.totalorder %s323, %s325
    %p329 = scmp.eq.s32.totalorder %s37, 0
    %p330 = por %p328, %p329
    %p331 = scmp.ne.s32.totalorder %s323, %s325
    %p332 = scmp.eq.s32.totalorder %s42, 1
    %p333 = por %p331, %p332
    %p334 = scmp.ne.s32.totalorder %s325, %s326
    %p335 = scmp.eq.s32.totalorder %s42, 0
    %p336 = por %p334, %p335
    %p337 = scmp.ne.s32.totalorder %s325, %s326
    %p338 = scmp.eq.s32.totalorder %s43, 1
    %p339 = por %p337, %p338
    %p341 = scmp.ne.s32.totalorder %s326, %s340
    %p342 = scmp.eq.s32.totalorder %s43, 0
    %p343 = por %p341, %p342
    %s345 = sadd.s32 %s344, 1
    %p348 = scmp.eq.s32.totalorder %s37, 1
    %p349 = scmp.ne.s32.totalorder %s344, %s346
    %p350 = scmp.eq.s32.totalorder %s37, 0
    %p351 = por %p349, %p350
    %p352 = scmp.ne.s32.totalorder %s344, %s346
    %p353 = scmp.eq.s32.totalorder %s42, 1
    %p354 = por %p352, %p353
    %p355 = scmp.ne.s32.totalorder %s346, %s347
    %p356 = scmp.eq.s32.totalorder %s42, 0
    %p357 = por %p355, %p356
    %p358 = scmp.ne.s32.totalorder %s346, %s347
    %p359 = scmp.eq.s32.totalorder %s43, 1
    %p360 = por %p358, %p359
    %p362 = scmp.ne.s32.totalorder %s347, %s361
    %p363 = scmp.eq.s32.totalorder %s43, 0
    %p364 = por %p362, %p363
    %s366 = sadd.s32 %s365, 1
    %p369 = scmp.eq.s32.totalorder %s37, 1
    %p370 = scmp.ne.s32.totalorder %s365, %s367
    %p371 = scmp.eq.s32.totalorder %s37, 0
    %p372 = por %p370, %p371
    %p373 = scmp.ne.s32.totalorder %s365, %s367
    %p374 = scmp.eq.s32.totalorder %s42, 1
    %p375 = por %p373, %p374
    %p376 = scmp.ne.s32.totalorder %s367, %s368
    %p377 = scmp.eq.s32.totalorder %s42, 0
    %p378 = por %p376, %p377
    %p379 = scmp.ne.s32.totalorder %s367, %s368
    %p380 = scmp.eq.s32.totalorder %s43, 1
    %p381 = por %p379, %p380
    %p383 = scmp.ne.s32.totalorder %s368, %s382
    %p384 = scmp.eq.s32.totalorder %s43, 0
    %p385 = por %p383, %p384
    %s387 = sadd.s32 %s386, 1
    %p390 = scmp.eq.s32.totalorder %s37, 1
    %p391 = scmp.ne.s32.totalorder %s386, %s388
    %p392 = scmp.eq.s32.totalorder %s37, 0
    %p393 = por %p391, %p392
    %p394 = scmp.ne.s32.totalorder %s386, %s388
    %p395 = scmp.eq.s32.totalorder %s42, 1
    %p396 = por %p394, %p395
    %p397 = scmp.ne.s32.totalorder %s388, %s389
    %p398 = scmp.eq.s32.totalorder %s42, 0
    %p399 = por %p397, %p398
    %p400 = scmp.ne.s32.totalorder %s388, %s389
    %p401 = scmp.eq.s32.totalorder %s43, 1
    %p402 = por %p400, %p401
    %p404 = scmp.ne.s32.totalorder %s389, %s403
    %p405 = scmp.eq.s32.totalorder %s43, 0
    %p406 = por %p404, %p405
    %s408 = sadd.s32 %s407, 1
    %p411 = scmp.eq.s32.totalorder %s37, 1
    %p412 = scmp.ne.s32.totalorder %s407, %s409
    %p413 = scmp.eq.s32.totalorder %s37, 0
    %p414 = por %p412, %p413
    %p415 = scmp.ne.s32.totalorder %s407, %s409
    %p416 = scmp.eq.s32.totalorder %s42, 1
    %p417 = por %p415, %p416
    %p418 = scmp.ne.s32.totalorder %s409, %s410
    %p419 = scmp.eq.s32.totalorder %s42, 0
    %p420 = por %p418, %p419
    %p421 = scmp.ne.s32.totalorder %s409, %s410
    %p422 = scmp.eq.s32.totalorder %s43, 1
    %p423 = por %p421, %p422
    %p425 = scmp.ne.s32.totalorder %s410, %s424
    %p426 = scmp.eq.s32.totalorder %s43, 0
    %p427 = por %p425, %p426
    %s429 = sadd.s32 %s428, 1
    %p432 = scmp.eq.s32.totalorder %s37, 1
    %p433 = scmp.ne.s32.totalorder %s428, %s430
    %p434 = scmp.eq.s32.totalorder %s37, 0
    %p435 = por %p433, %p434
    %p436 = scmp.ne.s32.totalorder %s428, %s430
    %p437 = scmp.eq.s32.totalorder %s42, 1
    %p438 = por %p436, %p437
    %p439 = scmp.ne.s32.totalorder %s430, %s431
    %p440 = scmp.eq.s32.totalorder %s42, 0
    %p441 = por %p439, %p440
    %p442 = scmp.ne.s32.totalorder %s430, %s431
    %p443 = scmp.eq.s32.totalorder %s43, 1
    %p444 = por %p442, %p443
    %p446 = scmp.ne.s32.totalorder %s431, %s445
    %p447 = scmp.eq.s32.totalorder %s43, 0
    %p448 = por %p446, %p447
    %s450 = sadd.s32 %s449, 1
    %p453 = scmp.eq.s32.totalorder %s37, 1
    %p454 = scmp.ne.s32.totalorder %s449, %s451
    %p455 = scmp.eq.s32.totalorder %s37, 0
    %p456 = por %p454, %p455
    %p457 = scmp.ne.s32.totalorder %s449, %s451
    %p458 = scmp.eq.s32.totalorder %s42, 1
    %p459 = por %p457, %p458
    %p460 = scmp.ne.s32.totalorder %s451, %s452
    %p461 = scmp.eq.s32.totalorder %s42, 0
    %p462 = por %p460, %p461
    %p463 = scmp.ne.s32.totalorder %s451, %s452
    %p464 = scmp.eq.s32.totalorder %s43, 1
    %p465 = por %p463, %p464
    %p467 = scmp.ne.s32.totalorder %s452, %s466
    %p468 = scmp.eq.s32.totalorder %s43, 0
    %p469 = por %p467, %p468
    %s471 = sadd.s32 %s470, 1
    %p474 = scmp.eq.s32.totalorder %s37, 1
    %p475 = scmp.ne.s32.totalorder %s470, %s472
    %p476 = scmp.eq.s32.totalorder %s37, 0
    %p477 = por %p475, %p476
    %p478 = scmp.ne.s32.totalorder %s470, %s472
    %p479 = scmp.eq.s32.totalorder %s42, 1
    %p480 = por %p478, %p479
    %p481 = scmp.ne.s32.totalorder %s472, %s473
    %p482 = scmp.eq.s32.totalorder %s42, 0
    %p483 = por %p481, %p482
    %p484 = scmp.ne.s32.totalorder %s472, %s473
    %p485 = scmp.eq.s32.totalorder %s43, 1
    %p486 = por %p484, %p485
    %p488 = scmp.ne.s32.totalorder %s473, %s487
    %p489 = scmp.eq.s32.totalorder %s43, 0
    %p490 = por %p488, %p489
    %s492 = sadd.s32 %s491, 1
    %p495 = scmp.eq.s32.totalorder %s37, 1
    %p496 = scmp.ne.s32.totalorder %s491, %s493
    %p497 = scmp.eq.s32.totalorder %s37, 0
    %p498 = por %p496, %p497
    %p499 = scmp.ne.s32.totalorder %s491, %s493
    %p500 = scmp.eq.s32.totalorder %s42, 1
    %p501 = por %p499, %p500
    %p502 = scmp.ne.s32.totalorder %s493, %s494
    %p503 = scmp.eq.s32.totalorder %s42, 0
    %p504 = por %p502, %p503
    %p505 = scmp.ne.s32.totalorder %s493, %s494
    %p506 = scmp.eq.s32.totalorder %s43, 1
    %p507 = por %p505, %p506
    %p509 = scmp.ne.s32.totalorder %s494, %s508
    %p510 = scmp.eq.s32.totalorder %s43, 0
    %p511 = por %p509, %p510
    %s512 = ssub.s32 %s37, %s44
    %p513 = scmp.eq.s32.totalorder %s512, 0
    %s515 = sadd.s32 %s514, 1
    %s516 = scalar_select %p513, %s514, %s515
    %p519 = pneg %p513
    %p520 = scmp.eq.s32.totalorder %s37, 1
    %p521 = por %p519, %p520
    %p522 = scmp.ne.s32.totalorder %s514, %s517
    %p523 = scmp.eq.s32.totalorder %s37, 0
    %p524 = por %p522, %p523
    %p525 = scmp.ne.s32.totalorder %s514, %s517
    %p526 = scmp.eq.s32.totalorder %s42, 1
    %p527 = por %p525, %p526
    %p528 = scmp.ne.s32.totalorder %s517, %s518
    %p529 = scmp.eq.s32.totalorder %s42, 0
    %p530 = por %p528, %p529
    %p531 = scmp.ne.s32.totalorder %s517, %s518
    %p532 = scmp.eq.s32.totalorder %s43, 1
    %p533 = por %p531, %p532
    %p535 = scmp.ne.s32.totalorder %s518, %s534
    %p536 = scmp.eq.s32.totalorder %s43, 0
    %p537 = por %p535, %p536
    %p538 = scmp.le.s32.totalorder 1, %s37
    %p539 = scmp.lt.s32.totalorder %s37, 3
    %p540 = pnand %p538, %p539
    %p541 = pneg %p540
    // Predicated region
    $region9: #{gen_network_forward.1} parent=5 // pred_check
      _
    $region10: #{gen_network_forward.1} parent=5 // pred_check_branch
      %543 = sbr.rel (%p540) target = $region12
    $region11: #{gen_network_forward.1} parent=5 // pred_region
      %s544 = ssub.s32 %s37, 1
      // Predicated region
      $region13: #{gen_network_forward.1} parent=11 // pred_check
        %p545 = pneg %p84
      $region14: #{gen_network_forward.1} parent=11 // pred_check_branch
        %547 = sbr.rel (%p545) target = $region16
      $region15: #{gen_network_forward.1} parent=11 // pred_region
        _
      $region16: #{gen_network_forward.1} parent=11 // pred_fallthru
        _
      // Predicated region
      $region17: #{gen_network_forward.1} parent=11 // pred_check
        %p548 = pneg %p105
      $region18: #{gen_network_forward.1} parent=11 // pred_check_branch
        %550 = sbr.rel (%p548) target = $region20
      $region19: #{gen_network_forward.1} parent=11 // pred_region
        _
      $region20: #{gen_network_forward.1} parent=11 // pred_fallthru
        _
      // Predicated region
      $region21: #{gen_network_forward.1} parent=11 // pred_check
        %p551 = pneg %p126
      $region22: #{gen_network_forward.1} parent=11 // pred_check_branch
        %553 = sbr.rel (%p551) target = $region24
      $region23: #{gen_network_forward.1} parent=11 // pred_region
        _
      $region24: #{gen_network_forward.1} parent=11 // pred_fallthru
        _
      // Predicated region
      $region25: #{gen_network_forward.1} parent=11 // pred_check
        %p554 = pneg %p147
      $region26: #{gen_network_forward.1} parent=11 // pred_check_branch
        %556 = sbr.rel (%p554) target = $region28
      $region27: #{gen_network_forward.1} parent=11 // pred_region
        _
      $region28: #{gen_network_forward.1} parent=11 // pred_fallthru
        _
      // Predicated region
      $region29: #{gen_network_forward.1} parent=11 // pred_check
        %p557 = pneg %p168
      $region30: #{gen_network_forward.1} parent=11 // pred_check_branch
        %559 = sbr.rel (%p557) target = $region32
      $region31: #{gen_network_forward.1} parent=11 // pred_region
        _
      $region32: #{gen_network_forward.1} parent=11 // pred_fallthru
        _
      // Predicated region
      $region33: #{gen_network_forward.1} parent=11 // pred_check
        %p560 = pneg %p189
      $region34: #{gen_network_forward.1} parent=11 // pred_check_branch
        %562 = sbr.rel (%p560) target = $region36
      $region35: #{gen_network_forward.1} parent=11 // pred_region
        _
      $region36: #{gen_network_forward.1} parent=11 // pred_fallthru
        _
      // Predicated region
      $region37: #{gen_network_forward.1} parent=11 // pred_check
        %p563 = pneg %p210
      $region38: #{gen_network_forward.1} parent=11 // pred_check_branch
        %565 = sbr.rel (%p563) target = $region40
      $region39: #{gen_network_forward.1} parent=11 // pred_region
        _
      $region40: #{gen_network_forward.1} parent=11 // pred_fallthru
        _
      // Predicated region
      $region41: #{gen_network_forward.1} parent=11 // pred_check
        %p566 = pneg %p231
      $region42: #{gen_network_forward.1} parent=11 // pred_check_branch
        %568 = sbr.rel (%p566) target = $region44
      $region43: #{gen_network_forward.1} parent=11 // pred_region
        _
      $region44: #{gen_network_forward.1} parent=11 // pred_fallthru
        _
      // Predicated region
      $region45: #{gen_network_forward.1} parent=11 // pred_check
        %p569 = pneg %p252
      $region46: #{gen_network_forward.1} parent=11 // pred_check_branch
        %571 = sbr.rel (%p569) target = $region48
      $region47: #{gen_network_forward.1} parent=11 // pred_region
        _
      $region48: #{gen_network_forward.1} parent=11 // pred_fallthru
        _
      // Predicated region
      $region49: #{gen_network_forward.1} parent=11 // pred_check
        %p572 = pneg %p273
      $region50: #{gen_network_forward.1} parent=11 // pred_check_branch
        %574 = sbr.rel (%p572) target = $region52
      $region51: #{gen_network_forward.1} parent=11 // pred_region
        _
      $region52: #{gen_network_forward.1} parent=11 // pred_fallthru
        _
      // Predicated region
      $region53: #{gen_network_forward.1} parent=11 // pred_check
        %p575 = pneg %p294
      $region54: #{gen_network_forward.1} parent=11 // pred_check_branch
        %577 = sbr.rel (%p575) target = $region56
      $region55: #{gen_network_forward.1} parent=11 // pred_region
        _
      $region56: #{gen_network_forward.1} parent=11 // pred_fallthru
        _
      // Predicated region
      $region57: #{gen_network_forward.1} parent=11 // pred_check
        %p578 = pneg %p315
      $region58: #{gen_network_forward.1} parent=11 // pred_check_branch
        %580 = sbr.rel (%p578) target = $region60
      $region59: #{gen_network_forward.1} parent=11 // pred_region
        _
      $region60: #{gen_network_forward.1} parent=11 // pred_fallthru
        _
      // Predicated region
      $region61: #{gen_network_forward.1} parent=11 // pred_check
        %p581 = pneg %p336
      $region62: #{gen_network_forward.1} parent=11 // pred_check_branch
        %583 = sbr.rel (%p581) target = $region64
      $region63: #{gen_network_forward.1} parent=11 // pred_region
        _
      $region64: #{gen_network_forward.1} parent=11 // pred_fallthru
        _
      // Predicated region
      $region65: #{gen_network_forward.1} parent=11 // pred_check
        %p584 = pneg %p357
      $region66: #{gen_network_forward.1} parent=11 // pred_check_branch
        %586 = sbr.rel (%p584) target = $region68
      $region67: #{gen_network_forward.1} parent=11 // pred_region
        _
      $region68: #{gen_network_forward.1} parent=11 // pred_fallthru
        _
      // Predicated region
      $region69: #{gen_network_forward.1} parent=11 // pred_check
        %p587 = pneg %p378
      $region70: #{gen_network_forward.1} parent=11 // pred_check_branch
        %589 = sbr.rel (%p587) target = $region72
      $region71: #{gen_network_forward.1} parent=11 // pred_region
        _
      $region72: #{gen_network_forward.1} parent=11 // pred_fallthru
        _
      // Predicated region
      $region73: #{gen_network_forward.1} parent=11 // pred_check
        %p590 = pneg %p399
      $region74: #{gen_network_forward.1} parent=11 // pred_check_branch
        %592 = sbr.rel (%p590) target = $region76
      $region75: #{gen_network_forward.1} parent=11 // pred_region
        _
      $region76: #{gen_network_forward.1} parent=11 // pred_fallthru
        _
      // Predicated region
      $region77: #{gen_network_forward.1} parent=11 // pred_check
        %p593 = pneg %p420
      $region78: #{gen_network_forward.1} parent=11 // pred_check_branch
        %595 = sbr.rel (%p593) target = $region80
      $region79: #{gen_network_forward.1} parent=11 // pred_region
        _
      $region80: #{gen_network_forward.1} parent=11 // pred_fallthru
        _
      // Predicated region
      $region81: #{gen_network_forward.1} parent=11 // pred_check
        %p596 = pneg %p441
      $region82: #{gen_network_forward.1} parent=11 // pred_check_branch
        %598 = sbr.rel (%p596) target = $region84
      $region83: #{gen_network_forward.1} parent=11 // pred_region
        _
      $region84: #{gen_network_forward.1} parent=11 // pred_fallthru
        _
      // Predicated region
      $region85: #{gen_network_forward.1} parent=11 // pred_check
        %p599 = pneg %p462
      $region86: #{gen_network_forward.1} parent=11 // pred_check_branch
        %601 = sbr.rel (%p599) target = $region88
      $region87: #{gen_network_forward.1} parent=11 // pred_region
        _
      $region88: #{gen_network_forward.1} parent=11 // pred_fallthru
        _
      // Predicated region
      $region89: #{gen_network_forward.1} parent=11 // pred_check
        %p602 = pneg %p483
      $region90: #{gen_network_forward.1} parent=11 // pred_check_branch
        %604 = sbr.rel (%p602) target = $region92
      $region91: #{gen_network_forward.1} parent=11 // pred_region
        _
      $region92: #{gen_network_forward.1} parent=11 // pred_fallthru
        _
      // Predicated region
      $region93: #{gen_network_forward.1} parent=11 // pred_check
        %p605 = pneg %p504
      $region94: #{gen_network_forward.1} parent=11 // pred_check_branch
        %607 = sbr.rel (%p605) target = $region96
      $region95: #{gen_network_forward.1} parent=11 // pred_region
        _
      $region96: #{gen_network_forward.1} parent=11 // pred_fallthru
        _
    $region12: #{gen_network_forward.1} parent=5 // pred_fallthru
      _
    %p608 = scmp.lt.s32.totalorder %s37, 2
    // Predicated region
    $region97: #{gen_network_forward.1} parent=5 // pred_check
      %p609 = pneg %p608
    $region98: #{gen_network_forward.1} parent=5 // pred_check_branch
      %611 = sbr.rel (%p609) target = $region100
    $region99: #{gen_network_forward.1} parent=5 // pred_region
      // Predicated region
      $region101: #{gen_network_forward.1} parent=99 // pred_check
        %p612 = pneg %p57
      $region102: #{gen_network_forward.1} parent=99 // pred_check_branch
        %614 = sbr.rel (%p612) target = $region104
      $region103: #{gen_network_forward.1} parent=99 // pred_region
        %p615 = scmp.lt.s32.totalorder %s37, 1
        %s616 = scalar_select %p615, %s37, 1
        %s617 = smul.addr %s616, 8
        %s618 = scalar_lea.vmem %s1, %s617
      $region104: #{gen_network_forward.1} parent=99 // pred_fallthru
        _
    $region100: #{gen_network_forward.1} parent=5 // pred_fallthru
      _
    %p619 = scmp.le.s32.totalorder 1, %s37
    %p620 = scmp.lt.s32.totalorder %s37, 3
    %p621 = pnand %p619, %p620
    %p622 = pneg %p621
    // Predicated region
    $region105: #{gen_network_forward.1} parent=5 // pred_check
      _
    $region106: #{gen_network_forward.1} parent=5 // pred_check_branch
      %624 = sbr.rel (%p621) target = $region108
    $region107: #{gen_network_forward.1} parent=5 // pred_region
      %s625 = ssub.s32 %s37, 1
      %p626 = scmp.lt.s32.totalorder %s42, 1
      %s627 = scalar_select %p626, %s42, 1
      %s628 = smul.addr %s627, 8
      %s629 = scalar_lea.vmem %s1, %s628
      %p630 = pneg %p63
      %p631 = pneg %p60
      %p632 = pneg %p84
      %p633 = pneg %p81
      %p634 = pneg %p105
      %p635 = pneg %p102
      %p636 = pneg %p126
      %p637 = pneg %p123
      %p638 = pneg %p147
      %p639 = pneg %p144
      %p640 = pneg %p168
      %p641 = pneg %p165
      %p642 = pneg %p189
      %p643 = pneg %p186
      %p644 = pneg %p210
      %p645 = pneg %p207
      %p646 = pneg %p231
      %p647 = pneg %p228
      %p648 = pneg %p252
      %p649 = pneg %p249
      %p650 = pneg %p273
      %p651 = pneg %p270
      %p652 = pneg %p294
      %p653 = pneg %p291
      %p654 = pneg %p315
      %p655 = pneg %p312
      %p656 = pneg %p336
      %p657 = pneg %p333
      %p658 = pneg %p357
      %p659 = pneg %p354
      %p660 = pneg %p378
      %p661 = pneg %p375
      %p662 = pneg %p399
      %p663 = pneg %p396
      %p664 = pneg %p420
      %p665 = pneg %p417
      %p666 = pneg %p441
      %p667 = pneg %p438
      %p668 = pneg %p462
      %p669 = pneg %p459
      %p670 = pneg %p483
      %p671 = pneg %p480
      %p672 = pneg %p504
      %p673 = pneg %p501
      %p674 = pneg %p530
      %p675 = pneg %p527
      %p676 = scmp.lt.s32.totalorder %s42, 1
      %s677 = scalar_select %p676, %s42, 1
      %s678 = scalar_lea.vmem %s23, %s677
      %p679 = scmp.lt.s32.totalorder %s42, 1
      %s680 = scalar_select %p679, %s42, 1
      %s681 = smul.addr %s680, 8
      %s682 = scalar_lea.vmem %s1, %s681
      %p683 = scmp.lt.s32.totalorder %s42, 1
      %s684 = scalar_select %p683, %s42, 1
      %s685 = scalar_lea.vmem %s23, %s684
      %s686 = sld [smem:[#allocation3 + %s42]]
      %v687 = vld [vmem:[%s682] sm:$0xff]
      %v688 = vlaneseq
      %v689 = vand.u32 %v688, 127
      %690 = vset.pattern.permute.xlu0 0
      %691 = vperm.xlu0 %690, %v687
      %v692 = vpop.permute.xlu0 %691
      %vm693 = vcmp.eq.s32.totalorder %v689, %v692
      %v694 = vsel %vm693, 1, 0
      %v695 = vcvt.s32.f32 %v694
      %v696 = vld [vmem:[%s2] sm:$0xff]
      %v697 = vld [vmem:[%s2 + $0x8] sm:$0xff]
      %v698 = vld [vmem:[%s2 + $0x10] sm:$0xff]
      %v699 = vld [vmem:[%s2 + $0x18] sm:$0xff]
      %v700 = vld [vmem:[%s2 + $0x20] sm:$0xff]
      %v701 = vld [vmem:[%s2 + $0x28] sm:$0xff]
      %v702 = vld [vmem:[%s2 + $0x30] sm:$0xff]
      %v703 = vld [vmem:[%s2 + $0x38] sm:$0xff]
      %v704 = vld [vmem:[%s4] sm:$0xff]
      %vm705 = vcmask 523264
      %v707 = vsel %vm705, %v695, 0
      %709 = vmatpush.msra.mxu0 0.0
      %710 = vmatpush.msra.mxu0 0.0
      %711 = vmatpush.msra.mxu0 0.0
      %712 = vmatpush.msra.mxu0 0.0
      %713 = vmatpush.msra.mxu0 0.0
      %714 = vmatpush.msra.mxu0 0.0
      %715 = vmatpush.msra.mxu0 0.0
      %716 = vmatpush.msra.mxu0 0.0
      %717 = vmatpush.msra.mxu0 %v703
      %718 = vmatpush.msra.mxu0 %v702
      %719 = vmatpush.msra.mxu0 %v701
      %720 = vmatpush.msra.mxu0 %v700
      %721 = vmatpush.msra.mxu0 %v699
      %722 = vmatpush.msra.mxu0 %v698
      %723 = vmatpush.msra.mxu0 %v697
      %724 = vmatpush.msra.mxu0 %v696
      %725 = vmatmul.f32.gmra.mxu0 %v707
      %v726 = vpop.f32.mrf.mxu0
      %v727 = vadd.f32 %v704, %v726
      %728 = vdwg.mxu0
      %v729 = vlaneseq
      %v730 = vshrl.u32 %v729, 7
      %vm731 = vcmp.ge.s32.totalorder %v730, %v689
      %v732 = vstv %s686
      %vm733 = vcmp.lt.s32.totalorder %v689, %v732
      %vm734 = vmand %vm731, %vm733
      %v735 = vsel %vm734, 0.0, -1e+09
      %v736 = vld [vmem:[%s5] sm:$0x1]
      %v737 = vld [vmem:[%s6] sm:$0x1]
      %vm738 = vcmask 261120
      %v739 = vsel %vm738, %v727, 0.0
      %740 = vadd.xlane.f32.xlu0 %v739
      %v741 = vpop.xlane.xlu0 %740
      %v742 = vrcp.pop 32.0
      %v743 = vmul.f32 32.0, %v742
      %v744 = vsub.f32 1.0, %v743
      %v745 = vmul.f32 %v742, %v744
      %v746 = vadd.f32 %v742, %v745
      %vm747 = vweird.f32 %v742
      %v748 = vsel %vm747, %v742, %v746
      %v749 = vmul.f32 %v741, %v748
      %v750 = vsub.f32 %v727, %v749
      %v751 = vmul.f32 %v750, %v750
      %v752 = vsel %vm738, %v751, 0.0
      %753 = vadd.xlane.f32.xlu0 %v752
      %v754 = vpop.xlane.xlu0 %753
      %v755 = vmul.f32 %v754, %v748
      %v756 = vadd.f32 %v755, 1e-05
      %v757 = vrsqrt.pop %v756
      %v758 = vmul.f32 %v757, %v756
      %v759 = vmul.f32 %v758, %v757
      %v760 = vmul.f32 0.5, %v759
      %v761 = vsub.f32 1.5, %v760
      %v762 = vmul.f32 %v757, %v761
      %vm763 = vweird.f32 %v756
      %vm764 = vweird.f32 %v757
      %vm765 = vmor %vm763, %vm764
      %v766 = vsel %vm765, %v757, %v762
      %v767 = vmul.f32 %v750, %v766
      %v769 = vperm.slane %v736, 0
      %v771 = vmul.f32 %v767, %v769
      %v773 = vperm.slane %v737, 0
      %v775 = vadd.f32 %v771, %v773
      %v776 = vld [vmem:[%s14] sm:$0x1]
      %v778 = vperm.slane %v776, 0
      %v780 = vadd.f32 %v727, %v778
      %v781 = vld [vmem:[%s7] sm:$0xff]
      %v782 = vld [vmem:[%s7 + $0x8] sm:$0xff]
      %v783 = vld [vmem:[%s7 + $0x10] sm:$0xff]
      %v784 = vld [vmem:[%s7 + $0x18] sm:$0xff]
      %v785 = vld [vmem:[%s10] sm:$0x1]
      %v787 = vperm.slane %v785, 0
      %v790 = vsel %vm738, %v775, 0
      %792 = vmatpush.msra.mxu0 0.0
      %793 = vmatpush.msra.mxu0 0.0
      %794 = vmatpush.msra.mxu0 0.0
      %795 = vmatpush.msra.mxu0 0.0
      %796 = vmatpush.msra.mxu0 0.0
      %797 = vmatpush.msra.mxu0 0.0
      %798 = vmatpush.msra.mxu0 0.0
      %799 = vmatpush.msra.mxu0 0.0
      %800 = vmatpush.msra.mxu0 0.0
      %801 = vmatpush.msra.mxu0 0.0
      %802 = vmatpush.msra.mxu0 0.0
      %803 = vmatpush.msra.mxu0 0.0
      %804 = vmatpush.msra.mxu0 %v784
      %805 = vmatpush.msra.mxu0 %v783
      %806 = vmatpush.msra.mxu0 %v782
      %807 = vmatpush.msra.mxu0 %v781
      %808 = vmatmul.f32.gmra.mxu0 %v790
      %v809 = vpop.f32.mrf.mxu0
      %v810 = vadd.f32 %v787, %v809
      %811 = vdwg.mxu0
      %v812 = vld [vmem:[%s8] sm:$0xff]
      %v813 = vld [vmem:[%s8 + $0x8] sm:$0xff]
      %v814 = vld [vmem:[%s8 + $0x10] sm:$0xff]
      %v815 = vld [vmem:[%s8 + $0x18] sm:$0xff]
      %v816 = vld [vmem:[%s11] sm:$0x1]
      %v818 = vperm.slane %v816, 0
      %820 = vmatpush.msra.mxu0 0.0
      %821 = vmatpush.msra.mxu0 0.0
      %822 = vmatpush.msra.mxu0 0.0
      %823 = vmatpush.msra.mxu0 0.0
      %824 = vmatpush.msra.mxu0 0.0
      %825 = vmatpush.msra.mxu0 0.0
      %826 = vmatpush.msra.mxu0 0.0
      %827 = vmatpush.msra.mxu0 0.0
      %828 = vmatpush.msra.mxu0 0.0
      %829 = vmatpush.msra.mxu0 0.0
      %830 = vmatpush.msra.mxu0 0.0
      %831 = vmatpush.msra.mxu0 0.0
      %832 = vmatpush.msra.mxu0 %v815
      %833 = vmatpush.msra.mxu0 %v814
      %834 = vmatpush.msra.mxu0 %v813
      %835 = vmatpush.msra.mxu0 %v812
      %836 = vmatmul.f32.gmra.mxu0 %v790
      %v837 = vpop.f32.mrf.mxu0
      %v838 = vadd.f32 %v818, %v837
      %839 = vdwg.mxu0
      %v840 = vld [vmem:[%s9] sm:$0xff]
      %v841 = vld [vmem:[%s9 + $0x8] sm:$0xff]
      %v842 = vld [vmem:[%s9 + $0x10] sm:$0xff]
      %v843 = vld [vmem:[%s9 + $0x18] sm:$0xff]
      %v844 = vld [vmem:[%s12] sm:$0x1]
      %v846 = vperm.slane %v844, 0
      %848 = vmatpush.msra.mxu0 0.0
      %849 = vmatpush.msra.mxu0 0.0
      %850 = vmatpush.msra.mxu0 0.0
      %851 = vmatpush.msra.mxu0 0.0
      %852 = vmatpush.msra.mxu0 0.0
      %853 = vmatpush.msra.mxu0 0.0
      %854 = vmatpush.msra.mxu0 0.0
      %855 = vmatpush.msra.mxu0 0.0
      %856 = vmatpush.msra.mxu0 0.0
      %857 = vmatpush.msra.mxu0 0.0
      %858 = vmatpush.msra.mxu0 0.0
      %859 = vmatpush.msra.mxu0 0.0
      %860 = vmatpush.msra.mxu0 %v843
      %861 = vmatpush.msra.mxu0 %v842
      %862 = vmatpush.msra.mxu0 %v841
      %863 = vmatpush.msra.mxu0 %v840
      %864 = vmatmul.f32.gmra.mxu0 %v790
      %v865 = vpop.f32.mrf.mxu0
      %v866 = vadd.f32 %v846, %v865
      %867 = vdwg.mxu0
      %vm868 = vcmask 130048
      %v870 = vsel %vm868, %v810, 0
      %v873 = vsel %vm868, %v838, 0
      %875 = vmatpush.xpose.msra.mxu0 0.0
      %876 = vmatpush.xpose.msra.mxu0 0.0
      %877 = vmatpush.xpose.msra.mxu0 0.0
      %878 = vmatpush.xpose.msra.mxu0 0.0
      %879 = vmatpush.xpose.msra.mxu0 0.0
      %880 = vmatpush.xpose.msra.mxu0 0.0
      %881 = vmatpush.xpose.msra.mxu0 0.0
      %882 = vmatpush.xpose.msra.mxu0 0.0
      %883 = vmatpush.xpose.msra.mxu0 0.0
      %884 = vmatpush.xpose.msra.mxu0 0.0
      %885 = vmatpush.xpose.msra.mxu0 0.0
      %886 = vmatpush.xpose.msra.mxu0 0.0
      %887 = vmatpush.xpose.msra.mxu0 0.0
      %888 = vmatpush.xpose.msra.mxu0 0.0
      %889 = vmatpush.xpose.msra.mxu0 0.0
      %890 = vmatpush.xpose.msra.mxu0 %v873
      %891 = vmatmul.f32.gmra.mxu0 %v870
      %v892 = vpop.f32.mrf.mxu0
      %v893 = vadd.f32 0.0, %v892
      %894 = vdwg.mxu0
      %v895 = vmul.f32 %v893, 0.25
      %v896 = vadd.f32 %v895, %v735
      %vm897 = vcmask 64512
      %v898 = vsel %vm897, %v896, -inf
      %899 = vmax.xlane.f32.xlu0 %v898
      %v900 = vpop.xlane.xlu0 %899
      %v901 = vsub.f32 %v896, %v900
      %v902 = vmul.f32 %v901, 1.442695
      %v903 = vpow.pop %v902
      %v904 = vsel %vm897, %v903, 0.0
      %905 = vadd.xlane.f32.xlu0 %v904
      %v906 = vpop.xlane.xlu0 %905
      %v907 = vrcp.pop %v906
      %v908 = vmul.f32 %v903, %v907
      %v910 = vsel %vm897, %v908, 0
      %912 = vmatpush.msra.mxu0 0.0
      %913 = vmatpush.msra.mxu0 0.0
      %914 = vmatpush.msra.mxu0 0.0
      %915 = vmatpush.msra.mxu0 0.0
      %916 = vmatpush.msra.mxu0 0.0
      %917 = vmatpush.msra.mxu0 0.0
      %918 = vmatpush.msra.mxu0 0.0
      %919 = vmatpush.msra.mxu0 0.0
      %920 = vmatpush.msra.mxu0 0.0
      %921 = vmatpush.msra.mxu0 0.0
      %922 = vmatpush.msra.mxu0 0.0
      %923 = vmatpush.msra.mxu0 0.0
      %924 = vmatpush.msra.mxu0 0.0
      %925 = vmatpush.msra.mxu0 0.0
      %926 = vmatpush.msra.mxu0 0.0
      %927 = vmatpush.msra.mxu0 %v866
      %928 = vmatmul.f32.gmra.mxu0 %v910
      %v929 = vpop.f32.mrf.mxu0
      %v930 = vadd.f32 0.0, %v929
      %931 = vdwg.mxu0
      %v932 = vld [vmem:[%s13] sm:$0xff]
      %v933 = vld [vmem:[%s13 + $0x8] sm:$0xff]
      %v935 = vsel %vm868, %v930, 0
      %937 = vmatpush.msra.mxu0 0.0
      %938 = vmatpush.msra.mxu0 0.0
      %939 = vmatpush.msra.mxu0 0.0
      %940 = vmatpush.msra.mxu0 0.0
      %941 = vmatpush.msra.mxu0 0.0
      %942 = vmatpush.msra.mxu0 0.0
      %943 = vmatpush.msra.mxu0 0.0
      %944 = vmatpush.msra.mxu0 0.0
      %945 = vmatpush.msra.mxu0 0.0
      %946 = vmatpush.msra.mxu0 0.0
      %947 = vmatpush.msra.mxu0 0.0
      %948 = vmatpush.msra.mxu0 0.0
      %949 = vmatpush.msra.mxu0 0.0
      %950 = vmatpush.msra.mxu0 0.0
      %951 = vmatpush.msra.mxu0 %v933
      %952 = vmatpush.msra.mxu0 %v932
      %953 = vmatmul.f32.gmra.mxu0 %v935
      %v954 = vpop.f32.mrf.mxu0
      %v955 = vadd.f32 0.0, %v954
      %956 = vdwg.mxu0
      %v957 = vadd.f32 %v780, %v955
      %s958 = scalar_lea.vmem %s7, 32
      %v959 = vld [vmem:[%s958] sm:$0xff]
      %v960 = vld [vmem:[%s958 + $0x8] sm:$0xff]
      %v961 = vld [vmem:[%s958 + $0x10] sm:$0xff]
      %v962 = vld [vmem:[%s958 + $0x18] sm:$0xff]
      %s963 = scalar_lea.vmem %s10, 1
      %v964 = vld [vmem:[%s963] sm:$0x1]
      %v966 = vperm.slane %v964, 0
      %968 = vmatpush.msra.mxu0 0.0
      %969 = vmatpush.msra.mxu0 0.0
      %970 = vmatpush.msra.mxu0 0.0
      %971 = vmatpush.msra.mxu0 0.0
      %972 = vmatpush.msra.mxu0 0.0
      %973 = vmatpush.msra.mxu0 0.0
      %974 = vmatpush.msra.mxu0 0.0
      %975 = vmatpush.msra.mxu0 0.0
      %976 = vmatpush.msra.mxu0 0.0
      %977 = vmatpush.msra.mxu0 0.0
      %978 = vmatpush.msra.mxu0 0.0
      %979 = vmatpush.msra.mxu0 0.0
      %980 = vmatpush.msra.mxu0 %v962
      %981 = vmatpush.msra.mxu0 %v961
      %982 = vmatpush.msra.mxu0 %v960
      %983 = vmatpush.msra.mxu0 %v959
      %984 = vmatmul.f32.gmra.mxu0 %v790
      %v985 = vpop.f32.mrf.mxu0
      %v986 = vadd.f32 %v966, %v985
      %987 = vdwg.mxu0
      %s988 = scalar_lea.vmem %s8, 32
      %v989 = vld [vmem:[%s988] sm:$0xff]
      %v990 = vld [vmem:[%s988 + $0x8] sm:$0xff]
      %v991 = vld [vmem:[%s988 + $0x10] sm:$0xff]
      %v992 = vld [vmem:[%s988 + $0x18] sm:$0xff]
      %s993 = scalar_lea.vmem %s11, 1
      %v994 = vld [vmem:[%s993] sm:$0x1]
      %v996 = vperm.slane %v994, 0
      %998 = vmatpush.msra.mxu0 0.0
      %999 = vmatpush.msra.mxu0 0.0
      %1000 = vmatpush.msra.mxu0 0.0
      %1001 = vmatpush.msra.mxu0 0.0
      %1002 = vmatpush.msra.mxu0 0.0
      %1003 = vmatpush.msra.mxu0 0.0
      %1004 = vmatpush.msra.mxu0 0.0
      %1005 = vmatpush.msra.mxu0 0.0
      %1006 = vmatpush.msra.mxu0 0.0
      %1007 = vmatpush.msra.mxu0 0.0
      %1008 = vmatpush.msra.mxu0 0.0
      %1009 = vmatpush.msra.mxu0 0.0
      %1010 = vmatpush.msra.mxu0 %v992
      %1011 = vmatpush.msra.mxu0 %v991
      %1012 = vmatpush.msra.mxu0 %v990
      %1013 = vmatpush.msra.mxu0 %v989
      %1014 = vmatmul.f32.gmra.mxu0 %v790
      %v1015 = vpop.f32.mrf.mxu0
      %v1016 = vadd.f32 %v996, %v1015
      %1017 = vdwg.mxu0
      %s1018 = scalar_lea.vmem %s9, 32
      %v1019 = vld [vmem:[%s1018] sm:$0xff]
      %v1020 = vld [vmem:[%s1018 + $0x8] sm:$0xff]
      %v1021 = vld [vmem:[%s1018 + $0x10] sm:$0xff]
      %v1022 = vld [vmem:[%s1018 + $0x18] sm:$0xff]
      %s1023 = scalar_lea.vmem %s12, 1
      %v1024 = vld [vmem:[%s1023] sm:$0x1]
      %v1026 = vperm.slane %v1024, 0
      %1028 = vmatpush.msra.mxu0 0.0
      %1029 = vmatpush.msra.mxu0 0.0
      %1030 = vmatpush.msra.mxu0 0.0
      %1031 = vmatpush.msra.mxu0 0.0
      %1032 = vmatpush.msra.mxu0 0.0
      %1033 = vmatpush.msra.mxu0 0.0
      %1034 = vmatpush.msra.mxu0 0.0
      %1035 = vmatpush.msra.mxu0 0.0
      %1036 = vmatpush.msra.mxu0 0.0
      %1037 = vmatpush.msra.mxu0 0.0
      %1038 = vmatpush.msra.mxu0 0.0
      %1039 = vmatpush.msra.mxu0 0.0
      %1040 = vmatpush.msra.mxu0 %v1022
      %1041 = vmatpush.msra.mxu0 %v1021
      %1042 = vmatpush.msra.mxu0 %v1020
      %1043 = vmatpush.msra.mxu0 %v1019
      %1044 = vmatmul.f32.gmra.mxu0 %v790
      %v1045 = vpop.f32.mrf.mxu0
      %v1046 = vadd.f32 %v1026, %v1045
      %1047 = vdwg.mxu0
      %v1049 = vsel %vm868, %v986, 0
      %v1052 = vsel %vm868, %v1016, 0
      %1054 = vmatpush.xpose.msra.mxu0 0.0
      %1055 = vmatpush.xpose.msra.mxu0 0.0
      %1056 = vmatpush.xpose.msra.mxu0 0.0
      %1057 = vmatpush.xpose.msra.mxu0 0.0
      %1058 = vmatpush.xpose.msra.mxu0 0.0
      %1059 = vmatpush.xpose.msra.mxu0 0.0
      %1060 = vmatpush.xpose.msra.mxu0 0.0
      %1061 = vmatpush.xpose.msra.mxu0 0.0
      %1062 = vmatpush.xpose.msra.mxu0 0.0
      %1063 = vmatpush.xpose.msra.mxu0 0.0
      %1064 = vmatpush.xpose.msra.mxu0 0.0
      %1065 = vmatpush.xpose.msra.mxu0 0.0
      %1066 = vmatpush.xpose.msra.mxu0 0.0
      %1067 = vmatpush.xpose.msra.mxu0 0.0
      %1068 = vmatpush.xpose.msra.mxu0 0.0
      %1069 = vmatpush.xpose.msra.mxu0 %v1052
      %1070 = vmatmul.f32.gmra.mxu0 %v1049
      %v1071 = vpop.f32.mrf.mxu0
      %v1072 = vadd.f32 0.0, %v1071
      %1073 = vdwg.mxu0
      %v1074 = vmul.f32 %v1072, 0.25
      %v1075 = vadd.f32 %v1074, %v735
      %v1076 = vsel %vm897, %v1075, -inf
      %1077 = vmax.xlane.f32.xlu0 %v1076
      %v1078 = vpop.xlane.xlu0 %1077
      %v1079 = vsub.f32 %v1075, %v1078
      %v1080 = vmul.f32 %v1079, 1.442695
      %v1081 = vpow.pop %v1080
      %v1082 = vsel %vm897, %v1081, 0.0
      %1083 = vadd.xlane.f32.xlu0 %v1082
      %v1084 = vpop.xlane.xlu0 %1083
      %v1085 = vrcp.pop %v1084
      %v1086 = vmul.f32 %v1081, %v1085
      %v1088 = vsel %vm897, %v1086, 0
      %1090 = vmatpush.msra.mxu0 0.0
      %1091 = vmatpush.msra.mxu0 0.0
      %1092 = vmatpush.msra.mxu0 0.0
      %1093 = vmatpush.msra.mxu0 0.0
      %1094 = vmatpush.msra.mxu0 0.0
      %1095 = vmatpush.msra.mxu0 0.0
      %1096 = vmatpush.msra.mxu0 0.0
      %1097 = vmatpush.msra.mxu0 0.0
      %1098 = vmatpush.msra.mxu0 0.0
      %1099 = vmatpush.msra.mxu0 0.0
      %1100 = vmatpush.msra.mxu0 0.0
      %1101 = vmatpush.msra.mxu0 0.0
      %1102 = vmatpush.msra.mxu0 0.0
      %1103 = vmatpush.msra.mxu0 0.0
      %1104 = vmatpush.msra.mxu0 0.0
      %1105 = vmatpush.msra.mxu0 %v1046
      %1106 = vmatmul.f32.gmra.mxu0 %v1088
      %v1107 = vpop.f32.mrf.mxu0
      %v1108 = vadd.f32 0.0, %v1107
      %1109 = vdwg.mxu0
      %s1110 = scalar_lea.vmem %s13, 16
      %v1111 = vld [vmem:[%s1110] sm:$0xff]
      %v1112 = vld [vmem:[%s1110 + $0x8] sm:$0xff]
      %v1114 = vsel %vm868, %v1108, 0
      %1116 = vmatpush.msra.mxu0 0.0
      %1117 = vmatpush.msra.mxu0 0.0
      %1118 = vmatpush.msra.mxu0 0.0
      %1119 = vmatpush.msra.mxu0 0.0
      %1120 = vmatpush.msra.mxu0 0.0
      %1121 = vmatpush.msra.mxu0 0.0
      %1122 = vmatpush.msra.mxu0 0.0
      %1123 = vmatpush.msra.mxu0 0.0
      %1124 = vmatpush.msra.mxu0 0.0
      %1125 = vmatpush.msra.mxu0 0.0
      %1126 = vmatpush.msra.mxu0 0.0
      %1127 = vmatpush.msra.mxu0 0.0
      %1128 = vmatpush.msra.mxu0 0.0
      %1129 = vmatpush.msra.mxu0 0.0
      %1130 = vmatpush.msra.mxu0 %v1112
      %1131 = vmatpush.msra.mxu0 %v1111
      %1132 = vmatmul.f32.gmra.mxu0 %v1114
      %v1133 = vpop.f32.mrf.mxu0
      %v1134 = vadd.f32 0.0, %v1133
      %1135 = vdwg.mxu0
      %v1136 = vadd.f32 %v957, %v1134
      %v1137 = vld [vmem:[%s15] sm:$0x1]
      %v1138 = vld [vmem:[%s16] sm:$0x1]
      %v1139 = vsel %vm738, %v1136, 0.0
      %1140 = vadd.xlane.f32.xlu0 %v1139
      %v1141 = vpop.xlane.xlu0 %1140
      %v1142 = vmul.f32 %v1141, %v748
      %v1143 = vsub.f32 %v1136, %v1142
      %v1144 = vmul.f32 %v1143, %v1143
      %v1145 = vsel %vm738, %v1144, 0.0
      %1146 = vadd.xlane.f32.xlu0 %v1145
      %v1147 = vpop.xlane.xlu0 %1146
      %v1148 = vmul.f32 %v1147, %v748
      %v1149 = vadd.f32 %v1148, 1e-05
      %v1150 = vrsqrt.pop %v1149
      %v1151 = vmul.f32 %v1150, %v1149
      %v1152 = vmul.f32 %v1151, %v1150
      %v1153 = vmul.f32 0.5, %v1152
      %v1154 = vsub.f32 1.5, %v1153
      %v1155 = vmul.f32 %v1150, %v1154
      %vm1156 = vweird.f32 %v1149
      %vm1157 = vweird.f32 %v1150
      %vm1158 = vmor %vm1156, %vm1157
      %v1159 = vsel %vm1158, %v1150, %v1155
      %v1160 = vmul.f32 %v1143, %v1159
      %v1162 = vperm.slane %v1137, 0
      %v1164 = vmul.f32 %v1160, %v1162
      %v1166 = vperm.slane %v1138, 0
      %v1168 = vadd.f32 %v1164, %v1166
      %v1169 = vld [vmem:[%s17] sm:$0xff]
      %v1170 = vld [vmem:[%s17 + $0x8] sm:$0xff]
      %v1171 = vld [vmem:[%s17 + $0x10] sm:$0xff]
      %v1172 = vld [vmem:[%s17 + $0x18] sm:$0xff]
      %v1173 = vld [vmem:[%s18] sm:$0x1]
      %v1175 = vperm.slane %v1173, 0
      %v1178 = vsel %vm738, %v1168, 0
      %1180 = vmatpush.msra.mxu0 0.0
      %1181 = vmatpush.msra.mxu0 0.0
      %1182 = vmatpush.msra.mxu0 0.0
      %1183 = vmatpush.msra.mxu0 0.0
      %1184 = vmatpush.msra.mxu0 0.0
      %1185 = vmatpush.msra.mxu0 0.0
      %1186 = vmatpush.msra.mxu0 0.0
      %1187 = vmatpush.msra.mxu0 0.0
      %1188 = vmatpush.msra.mxu0 0.0
      %1189 = vmatpush.msra.mxu0 0.0
      %1190 = vmatpush.msra.mxu0 0.0
      %1191 = vmatpush.msra.mxu0 0.0
      %1192 = vmatpush.msra.mxu0 %v1172
      %1193 = vmatpush.msra.mxu0 %v1171
      %1194 = vmatpush.msra.mxu0 %v1170
      %1195 = vmatpush.msra.mxu0 %v1169
      %1196 = vmatmul.f32.gmra.mxu0 %v1178
      %v1197 = vpop.f32.mrf.mxu0
      %v1198 = vadd.f32 %v1175, %v1197
      %1199 = vdwg.mxu0
      %v1200 = vmul.f32 %v1198, %v1198
      %v1201 = vmul.f32 %v1198, %v1200
      %v1202 = vmul.f32 %v1201, 0.044715
      %v1203 = vadd.f32 %v1198, %v1202
      %v1204 = vmul.f32 %v1203, 0.7978846
      %v1205 = vtanh.pop %v1204
      %v1206 = vadd.f32 %v1205, 1.0
      %v1207 = vmul.f32 %v1206, 0.5
      %v1208 = vmul.f32 %v1198, %v1207
      %v1209 = vld [vmem:[%s19] sm:$0xff]
      %v1210 = vld [vmem:[%s19 + $0x8] sm:$0xff]
      %v1211 = vld [vmem:[%s19 + $0x10] sm:$0xff]
      %v1212 = vld [vmem:[%s19 + $0x18] sm:$0xff]
      %v1213 = vld [vmem:[%s19 + $0x20] sm:$0xff]
      %v1214 = vld [vmem:[%s19 + $0x28] sm:$0xff]
      %v1215 = vld [vmem:[%s19 + $0x30] sm:$0xff]
      %v1216 = vld [vmem:[%s19 + $0x38] sm:$0xff]
      %v1217 = vld [vmem:[%s19 + $0x40] sm:$0xff]
      %v1218 = vld [vmem:[%s19 + $0x48] sm:$0xff]
      %v1219 = vld [vmem:[%s19 + $0x50] sm:$0xff]
      %v1220 = vld [vmem:[%s19 + $0x58] sm:$0xff]
      %v1221 = vld [vmem:[%s19 + $0x60] sm:$0xff]
      %v1222 = vld [vmem:[%s19 + $0x68] sm:$0xff]
      %v1223 = vld [vmem:[%s19 + $0x70] sm:$0xff]
      %v1224 = vld [vmem:[%s19 + $0x78] sm:$0xff]
      %1225 = vmatpush.msra.mxu0 %v1224
      %1226 = vmatpush.msra.mxu0 %v1223
      %1227 = vmatpush.msra.mxu0 %v1222
      %1228 = vmatpush.msra.mxu0 %v1221
      %1229 = vmatpush.msra.mxu0 %v1220
      %1230 = vmatpush.msra.mxu0 %v1219
      %1231 = vmatpush.msra.mxu0 %v1218
      %1232 = vmatpush.msra.mxu0 %v1217
      %1233 = vmatpush.msra.mxu0 %v1216
      %1234 = vmatpush.msra.mxu0 %v1215
      %1235 = vmatpush.msra.mxu0 %v1214
      %1236 = vmatpush.msra.mxu0 %v1213
      %1237 = vmatpush.msra.mxu0 %v1212
      %1238 = vmatpush.msra.mxu0 %v1211
      %1239 = vmatpush.msra.mxu0 %v1210
      %1240 = vmatpush.msra.mxu0 %v1209
      %1241 = vmatmul.f32.gmra.mxu0 %v1208
      %v1242 = vpop.f32.mrf.mxu0
      %v1243 = vadd.f32 0.0, %v1242
      %1244 = vdwg.mxu0
      %v1245 = vadd.f32 %v1136, %v1243
      %v1246 = vld [vmem:[%s20] sm:$0x1]
      %v1248 = vperm.slane %v1246, 0
      %v1250 = vadd.f32 %v1245, %v1248
      %s1251 = scalar_lea.vmem %s5, 1
      %v1252 = vld [vmem:[%s1251] sm:$0x1]
      %s1253 = scalar_lea.vmem %s6, 1
      %v1254 = vld [vmem:[%s1253] sm:$0x1]
      %v1255 = vsel %vm738, %v1250, 0.0
      %1256 = vadd.xlane.f32.xlu0 %v1255
      %v1257 = vpop.xlane.xlu0 %1256
      %v1258 = vmul.f32 %v1257, %v748
      %v1259 = vsub.f32 %v1250, %v1258
      %v1260 = vmul.f32 %v1259, %v1259
      %v1261 = vsel %vm738, %v1260, 0.0
      %1262 = vadd.xlane.f32.xlu0 %v1261
      %v1263 = vpop.xlane.xlu0 %1262
      %v1264 = vmul.f32 %v1263, %v748
      %v1265 = vadd.f32 %v1264, 1e-05
      %v1266 = vrsqrt.pop %v1265
      %v1267 = vmul.f32 %v1266, %v1265
      %v1268 = vmul.f32 %v1267, %v1266
      %v1269 = vmul.f32 0.5, %v1268
      %v1270 = vsub.f32 1.5, %v1269
      %v1271 = vmul.f32 %v1266, %v1270
      %vm1272 = vweird.f32 %v1265
      %vm1273 = vweird.f32 %v1266
      %vm1274 = vmor %vm1272, %vm1273
      %v1275 = vsel %vm1274, %v1266, %v1271
      %v1276 = vmul.f32 %v1259, %v1275
      %v1278 = vperm.slane %v1252, 0
      %v1280 = vmul.f32 %v1276, %v1278
      %v1282 = vperm.slane %v1254, 0
      %v1284 = vadd.f32 %v1280, %v1282
      %s1285 = scalar_lea.vmem %s14, 1
      %v1286 = vld [vmem:[%s1285] sm:$0x1]
      %v1288 = vperm.slane %v1286, 0
      %v1290 = vadd.f32 %v1250, %v1288
      %s1291 = scalar_lea.vmem %s7, 64
      %v1292 = vld [vmem:[%s1291] sm:$0xff]
      %v1293 = vld [vmem:[%s1291 + $0x8] sm:$0xff]
      %v1294 = vld [vmem:[%s1291 + $0x10] sm:$0xff]
      %v1295 = vld [vmem:[%s1291 + $0x18] sm:$0xff]
      %s1296 = scalar_lea.vmem %s10, 2
      %v1297 = vld [vmem:[%s1296] sm:$0x1]
      %v1299 = vperm.slane %v1297, 0
      %v1302 = vsel %vm738, %v1284, 0
      %1304 = vmatpush.msra.mxu0 0.0
      %1305 = vmatpush.msra.mxu0 0.0
      %1306 = vmatpush.msra.mxu0 0.0
      %1307 = vmatpush.msra.mxu0 0.0
      %1308 = vmatpush.msra.mxu0 0.0
      %1309 = vmatpush.msra.mxu0 0.0
      %1310 = vmatpush.msra.mxu0 0.0
      %1311 = vmatpush.msra.mxu0 0.0
      %1312 = vmatpush.msra.mxu0 0.0
      %1313 = vmatpush.msra.mxu0 0.0
      %1314 = vmatpush.msra.mxu0 0.0
      %1315 = vmatpush.msra.mxu0 0.0
      %1316 = vmatpush.msra.mxu0 %v1295
      %1317 = vmatpush.msra.mxu0 %v1294
      %1318 = vmatpush.msra.mxu0 %v1293
      %1319 = vmatpush.msra.mxu0 %v1292
      %1320 = vmatmul.f32.gmra.mxu0 %v1302
      %v1321 = vpop.f32.mrf.mxu0
      %v1322 = vadd.f32 %v1299, %v1321
      %1323 = vdwg.mxu0
      %s1324 = scalar_lea.vmem %s8, 64
      %v1325 = vld [vmem:[%s1324] sm:$0xff]
      %v1326 = vld [vmem:[%s1324 + $0x8] sm:$0xff]
      %v1327 = vld [vmem:[%s1324 + $0x10] sm:$0xff]
      %v1328 = vld [vmem:[%s1324 + $0x18] sm:$0xff]
      %s1329 = scalar_lea.vmem %s11, 2
      %v1330 = vld [vmem:[%s1329] sm:$0x1]
      %v1332 = vperm.slane %v1330, 0
      %1334 = vmatpush.msra.mxu0 0.0
      %1335 = vmatpush.msra.mxu0 0.0
      %1336 = vmatpush.msra.mxu0 0.0
      %1337 = vmatpush.msra.mxu0 0.0
      %1338 = vmatpush.msra.mxu0 0.0
      %1339 = vmatpush.msra.mxu0 0.0
      %1340 = vmatpush.msra.mxu0 0.0
      %1341 = vmatpush.msra.mxu0 0.0
      %1342 = vmatpush.msra.mxu0 0.0
      %1343 = vmatpush.msra.mxu0 0.0
      %1344 = vmatpush.msra.mxu0 0.0
      %1345 = vmatpush.msra.mxu0 0.0
      %1346 = vmatpush.msra.mxu0 %v1328
      %1347 = vmatpush.msra.mxu0 %v1327
      %1348 = vmatpush.msra.mxu0 %v1326
      %1349 = vmatpush.msra.mxu0 %v1325
      %1350 = vmatmul.f32.gmra.mxu0 %v1302
      %v1351 = vpop.f32.mrf.mxu0
      %v1352 = vadd.f32 %v1332, %v1351
      %1353 = vdwg.mxu0
      %s1354 = scalar_lea.vmem %s9, 64
      %v1355 = vld [vmem:[%s1354] sm:$0xff]
      %v1356 = vld [vmem:[%s1354 + $0x8] sm:$0xff]
      %v1357 = vld [vmem:[%s1354 + $0x10] sm:$0xff]
      %v1358 = vld [vmem:[%s1354 + $0x18] sm:$0xff]
      %s1359 = scalar_lea.vmem %s12, 2
      %v1360 = vld [vmem:[%s1359] sm:$0x1]
      %v1362 = vperm.slane %v1360, 0
      %1364 = vmatpush.msra.mxu0 0.0
      %1365 = vmatpush.msra.mxu0 0.0
      %1366 = vmatpush.msra.mxu0 0.0
      %1367 = vmatpush.msra.mxu0 0.0
      %1368 = vmatpush.msra.mxu0 0.0
      %1369 = vmatpush.msra.mxu0 0.0
      %1370 = vmatpush.msra.mxu0 0.0
      %1371 = vmatpush.msra.mxu0 0.0
      %1372 = vmatpush.msra.mxu0 0.0
      %1373 = vmatpush.msra.mxu0 0.0
      %1374 = vmatpush.msra.mxu0 0.0
      %1375 = vmatpush.msra.mxu0 0.0
      %1376 = vmatpush.msra.mxu0 %v1358
      %1377 = vmatpush.msra.mxu0 %v1357
      %1378 = vmatpush.msra.mxu0 %v1356
      %1379 = vmatpush.msra.mxu0 %v1355
      %1380 = vmatmul.f32.gmra.mxu0 %v1302
      %v1381 = vpop.f32.mrf.mxu0
      %v1382 = vadd.f32 %v1362, %v1381
      %1383 = vdwg.mxu0
      %v1385 = vsel %vm868, %v1322, 0
      %v1388 = vsel %vm868, %v1352, 0
      %1390 = vmatpush.xpose.msra.mxu0 0.0
      %1391 = vmatpush.xpose.msra.mxu0 0.0
      %1392 = vmatpush.xpose.msra.mxu0 0.0
      %1393 = vmatpush.xpose.msra.mxu0 0.0
      %1394 = vmatpush.xpose.msra.mxu0 0.0
      %1395 = vmatpush.xpose.msra.mxu0 0.0
      %1396 = vmatpush.xpose.msra.mxu0 0.0
      %1397 = vmatpush.xpose.msra.mxu0 0.0
      %1398 = vmatpush.xpose.msra.mxu0 0.0
      %1399 = vmatpush.xpose.msra.mxu0 0.0
      %1400 = vmatpush.xpose.msra.mxu0 0.0
      %1401 = vmatpush.xpose.msra.mxu0 0.0
      %1402 = vmatpush.xpose.msra.mxu0 0.0
      %1403 = vmatpush.xpose.msra.mxu0 0.0
      %1404 = vmatpush.xpose.msra.mxu0 0.0
      %1405 = vmatpush.xpose.msra.mxu0 %v1388
      %1406 = vmatmul.f32.gmra.mxu0 %v1385
      %v1407 = vpop.f32.mrf.mxu0
      %v1408 = vadd.f32 0.0, %v1407
      %1409 = vdwg.mxu0
      %v1410 = vmul.f32 %v1408, 0.25
      %v1411 = vadd.f32 %v1410, %v735
      %v1412 = vsel %vm897, %v1411, -inf
      %1413 = vmax.xlane.f32.xlu0 %v1412
      %v1414 = vpop.xlane.xlu0 %1413
      %v1415 = vsub.f32 %v1411, %v1414
      %v1416 = vmul.f32 %v1415, 1.442695
      %v1417 = vpow.pop %v1416
      %v1418 = vsel %vm897, %v1417, 0.0
      %1419 = vadd.xlane.f32.xlu0 %v1418
      %v1420 = vpop.xlane.xlu0 %1419
      %v1421 = vrcp.pop %v1420
      %v1422 = vmul.f32 %v1417, %v1421
      %v1424 = vsel %vm897, %v1422, 0
      %1426 = vmatpush.msra.mxu0 0.0
      %1427 = vmatpush.msra.mxu0 0.0
      %1428 = vmatpush.msra.mxu0 0.0
      %1429 = vmatpush.msra.mxu0 0.0
      %1430 = vmatpush.msra.mxu0 0.0
      %1431 = vmatpush.msra.mxu0 0.0
      %1432 = vmatpush.msra.mxu0 0.0
      %1433 = vmatpush.msra.mxu0 0.0
      %1434 = vmatpush.msra.mxu0 0.0
      %1435 = vmatpush.msra.mxu0 0.0
      %1436 = vmatpush.msra.mxu0 0.0
      %1437 = vmatpush.msra.mxu0 0.0
      %1438 = vmatpush.msra.mxu0 0.0
      %1439 = vmatpush.msra.mxu0 0.0
      %1440 = vmatpush.msra.mxu0 0.0
      %1441 = vmatpush.msra.mxu0 %v1382
      %1442 = vmatmul.f32.gmra.mxu0 %v1424
      %v1443 = vpop.f32.mrf.mxu0
      %v1444 = vadd.f32 0.0, %v1443
      %1445 = vdwg.mxu0
      %s1446 = scalar_lea.vmem %s13, 32
      %v1447 = vld [vmem:[%s1446] sm:$0xff]
      %v1448 = vld [vmem:[%s1446 + $0x8] sm:$0xff]
      %v1450 = vsel %vm868, %v1444, 0
      %1452 = vmatpush.msra.mxu0 0.0
      %1453 = vmatpush.msra.mxu0 0.0
      %1454 = vmatpush.msra.mxu0 0.0
      %1455 = vmatpush.msra.mxu0 0.0
      %1456 = vmatpush.msra.mxu0 0.0
      %1457 = vmatpush.msra.mxu0 0.0
      %1458 = vmatpush.msra.mxu0 0.0
      %1459 = vmatpush.msra.mxu0 0.0
      %1460 = vmatpush.msra.mxu0 0.0
      %1461 = vmatpush.msra.mxu0 0.0
      %1462 = vmatpush.msra.mxu0 0.0
      %1463 = vmatpush.msra.mxu0 0.0
      %1464 = vmatpush.msra.mxu0 0.0
      %1465 = vmatpush.msra.mxu0 0.0
      %1466 = vmatpush.msra.mxu0 %v1448
      %1467 = vmatpush.msra.mxu0 %v1447
      %1468 = vmatmul.f32.gmra.mxu0 %v1450
      %v1469 = vpop.f32.mrf.mxu0
      %v1470 = vadd.f32 0.0, %v1469
      %1471 = vdwg.mxu0
      %v1472 = vadd.f32 %v1290, %v1470
      %s1473 = scalar_lea.vmem %s7, 96
      %v1474 = vld [vmem:[%s1473] sm:$0xff]
      %v1475 = vld [vmem:[%s1473 + $0x8] sm:$0xff]
      %v1476 = vld [vmem:[%s1473 + $0x10] sm:$0xff]
      %v1477 = vld [vmem:[%s1473 + $0x18] sm:$0xff]
      %s1478 = scalar_lea.vmem %s10, 3
      %v1479 = vld [vmem:[%s1478] sm:$0x1]
      %v1481 = vperm.slane %v1479, 0
      %1483 = vmatpush.msra.mxu0 0.0
      %1484 = vmatpush.msra.mxu0 0.0
      %1485 = vmatpush.msra.mxu0 0.0
      %1486 = vmatpush.msra.mxu0 0.0
      %1487 = vmatpush.msra.mxu0 0.0
      %1488 = vmatpush.msra.mxu0 0.0
      %1489 = vmatpush.msra.mxu0 0.0
      %1490 = vmatpush.msra.mxu0 0.0
      %1491 = vmatpush.msra.mxu0 0.0
      %1492 = vmatpush.msra.mxu0 0.0
      %1493 = vmatpush.msra.mxu0 0.0
      %1494 = vmatpush.msra.mxu0 0.0
      %1495 = vmatpush.msra.mxu0 %v1477
      %1496 = vmatpush.msra.mxu0 %v1476
      %1497 = vmatpush.msra.mxu0 %v1475
      %1498 = vmatpush.msra.mxu0 %v1474
      %1499 = vmatmul.f32.gmra.mxu0 %v1302
      %v1500 = vpop.f32.mrf.mxu0
      %v1501 = vadd.f32 %v1481, %v1500
      %1502 = vdwg.mxu0
      %s1503 = scalar_lea.vmem %s8, 96
      %v1504 = vld [vmem:[%s1503] sm:$0xff]
      %v1505 = vld [vmem:[%s1503 + $0x8] sm:$0xff]
      %v1506 = vld [vmem:[%s1503 + $0x10] sm:$0xff]
      %v1507 = vld [vmem:[%s1503 + $0x18] sm:$0xff]
      %s1508 = scalar_lea.vmem %s11, 3
      %v1509 = vld [vmem:[%s1508] sm:$0x1]
      %v1511 = vperm.slane %v1509, 0
      %1513 = vmatpush.msra.mxu0 0.0
      %1514 = vmatpush.msra.mxu0 0.0
      %1515 = vmatpush.msra.mxu0 0.0
      %1516 = vmatpush.msra.mxu0 0.0
      %1517 = vmatpush.msra.mxu0 0.0
      %1518 = vmatpush.msra.mxu0 0.0
      %1519 = vmatpush.msra.mxu0 0.0
      %1520 = vmatpush.msra.mxu0 0.0
      %1521 = vmatpush.msra.mxu0 0.0
      %1522 = vmatpush.msra.mxu0 0.0
      %1523 = vmatpush.msra.mxu0 0.0
      %1524 = vmatpush.msra.mxu0 0.0
      %1525 = vmatpush.msra.mxu0 %v1507
      %1526 = vmatpush.msra.mxu0 %v1506
      %1527 = vmatpush.msra.mxu0 %v1505
      %1528 = vmatpush.msra.mxu0 %v1504
      %1529 = vmatmul.f32.gmra.mxu0 %v1302
      %v1530 = vpop.f32.mrf.mxu0
      %v1531 = vadd.f32 %v1511, %v1530
      %1532 = vdwg.mxu0
      %s1533 = scalar_lea.vmem %s9, 96
      %v1534 = vld [vmem:[%s1533] sm:$0xff]
      %v1535 = vld [vmem:[%s1533 + $0x8] sm:$0xff]
      %v1536 = vld [vmem:[%s1533 + $0x10] sm:$0xff]
      %v1537 = vld [vmem:[%s1533 + $0x18] sm:$0xff]
      %s1538 = scalar_lea.vmem %s12, 3
      %v1539 = vld [vmem:[%s1538] sm:$0x1]
      %v1541 = vperm.slane %v1539, 0
      %1543 = vmatpush.msra.mxu0 0.0
      %1544 = vmatpush.msra.mxu0 0.0
      %1545 = vmatpush.msra.mxu0 0.0
      %1546 = vmatpush.msra.mxu0 0.0
      %1547 = vmatpush.msra.mxu0 0.0
      %1548 = vmatpush.msra.mxu0 0.0
      %1549 = vmatpush.msra.mxu0 0.0
      %1550 = vmatpush.msra.mxu0 0.0
      %1551 = vmatpush.msra.mxu0 0.0
      %1552 = vmatpush.msra.mxu0 0.0
      %1553 = vmatpush.msra.mxu0 0.0
      %1554 = vmatpush.msra.mxu0 0.0
      %1555 = vmatpush.msra.mxu0 %v1537
      %1556 = vmatpush.msra.mxu0 %v1536
      %1557 = vmatpush.msra.mxu0 %v1535
      %1558 = vmatpush.msra.mxu0 %v1534
      %1559 = vmatmul.f32.gmra.mxu0 %v1302
      %v1560 = vpop.f32.mrf.mxu0
      %v1561 = vadd.f32 %v1541, %v1560
      %1562 = vdwg.mxu0
      %v1564 = vsel %vm868, %v1501, 0
      %v1567 = vsel %vm868, %v1531, 0
      %1569 = vmatpush.xpose.msra.mxu0 0.0
      %1570 = vmatpush.xpose.msra.mxu0 0.0
      %1571 = vmatpush.xpose.msra.mxu0 0.0
      %1572 = vmatpush.xpose.msra.mxu0 0.0
      %1573 = vmatpush.xpose.msra.mxu0 0.0
      %1574 = vmatpush.xpose.msra.mxu0 0.0
      %1575 = vmatpush.xpose.msra.mxu0 0.0
      %1576 = vmatpush.xpose.msra.mxu0 0.0
      %1577 = vmatpush.xpose.msra.mxu0 0.0
      %1578 = vmatpush.xpose.msra.mxu0 0.0
      %1579 = vmatpush.xpose.msra.mxu0 0.0
      %1580 = vmatpush.xpose.msra.mxu0 0.0
      %1581 = vmatpush.xpose.msra.mxu0 0.0
      %1582 = vmatpush.xpose.msra.mxu0 0.0
      %1583 = vmatpush.xpose.msra.mxu0 0.0
      %1584 = vmatpush.xpose.msra.mxu0 %v1567
      %1585 = vmatmul.f32.gmra.mxu0 %v1564
      %v1586 = vpop.f32.mrf.mxu0
      %v1587 = vadd.f32 0.0, %v1586
      %1588 = vdwg.mxu0
      %v1589 = vmul.f32 %v1587, 0.25
      %v1590 = vadd.f32 %v1589, %v735
      %v1591 = vsel %vm897, %v1590, -inf
      %1592 = vmax.xlane.f32.xlu0 %v1591
      %v1593 = vpop.xlane.xlu0 %1592
      %v1594 = vsub.f32 %v1590, %v1593
      %v1595 = vmul.f32 %v1594, 1.442695
      %v1596 = vpow.pop %v1595
      %v1597 = vsel %vm897, %v1596, 0.0
      %1598 = vadd.xlane.f32.xlu0 %v1597
      %v1599 = vpop.xlane.xlu0 %1598
      %v1600 = vrcp.pop %v1599
      %v1601 = vmul.f32 %v1596, %v1600
      %v1603 = vsel %vm897, %v1601, 0
      %1605 = vmatpush.msra.mxu0 0.0
      %1606 = vmatpush.msra.mxu0 0.0
      %1607 = vmatpush.msra.mxu0 0.0
      %1608 = vmatpush.msra.mxu0 0.0
      %1609 = vmatpush.msra.mxu0 0.0
      %1610 = vmatpush.msra.mxu0 0.0
      %1611 = vmatpush.msra.mxu0 0.0
      %1612 = vmatpush.msra.mxu0 0.0
      %1613 = vmatpush.msra.mxu0 0.0
      %1614 = vmatpush.msra.mxu0 0.0
      %1615 = vmatpush.msra.mxu0 0.0
      %1616 = vmatpush.msra.mxu0 0.0
      %1617 = vmatpush.msra.mxu0 0.0
      %1618 = vmatpush.msra.mxu0 0.0
      %1619 = vmatpush.msra.mxu0 0.0
      %1620 = vmatpush.msra.mxu0 %v1561
      %1621 = vmatmul.f32.gmra.mxu0 %v1603
      %v1622 = vpop.f32.mrf.mxu0
      %v1623 = vadd.f32 0.0, %v1622
      %1624 = vdwg.mxu0
      %s1625 = scalar_lea.vmem %s13, 48
      %v1626 = vld [vmem:[%s1625] sm:$0xff]
      %v1627 = vld [vmem:[%s1625 + $0x8] sm:$0xff]
      %v1629 = vsel %vm868, %v1623, 0
      %1631 = vmatpush.msra.mxu0 0.0
      %1632 = vmatpush.msra.mxu0 0.0
      %1633 = vmatpush.msra.mxu0 0.0
      %1634 = vmatpush.msra.mxu0 0.0
      %1635 = vmatpush.msra.mxu0 0.0
      %1636 = vmatpush.msra.mxu0 0.0
      %1637 = vmatpush.msra.mxu0 0.0
      %1638 = vmatpush.msra.mxu0 0.0
      %1639 = vmatpush.msra.mxu0 0.0
      %1640 = vmatpush.msra.mxu0 0.0
      %1641 = vmatpush.msra.mxu0 0.0
      %1642 = vmatpush.msra.mxu0 0.0
      %1643 = vmatpush.msra.mxu0 0.0
      %1644 = vmatpush.msra.mxu0 0.0
      %1645 = vmatpush.msra.mxu0 %v1627
      %1646 = vmatpush.msra.mxu0 %v1626
      %1647 = vmatmul.f32.gmra.mxu0 %v1629
      %v1648 = vpop.f32.mrf.mxu0
      %v1649 = vadd.f32 0.0, %v1648
      %1650 = vdwg.mxu0
      %v1651 = vadd.f32 %v1472, %v1649
      %s1652 = scalar_lea.vmem %s15, 1
      %v1653 = vld [vmem:[%s1652] sm:$0x1]
      %s1654 = scalar_lea.vmem %s16, 1
      %v1655 = vld [vmem:[%s1654] sm:$0x1]
      %v1656 = vsel %vm738, %v1651, 0.0
      %1657 = vadd.xlane.f32.xlu0 %v1656
      %v1658 = vpop.xlane.xlu0 %1657
      %v1659 = vmul.f32 %v1658, %v748
      %v1660 = vsub.f32 %v1651, %v1659
      %v1661 = vmul.f32 %v1660, %v1660
      %v1662 = vsel %vm738, %v1661, 0.0
      %1663 = vadd.xlane.f32.xlu0 %v1662
      %v1664 = vpop.xlane.xlu0 %1663
      %v1665 = vmul.f32 %v1664, %v748
      %v1666 = vadd.f32 %v1665, 1e-05
      %v1667 = vrsqrt.pop %v1666
      %v1668 = vmul.f32 %v1667, %v1666
      %v1669 = vmul.f32 %v1668, %v1667
      %v1670 = vmul.f32 0.5, %v1669
      %v1671 = vsub.f32 1.5, %v1670
      %v1672 = vmul.f32 %v1667, %v1671
      %vm1673 = vweird.f32 %v1666
      %vm1674 = vweird.f32 %v1667
      %vm1675 = vmor %vm1673, %vm1674
      %v1676 = vsel %vm1675, %v1667, %v1672
      %v1677 = vmul.f32 %v1660, %v1676
      %v1679 = vperm.slane %v1653, 0
      %v1681 = vmul.f32 %v1677, %v1679
      %v1683 = vperm.slane %v1655, 0
      %v1685 = vadd.f32 %v1681, %v1683
      %s1686 = scalar_lea.vmem %s17, 32
      %v1687 = vld [vmem:[%s1686] sm:$0xff]
      %v1688 = vld [vmem:[%s1686 + $0x8] sm:$0xff]
      %v1689 = vld [vmem:[%s1686 + $0x10] sm:$0xff]
      %v1690 = vld [vmem:[%s1686 + $0x18] sm:$0xff]
      %s1691 = scalar_lea.vmem %s18, 1
      %v1692 = vld [vmem:[%s1691] sm:$0x1]
      %v1694 = vperm.slane %v1692, 0
      %v1697 = vsel %vm738, %v1685, 0
      %1699 = vmatpush.msra.mxu0 0.0
      %1700 = vmatpush.msra.mxu0 0.0
      %1701 = vmatpush.msra.mxu0 0.0
      %1702 = vmatpush.msra.mxu0 0.0
      %1703 = vmatpush.msra.mxu0 0.0
      %1704 = vmatpush.msra.mxu0 0.0
      %1705 = vmatpush.msra.mxu0 0.0
      %1706 = vmatpush.msra.mxu0 0.0
      %1707 = vmatpush.msra.mxu0 0.0
      %1708 = vmatpush.msra.mxu0 0.0
      %1709 = vmatpush.msra.mxu0 0.0
      %1710 = vmatpush.msra.mxu0 0.0
      %1711 = vmatpush.msra.mxu0 %v1690
      %1712 = vmatpush.msra.mxu0 %v1689
      %1713 = vmatpush.msra.mxu0 %v1688
      %1714 = vmatpush.msra.mxu0 %v1687
      %1715 = vmatmul.f32.gmra.mxu0 %v1697
      %v1716 = vpop.f32.mrf.mxu0
      %v1717 = vadd.f32 %v1694, %v1716
      %1718 = vdwg.mxu0
      %v1719 = vmul.f32 %v1717, %v1717
      %v1720 = vmul.f32 %v1717, %v1719
      %v1721 = vmul.f32 %v1720, 0.044715
      %v1722 = vadd.f32 %v1717, %v1721
      %v1723 = vmul.f32 %v1722, 0.7978846
      %v1724 = vtanh.pop %v1723
      %v1725 = vadd.f32 %v1724, 1.0
      %v1726 = vmul.f32 %v1725, 0.5
      %v1727 = vmul.f32 %v1717, %v1726
      %s1728 = scalar_lea.vmem %s19, 128
      %v1729 = vld [vmem:[%s1728] sm:$0xff]
      %v1730 = vld [vmem:[%s1728 + $0x8] sm:$0xff]
      %v1731 = vld [vmem:[%s1728 + $0x10] sm:$0xff]
      %v1732 = vld [vmem:[%s1728 + $0x18] sm:$0xff]
      %v1733 = vld [vmem:[%s1728 + $0x20] sm:$0xff]
      %v1734 = vld [vmem:[%s1728 + $0x28] sm:$0xff]
      %v1735 = vld [vmem:[%s1728 + $0x30] sm:$0xff]
      %v1736 = vld [vmem:[%s1728 + $0x38] sm:$0xff]
      %v1737 = vld [vmem:[%s1728 + $0x40] sm:$0xff]
      %v1738 = vld [vmem:[%s1728 + $0x48] sm:$0xff]
      %v1739 = vld [vmem:[%s1728 + $0x50] sm:$0xff]
      %v1740 = vld [vmem:[%s1728 + $0x58] sm:$0xff]
      %v1741 = vld [vmem:[%s1728 + $0x60] sm:$0xff]
      %v1742 = vld [vmem:[%s1728 + $0x68] sm:$0xff]
      %v1743 = vld [vmem:[%s1728 + $0x70] sm:$0xff]
      %v1744 = vld [vmem:[%s1728 + $0x78] sm:$0xff]
      %1745 = vmatpush.msra.mxu0 %v1744
      %1746 = vmatpush.msra.mxu0 %v1743
      %1747 = vmatpush.msra.mxu0 %v1742
      %1748 = vmatpush.msra.mxu0 %v1741
      %1749 = vmatpush.msra.mxu0 %v1740
      %1750 = vmatpush.msra.mxu0 %v1739
      %1751 = vmatpush.msra.mxu0 %v1738
      %1752 = vmatpush.msra.mxu0 %v1737
      %1753 = vmatpush.msra.mxu0 %v1736
      %1754 = vmatpush.msra.mxu0 %v1735
      %1755 = vmatpush.msra.mxu0 %v1734
      %1756 = vmatpush.msra.mxu0 %v1733
      %1757 = vmatpush.msra.mxu0 %v1732
      %1758 = vmatpush.msra.mxu0 %v1731
      %1759 = vmatpush.msra.mxu0 %v1730
      %1760 = vmatpush.msra.mxu0 %v1729
      %1761 = vmatmul.f32.gmra.mxu0 %v1727
      %v1762 = vpop.f32.mrf.mxu0
      %v1763 = vadd.f32 0.0, %v1762
      %1764 = vdwg.mxu0
      %v1765 = vadd.f32 %v1651, %v1763
      %s1766 = scalar_lea.vmem %s20, 1
      %v1767 = vld [vmem:[%s1766] sm:$0x1]
      %v1769 = vperm.slane %v1767, 0
      %v1771 = vadd.f32 %v1765, %v1769
      %v1772 = vld [vmem:[%s21] sm:$0x1]
      %v1773 = vld [vmem:[%s22] sm:$0x1]
      %v1774 = vsel %vm738, %v1771, 0.0
      %1775 = vadd.xlane.f32.xlu0 %v1774
      %v1776 = vpop.xlane.xlu0 %1775
      %v1777 = vmul.f32 %v1776, %v748
      %v1778 = vsub.f32 %v1771, %v1777
      %v1779 = vmul.f32 %v1778, %v1778
      %v1780 = vsel %vm738, %v1779, 0.0
      %1781 = vadd.xlane.f32.xlu0 %v1780
      %v1782 = vpop.xlane.xlu0 %1781
      %v1783 = vmul.f32 %v1782, %v748
      %v1784 = vadd.f32 %v1783, 1e-05
      %v1785 = vrsqrt.pop %v1784
      %v1786 = vmul.f32 %v1785, %v1784
      %v1787 = vmul.f32 %v1786, %v1785
      %v1788 = vmul.f32 0.5, %v1787
      %v1789 = vsub.f32 1.5, %v1788
      %v1790 = vmul.f32 %v1785, %v1789
      %vm1791 = vweird.f32 %v1784
      %vm1792 = vweird.f32 %v1785
      %vm1793 = vmor %vm1791, %vm1792
      %v1794 = vsel %vm1793, %v1785, %v1790
      %v1795 = vmul.f32 %v1778, %v1794
      %v1797 = vperm.slane %v1772, 0
      %v1799 = vmul.f32 %v1795, %v1797
      %v1801 = vperm.slane %v1773, 0
      %v1803 = vadd.f32 %v1799, %v1801
      %v1804 = vld [vmem:[%s3] sm:$0xff]
      %v1805 = vld [vmem:[%s3 + $0x8] sm:$0xff]
      %v1806 = vld [vmem:[%s3 + $0x10] sm:$0xff]
      %v1807 = vld [vmem:[%s3 + $0x18] sm:$0xff]
      %v1809 = vsel %vm738, %v1803, 0
      %1811 = vmatpush.msra.mxu0 0.0
      %1812 = vmatpush.msra.mxu0 0.0
      %1813 = vmatpush.msra.mxu0 0.0
      %1814 = vmatpush.msra.mxu0 0.0
      %1815 = vmatpush.msra.mxu0 0.0
      %1816 = vmatpush.msra.mxu0 0.0
      %1817 = vmatpush.msra.mxu0 0.0
      %1818 = vmatpush.msra.mxu0 0.0
      %1819 = vmatpush.msra.mxu0 0.0
      %1820 = vmatpush.msra.mxu0 0.0
      %1821 = vmatpush.msra.mxu0 0.0
      %1822 = vmatpush.msra.mxu0 0.0
      %1823 = vmatpush.msra.mxu0 %v1807
      %1824 = vmatpush.msra.mxu0 %v1806
      %1825 = vmatpush.msra.mxu0 %v1805
      %1826 = vmatpush.msra.mxu0 %v1804
      %1827 = vmatmul.f32.gmra.mxu0 %v1809
      %v1828 = vpop.f32.mrf.mxu0
      %v1829 = vadd.f32 0.0, %v1828
      %1830 = vdwg.mxu0
      %v1832 = vsel %vm705, %v1829, 0
      %1834 = vmatpush.xpose.msra.mxu0 0.0
      %1835 = vmatpush.xpose.msra.mxu0 0.0
      %1836 = vmatpush.xpose.msra.mxu0 0.0
      %1837 = vmatpush.xpose.msra.mxu0 0.0
      %1838 = vmatpush.xpose.msra.mxu0 0.0
      %1839 = vmatpush.xpose.msra.mxu0 0.0
      %1840 = vmatpush.xpose.msra.mxu0 0.0
      %1841 = vmatpush.xpose.msra.mxu0 0.0
      %1842 = vmatpush.xpose.msra.mxu0 0.0
      %1843 = vmatpush.xpose.msra.mxu0 0.0
      %1844 = vmatpush.xpose.msra.mxu0 0.0
      %1845 = vmatpush.xpose.msra.mxu0 0.0
      %1846 = vmatpush.xpose.msra.mxu0 0.0
      %1847 = vmatpush.xpose.msra.mxu0 0.0
      %1848 = vmatpush.xpose.msra.mxu0 0.0
      %1849 = vmatpush.xpose.msra.mxu0 %v707
      %1850 = vmatmul.f32.gmra.mxu0 %v1832
      %v1851 = vpop.f32.mrf.mxu0
      %v1852 = vadd.f32 0.0, %v1851
      %1853 = vdwg.mxu0
      %v1854 = vadd.s32 %v730, 1
      %vm1855 = vcmp.eq.s32.totalorder %v689, %v1854
      %v1856 = vsel %vm1855, %v1852, 0.0
      %v1857 = vsel %vm897, %v1856, 0.0
      %1858 = vadd.xlane.f32.xlu0 %v1857
      %v1859 = vpop.xlane.xlu0 %1858
      %s1860 = ssub.s32 %s686, 1
      %v1861 = vstv %s1860
      %vm1862 = vcmp.lt.s32.totalorder %v730, %v1861
      %v1863 = vsel %vm1862, 1, 0
      %v1864 = vcvt.s32.f32 %v1863
      %v1865 = vsel %vm705, %v1829, -inf
      %1866 = vmax.xlane.f32.xlu0 %v1865
      %v1867 = vpop.xlane.xlu0 %1866
      %v1868 = vsub.f32 %v1829, %v1867
      %v1869 = vmul.f32 %v1868, 1.442695
      %v1870 = vpow.pop %v1869
      %v1871 = vsel %vm705, %v1870, 0.0
      %1872 = vadd.xlane.f32.xlu0 %v1871
      %v1873 = vpop.xlane.xlu0 %1872
      %v1874 = vlog2.pop %v1873
      %v1875 = vmul.f32 %v1874, 0.6931472
      %v1876 = vadd.f32 %v1867, %v1875
      %v1877 = vsub.f32 %v1876, %v1859
      %v1878 = vmul.f32 %v1877, %v1864
      %v1879 = vrot.slane %v1878, 4
      %v1880 = vadd.f32 %v1878, %v1879
      %v1881 = vrot.slane %v1880, 2
      %v1882 = vadd.f32 %v1880, %v1881
      %v1883 = vrot.slane %v1882, 1
      %v1884 = vadd.f32 %v1882, %v1883
      %v1885 = vrot.slane %v1864, 4
      %v1886 = vadd.f32 %v1864, %v1885
      %v1887 = vrot.slane %v1886, 2
      %v1888 = vadd.f32 %v1886, %v1887
      %v1889 = vrot.slane %v1888, 1
      %v1890 = vadd.f32 %v1888, %v1889
      %vm1891 = vcmp.eq.s32.totalorder %v689, 0
      %v1892 = vsel %vm1891, %v1884, %v1890
      %vm1893 = vcmask 8192
      %1894 = vst.msk [vmem:[%s685] sm:$0x1] %vm1893, %v1892
      %p1895 = scmp.lt.s32.totalorder %s42, 1
      %s1896 = scalar_select %p1895, %s42, 1
      %s1897 = scalar_lea.vmem %s23, %s1896
      // Predicated region
      $region109: #{gen_network_forward.1} parent=107 // pred_check
        %p1898 = pneg %p527
      $region110: #{gen_network_forward.1} parent=107 // pred_check_branch
        %1900 = sbr.rel (%p1898) target = $region112
      $region111: #{gen_network_forward.1} parent=107 // pred_region
        _
      $region112: #{gen_network_forward.1} parent=107 // pred_fallthru
        _
    $region108: #{gen_network_forward.1} parent=5 // pred_fallthru
      _
    %p1901 = scmp.le.s32.totalorder 2, %s37
    // Predicated region
    $region113: #{gen_network_forward.1} parent=5 // pred_check
      %p1902 = pneg %p1901
    $region114: #{gen_network_forward.1} parent=5 // pred_check_branch
      %1904 = sbr.rel (%p1902) target = $region116
    $region115: #{gen_network_forward.1} parent=5 // pred_region
      %s1905 = ssub.s32 %s37, 2
      // Predicated region
      $region117: #{gen_network_forward.1} parent=115 // pred_check
        %p1906 = pneg %p533
      $region118: #{gen_network_forward.1} parent=115 // pred_check_branch
        %1908 = sbr.rel (%p1906) target = $region120
      $region119: #{gen_network_forward.1} parent=115 // pred_region
        %p1909 = scmp.lt.s32.totalorder %s43, 1
        %s1910 = scalar_select %p1909, %s43, 1
        %s1911 = scalar_lea.vmem %s23, %s1910
      $region120: #{gen_network_forward.1} parent=115 // pred_fallthru
        _
    $region116: #{gen_network_forward.1} parent=5 // pred_fallthru
      _
  $region6: #{gen_network_forward.1} parent=0 // loop_footer
    %s41 = sadd.s32 1, %s37
  $region7: #{gen_network_forward.1} parent=0 // loop_footer_branch
    %36 = sbr.rel target = $region3
  $region8: #{gen_network_forward.1} parent=0 // loop_exit
    _

</llo_original>
